<compile_context>
chip_gen: v7x
topology: tpu7x:2x2x1
jax: 0.10.0
libtpu: 0.0.40
codegen_flags: <defaults>
</compile_context>

<pallas_src>
import math
from functools import partial

import jax
import jax.numpy as jnp
from jax import lax
from jax.experimental import pallas as pl
from jax.experimental.pallas import tpu as pltpu


# ----------------------------------------------------------------------------
# Fused decoder-layer kernel (one grid step per batch chunk; default = whole batch)
# ----------------------------------------------------------------------------
def _decoder_layer_kernel(
    # inputs
    x_ref, cross_ref,
    s_wqkv_ref, s_bqkv_ref, s_wo_ref, s_bo_ref, g1_ref, b1_ref,
    c_wq_ref, c_bq_ref, c_wkv_ref, c_bkv_ref, c_wo_ref, c_bo_ref, g2_ref, b2_ref,
    w1_ref, bf1_ref, w2_ref, bf2_ref, g3_ref, b3_ref,
    # outputs
    o_ref, a1_ref, a2_ref,
    *, n_heads):
    f32 = jnp.float32
    bf16 = jnp.bfloat16
    BC, L, D = x_ref.shape
    S = cross_ref.shape[1]
    H = n_heads
    dk = D // H

    # Residual stream kept flat: (BC*L, D) so every matmul sees M = BC*L.
    x = x_ref[...].astype(f32).reshape(BC * L, D)
    cr = cross_ref[...].astype(f32).reshape(BC * S, D)

    def layer_norm(z, g_ref, b_ref):
        # LayerNorm over last dim, eps = 1e-5 (torch default); stats in f32.
        mu = jnp.mean(z, axis=-1, keepdims=True)
        var = jnp.mean((z - mu) ** 2, axis=-1, keepdims=True)
        zn = (z - mu) * lax.rsqrt(var + 1e-5)
        return zn * g_ref[...].astype(f32) + b_ref[...].astype(f32)

    def mha(q_f, k_f, v_f, lq, lkv, wo_ref, bo_ref, attn_ref):
        # q_f: (BC*lq, D), k_f/v_f: (BC*lkv, D).  Softmax scale already folded
        # into the Q projection weights (wrapper).  bf16 MXU, f32 accumulation.
        acc = jnp.zeros((BC * lq, D), f32)
        attn_heads = []
        for h in range(H):   # H is tiny; see TODO above for production dk.
            lo = h * dk
            qh = q_f[:, lo:lo + dk].reshape(BC, lq, dk).astype(bf16)
            kh = k_f[:, lo:lo + dk].reshape(BC, lkv, dk).astype(bf16)
            vh = v_f[:, lo:lo + dk].reshape(BC, lkv, dk).astype(bf16)
            s = jnp.einsum('bld,bsd->bls', qh, kh,
                           preferred_element_type=f32)            # (BC, lq, lkv)
            m = jnp.max(s, axis=-1, keepdims=True)
            e = jnp.exp(s - m)
            # EUP approximate reciprocal instead of a VPU divide.
            p = e * pl.reciprocal(jnp.sum(e, axis=-1, keepdims=True), approx=True)
            attn_heads.append(p)
            ctx = jnp.einsum('bls,bsd->bld', p.astype(bf16), vh,
                             preferred_element_type=f32)           # (BC, lq, dk)
            # Per-head output-projection accumulate (no lane-axis concatenate).
            acc = acc + jnp.dot(ctx.reshape(BC * lq, dk).astype(bf16),
                                wo_ref[lo:lo + dk, :],
                                preferred_element_type=f32)
        # Store all heads' attention maps in one write.
        attn_ref[...] = jnp.stack(attn_heads, axis=1).astype(attn_ref.dtype)
        return acc + bo_ref[...].astype(f32)

    # ---- self-attention (fused (D,3D) QKV projection) + residual + norm1 ----
    qkv = (jnp.dot(x.astype(bf16), s_wqkv_ref[...],
                   preferred_element_type=f32)
           + s_bqkv_ref[...].astype(f32))                          # (BC*L, 3D)
    sa = mha(qkv[:, :D], qkv[:, D:2 * D], qkv[:, 2 * D:], L, L,
             s_wo_ref, s_bo_ref, a1_ref)
    x1 = layer_norm(x + sa, g1_ref, b1_ref)

    # ---- cross-attention (fused (D,2D) KV projection) + residual + norm2 ----
    qc = (jnp.dot(x1.astype(bf16), c_wq_ref[...],
                  preferred_element_type=f32)
          + c_bq_ref[...].astype(f32))                             # (BC*L, D)
    kv = (jnp.dot(cr.astype(bf16), c_wkv_ref[...],
                  preferred_element_type=f32)
          + c_bkv_ref[...].astype(f32))                            # (BC*S, 2D)
    ca = mha(qc, kv[:, :D], kv[:, D:], L, S, c_wo_ref, c_bo_ref, a2_ref)
    x2 = layer_norm(x1 + ca, g2_ref, b2_ref)

    # ---- FFN (1x1 convs == pointwise matmuls) + residual + norm3 ----
    h1 = jnp.maximum(
        jnp.dot(x2.astype(bf16), w1_ref[...], preferred_element_type=f32)
        + bf1_ref[...].astype(f32), 0.0)                           # relu
    y = (jnp.dot(h1.astype(bf16), w2_ref[...], preferred_element_type=f32)
         + bf2_ref[...].astype(f32))
    out = layer_norm(x2 + y, g3_ref, b3_ref)
    o_ref[...] = out.reshape(BC, L, D).astype(o_ref.dtype)


# ----------------------------------------------------------------------------
# Wrapper: fold scale / concat projections / cast weights once, launch kernel
# ----------------------------------------------------------------------------
def decoder_layer_forward(params, x, cross, n_heads, *, num_batch_chunks=1):
    B, L, D = x.shape
    S = cross.shape[1]
    H = n_heads
    F = params["w1"].shape[1]
    dk = D // H
    assert B % num_batch_chunks == 0
    BC = B // num_batch_chunks
    scale = 1.0 / math.sqrt(dk)
    bf16 = jnp.bfloat16

    sa = params["self_attn"]
    ca = params["cross_attn"]
    # Fused projection weights; softmax scale folded into the Q block/bias
    # (done once in XLA; could be precomputed offline).  Weights in bf16.
    s_wqkv = jnp.concatenate([sa["wq"] * scale, sa["wk"], sa["wv"]],
                             axis=1).astype(bf16)                   # (D, 3D)
    s_bqkv = jnp.concatenate([sa["bq"] * scale, sa["bk"], sa["bv"]]).reshape(1, 3 * D)
    c_wq = (ca["wq"] * scale).astype(bf16)
    c_bq = (ca["bq"] * scale).reshape(1, D)
    c_wkv = jnp.concatenate([ca["wk"], ca["wv"]], axis=1).astype(bf16)  # (D, 2D)
    c_bkv = jnp.concatenate([ca["bk"], ca["bv"]]).reshape(1, 2 * D)

    kernel = partial(_decoder_layer_kernel, n_heads=n_heads)

    def const_spec(shape):
        nd = len(shape)
        return pl.BlockSpec(shape, lambda i, _nd=nd: (0,) * _nd)

    in_specs = [
        pl.BlockSpec((BC, L, D), lambda i: (i, 0, 0)),      # x
        pl.BlockSpec((BC, S, D), lambda i: (i, 0, 0)),      # cross
        const_spec((D, 3 * D)), const_spec((1, 3 * D)),     # self wqkv / bqkv
        const_spec((D, D)), const_spec((1, D)),             # self wo / bo
        const_spec((1, D)), const_spec((1, D)),             # norm1 g / b
        const_spec((D, D)), const_spec((1, D)),             # cross wq / bq
        const_spec((D, 2 * D)), const_spec((1, 2 * D)),     # cross wkv / bkv
        const_spec((D, D)), const_spec((1, D)),             # cross wo / bo
        const_spec((1, D)), const_spec((1, D)),             # norm2 g / b
        const_spec((D, F)), const_spec((1, F)),             # ffn w1 / b1
        const_spec((F, D)), const_spec((1, D)),             # ffn w2 / b2
        const_spec((1, D)), const_spec((1, D)),             # norm3 g / b
    ]
    out_specs = (
        pl.BlockSpec((BC, L, D), lambda i: (i, 0, 0)),
        pl.BlockSpec((BC, H, L, L), lambda i: (i, 0, 0, 0)),
        pl.BlockSpec((BC, H, L, S), lambda i: (i, 0, 0, 0)),
    )

    out, attn1, attn2 = pl.pallas_call(
        kernel,
        out_shape=(
            jax.ShapeDtypeStruct((B, L, D), x.dtype),
            jax.ShapeDtypeStruct((B, H, L, L), jnp.float32),
            jax.ShapeDtypeStruct((B, H, L, S), jnp.float32),
        ),
        grid=(num_batch_chunks,),
        in_specs=in_specs,
        out_specs=out_specs,
        compiler_params=pltpu.CompilerParams(
            dimension_semantics=("parallel",),      # v7x: 2 chunks -> 2 TCs
            vmem_limit_bytes=32 * 1024 * 1024),
    )(x, cross,
      s_wqkv, s_bqkv, sa["wo"].astype(bf16), sa["bo"].reshape(1, D),
      params["norm1_g"].reshape(1, D), params["norm1_b"].reshape(1, D),
      c_wq, c_bq, c_wkv, c_bkv,
      ca["wo"].astype(bf16), ca["bo"].reshape(1, D),
      params["norm2_g"].reshape(1, D), params["norm2_b"].reshape(1, D),
      params["w1"].astype(bf16), params["b1"].reshape(1, F),
      params["w2"].astype(bf16), params["b2"].reshape(1, D),
      params["norm3_g"].reshape(1, D), params["norm3_b"].reshape(1, D))
    return out, (attn1, attn2)


# ----------------------------------------------------------------------------
# Pure-JAX f32 reference (for correctness check of the Pallas kernel)
# ----------------------------------------------------------------------------
def _mha_ref(params, q_in, k_in, v_in, n_heads):
    B, L, D = q_in.shape
    S = k_in.shape[1]
    dk = D // n_heads
    q = (q_in @ params["wq"] + params["bq"]).reshape(B, L, n_heads, dk)
    k = (k_in @ params["wk"] + params["bk"]).reshape(B, S, n_heads, dk)
    v = (v_in @ params["wv"] + params["bv"]).reshape(B, S, n_heads, dk)
    scores = jnp.einsum("blhe,bshe->bhls", q, k) / math.sqrt(dk)
    attn = jax.nn.softmax(scores, axis=-1)
    out = jnp.einsum("bhls,bshd->blhd", attn, v).reshape(B, L, D)
    return out @ params["wo"] + params["bo"], attn


def _ln_ref(z, g, b):
    mu = jnp.mean(z, axis=-1, keepdims=True)
    var = jnp.mean((z - mu) ** 2, axis=-1, keepdims=True)
    return (z - mu) / jnp.sqrt(var + 1e-5) * g + b


def decoder_layer_ref(params, x, cross, n_heads):
    x_o, attn1 = _mha_ref(params["self_attn"], x, x, x, n_heads)
    x = _ln_ref(x + x_o, params["norm1_g"], params["norm1_b"])
    x_o, attn2 = _mha_ref(params["cross_attn"], x, cross, cross, n_heads)
    x = _ln_ref(x + x_o, params["norm2_g"], params["norm2_b"])
    y = jnp.maximum(x @ params["w1"] + params["b1"], 0.0) @ params["w2"] + params["b2"]
    return _ln_ref(x + y, params["norm3_g"], params["norm3_b"]), (attn1, attn2)


# ----------------------------------------------------------------------------
# Deterministic parameter init
# ----------------------------------------------------------------------------
def init_params(key, d_model, d_ff, n_heads):
    ks = iter(jax.random.split(key, 32))

    def w(fan_in, shape):
        return (jax.random.normal(next(ks), shape, jnp.float32) / math.sqrt(fan_in))

    def attn_params():
        return dict(
            wq=w(d_model, (d_model, d_model)), bq=jnp.zeros((d_model,), jnp.float32),
            wk=w(d_model, (d_model, d_model)), bk=jnp.zeros((d_model,), jnp.float32),
            wv=w(d_model, (d_model, d_model)), bv=jnp.zeros((d_model,), jnp.float32),
            wo=w(d_model, (d_model, d_model)), bo=jnp.zeros((d_model,), jnp.float32),
        )

    return dict(
        self_attn=attn_params(),
        cross_attn=attn_params(),
        # conv1: (d_ff, d_model, 1) -> folded to (d_model, d_ff); conv2 likewise.
        w1=w(d_model, (d_model, d_ff)), b1=jnp.zeros((d_ff,), jnp.float32),
        w2=w(d_ff, (d_ff, d_model)), b2=jnp.zeros((d_model,), jnp.float32),
        norm1_g=jnp.ones((d_model,), jnp.float32), norm1_b=jnp.zeros((d_model,), jnp.float32),
        norm2_g=jnp.ones((d_model,), jnp.float32), norm2_b=jnp.zeros((d_model,), jnp.float32),
        norm3_g=jnp.ones((d_model,), jnp.float32), norm3_b=jnp.zeros((d_model,), jnp.float32),
    )


if __name__ == "__main__":
    B, L, S = 2, 8, 12          # batch, decoder seq len, cross (encoder) seq len
    d_model, d_ff, n_heads = 32, 64, 4

    key = jax.random.PRNGKey(0)
    kp, kx, kc = jax.random.split(key, 3)
    params = init_params(kp, d_model, d_ff, n_heads)
    x = jax.random.normal(kx, (B, L, d_model), jnp.float32)
    cross = jax.random.normal(kc, (B, S, d_model), jnp.float32)

    out, (attn1, attn2) = decoder_layer_forward(params, x, cross, n_heads)
    out = jax.block_until_ready(out)
    attn1 = jax.block_until_ready(attn1)
    attn2 = jax.block_until_ready(attn2)

    # Verify against the pure-JAX f32 reference.  bf16 MXU operands + approx
    # reciprocal in the kernel => tolerances are looser than a pure-f32 kernel.
    out_ref, (a1_ref, a2_ref) = decoder_layer_ref(params, x, cross, n_heads)
    assert out.shape == (B, L, d_model)
    assert attn1.shape == (B, n_heads, L, L)
    assert attn2.shape == (B, n_heads, L, S)
    assert jnp.allclose(out, out_ref, atol=5e-2, rtol=5e-2)
    assert jnp.allclose(attn1, a1_ref, atol=2e-2, rtol=2e-2)
    assert jnp.allclose(attn2, a2_ref, atol=2e-2, rtol=2e-2)

    print("KERNEL_OK")
</pallas_src>

<mosaic_0001>
module attributes {stable_mosaic.version = 11 : i64} {
  func.func @_decoder_layer_kernel(%arg0: i32, %arg1: memref<2x8x32xf32, #tpu.memory_space<vmem>>, %arg2: memref<2x12x32xf32, #tpu.memory_space<vmem>>, %arg3: memref<32x96xbf16, #tpu.memory_space<vmem>>, %arg4: memref<1x96xf32, #tpu.memory_space<vmem>>, %arg5: memref<32x32xbf16, #tpu.memory_space<vmem>>, %arg6: memref<1x32xf32, #tpu.memory_space<vmem>>, %arg7: memref<1x32xf32, #tpu.memory_space<vmem>>, %arg8: memref<1x32xf32, #tpu.memory_space<vmem>>, %arg9: memref<32x32xbf16, #tpu.memory_space<vmem>>, %arg10: memref<1x32xf32, #tpu.memory_space<vmem>>, %arg11: memref<32x64xbf16, #tpu.memory_space<vmem>>, %arg12: memref<1x64xf32, #tpu.memory_space<vmem>>, %arg13: memref<32x32xbf16, #tpu.memory_space<vmem>>, %arg14: memref<1x32xf32, #tpu.memory_space<vmem>>, %arg15: memref<1x32xf32, #tpu.memory_space<vmem>>, %arg16: memref<1x32xf32, #tpu.memory_space<vmem>>, %arg17: memref<32x64xbf16, #tpu.memory_space<vmem>>, %arg18: memref<1x64xf32, #tpu.memory_space<vmem>>, %arg19: memref<64x32xbf16, #tpu.memory_space<vmem>>, %arg20: memref<1x32xf32, #tpu.memory_space<vmem>>, %arg21: memref<1x32xf32, #tpu.memory_space<vmem>>, %arg22: memref<1x32xf32, #tpu.memory_space<vmem>>, %arg23: memref<2x8x32xf32, #tpu.memory_space<vmem>>, %arg24: memref<2x4x8x8xf32, #tpu.memory_space<vmem>>, %arg25: memref<2x4x8x12xf32, #tpu.memory_space<vmem>>) attributes {dimension_semantics = [#tpu.dimension_semantics<parallel>], iteration_bounds = array<i64: 1>, scalar_prefetch = 0 : i64, scratch_operands = 0 : i64, tpu.core_type = #tpu.core_type<tc>, window_params = [{transform_indices = @transform_0, window_bounds = array<i64: 2, 8, 32>}, {transform_indices = @transform_1, window_bounds = array<i64: 2, 12, 32>}, {pipeline_mode = #tpu.pipeline_mode<synchronous>, transform_indices = @transform_2, window_bounds = array<i64: 32, 96>}, {pipeline_mode = #tpu.pipeline_mode<synchronous>, transform_indices = @transform_3, window_bounds = array<i64: 1, 96>}, {pipeline_mode = #tpu.pipeline_mode<synchronous>, transform_indices = @transform_4, window_bounds = array<i64: 32, 32>}, {pipeline_mode = #tpu.pipeline_mode<synchronous>, transform_indices = @transform_5, window_bounds = array<i64: 1, 32>}, {pipeline_mode = #tpu.pipeline_mode<synchronous>, transform_indices = @transform_6, window_bounds = array<i64: 1, 32>}, {pipeline_mode = #tpu.pipeline_mode<synchronous>, transform_indices = @transform_7, window_bounds = array<i64: 1, 32>}, {pipeline_mode = #tpu.pipeline_mode<synchronous>, transform_indices = @transform_8, window_bounds = array<i64: 32, 32>}, {pipeline_mode = #tpu.pipeline_mode<synchronous>, transform_indices = @transform_9, window_bounds = array<i64: 1, 32>}, {pipeline_mode = #tpu.pipeline_mode<synchronous>, transform_indices = @transform_10, window_bounds = array<i64: 32, 64>}, {pipeline_mode = #tpu.pipeline_mode<synchronous>, transform_indices = @transform_11, window_bounds = array<i64: 1, 64>}, {pipeline_mode = #tpu.pipeline_mode<synchronous>, transform_indices = @transform_12, window_bounds = array<i64: 32, 32>}, {pipeline_mode = #tpu.pipeline_mode<synchronous>, transform_indices = @transform_13, window_bounds = array<i64: 1, 32>}, {pipeline_mode = #tpu.pipeline_mode<synchronous>, transform_indices = @transform_14, window_bounds = array<i64: 1, 32>}, {pipeline_mode = #tpu.pipeline_mode<synchronous>, transform_indices = @transform_15, window_bounds = array<i64: 1, 32>}, {pipeline_mode = #tpu.pipeline_mode<synchronous>, transform_indices = @transform_16, window_bounds = array<i64: 32, 64>}, {pipeline_mode = #tpu.pipeline_mode<synchronous>, transform_indices = @transform_17, window_bounds = array<i64: 1, 64>}, {pipeline_mode = #tpu.pipeline_mode<synchronous>, transform_indices = @transform_18, window_bounds = array<i64: 64, 32>}, {pipeline_mode = #tpu.pipeline_mode<synchronous>, transform_indices = @transform_19, window_bounds = array<i64: 1, 32>}, {pipeline_mode = #tpu.pipeline_mode<synchronous>, transform_indices = @transform_20, window_bounds = array<i64: 1, 32>}, {pipeline_mode = #tpu.pipeline_mode<synchronous>, transform_indices = @transform_21, window_bounds = array<i64: 1, 32>}, {transform_indices = @transform_22, window_bounds = array<i64: 2, 8, 32>}, {transform_indices = @transform_23, window_bounds = array<i64: 2, 4, 8, 8>}, {transform_indices = @transform_24, window_bounds = array<i64: 2, 4, 8, 12>}]} {
    %c0 = arith.constant 0 : index
    %c0_0 = arith.constant 0 : index
    %c0_1 = arith.constant 0 : index
    %0 = vector.load %arg1[%c0, %c0_0, %c0_1] : memref<2x8x32xf32, #tpu.memory_space<vmem>>, vector<2x8x32xf32>
    %1 = vector.shape_cast %0 : vector<2x8x32xf32> to vector<16x32xf32>
    %c0_2 = arith.constant 0 : index
    %c0_3 = arith.constant 0 : index
    %c0_4 = arith.constant 0 : index
    %2 = vector.load %arg2[%c0_2, %c0_3, %c0_4] : memref<2x12x32xf32, #tpu.memory_space<vmem>>, vector<2x12x32xf32>
    %3 = vector.shape_cast %2 : vector<2x12x32xf32> to vector<24x32xf32>
    %4 = arith.truncf %1 : vector<16x32xf32> to vector<16x32xbf16>
    %c0_5 = arith.constant 0 : index
    %c0_6 = arith.constant 0 : index
    %5 = vector.load %arg3[%c0_5, %c0_6] : memref<32x96xbf16, #tpu.memory_space<vmem>>, vector<32x96xbf16>
    %cst = arith.constant dense<0.000000e+00> : vector<16x96xf32>
    %6 = tpu.matmul %4, %5, %cst {dimension_numbers = #tpu.dot_dimension_numbers<[1], [0], [0], [1], [0, 0, 1, 1], [], []>} : vector<16x32xbf16>, vector<32x96xbf16>, vector<16x96xf32> -> vector<16x96xf32>
    %c0_7 = arith.constant 0 : index
    %c0_8 = arith.constant 0 : index
    %7 = vector.load %arg4[%c0_7, %c0_8] : memref<1x96xf32, #tpu.memory_space<vmem>>, vector<1x96xf32>
    %8 = vector.broadcast %7 : vector<1x96xf32> to vector<16x96xf32>
    %9 = arith.addf %6, %8 : vector<16x96xf32>
    %10 = vector.extract_strided_slice %9 {offsets = [0, 0], sizes = [16, 32], strides = [1, 1]} : vector<16x96xf32> to vector<16x32xf32>
    %11 = vector.extract_strided_slice %9 {offsets = [0, 32], sizes = [16, 32], strides = [1, 1]} : vector<16x96xf32> to vector<16x32xf32>
    %12 = vector.extract_strided_slice %9 {offsets = [0, 64], sizes = [16, 32], strides = [1, 1]} : vector<16x96xf32> to vector<16x32xf32>
    %cst_9 = arith.constant 0.000000e+00 : f32
    %13 = vector.broadcast %cst_9 : f32 to vector<16x32xf32>
    %14 = vector.extract_strided_slice %10 {offsets = [0, 0], sizes = [16, 8], strides = [1, 1]} : vector<16x32xf32> to vector<16x8xf32>
    %15 = vector.shape_cast %14 : vector<16x8xf32> to vector<2x8x8xf32>
    %16 = arith.truncf %15 : vector<2x8x8xf32> to vector<2x8x8xbf16>
    %17 = vector.extract_strided_slice %11 {offsets = [0, 0], sizes = [16, 8], strides = [1, 1]} : vector<16x32xf32> to vector<16x8xf32>
    %18 = vector.shape_cast %17 : vector<16x8xf32> to vector<2x8x8xf32>
    %19 = arith.truncf %18 : vector<2x8x8xf32> to vector<2x8x8xbf16>
    %20 = vector.extract_strided_slice %12 {offsets = [0, 0], sizes = [16, 8], strides = [1, 1]} : vector<16x32xf32> to vector<16x8xf32>
    %21 = vector.shape_cast %20 : vector<16x8xf32> to vector<2x8x8xf32>
    %22 = arith.truncf %21 : vector<2x8x8xf32> to vector<2x8x8xbf16>
    "tpu.trace_start"() <{level = 10 : i32, message = "bld,bsd->bls"}> : () -> ()
    %cst_10 = arith.constant dense<0.000000e+00> : vector<2x8x8xf32>
    %23 = tpu.matmul %16, %19, %cst_10 {dimension_numbers = #tpu.dot_dimension_numbers<[2], [2], [1], [1], [0, 0, 0, 1, 1, 1], [0], [0]>} : vector<2x8x8xbf16>, vector<2x8x8xbf16>, vector<2x8x8xf32> -> vector<2x8x8xf32>
    "tpu.trace_stop"() : () -> ()
    %cst_11 = arith.constant dense<0xFF800000> : vector<2x8xf32>
    %24 = vector.multi_reduction <maximumf>, %23, %cst_11 [2] : vector<2x8x8xf32> to vector<2x8xf32>
    %25 = vector.shape_cast %24 : vector<2x8xf32> to vector<2x8x1xf32>
    %26 = vector.broadcast %25 : vector<2x8x1xf32> to vector<2x8x8xf32>
    %27 = arith.subf %23, %26 : vector<2x8x8xf32>
    %28 = math.exp %27 : vector<2x8x8xf32>
    %cst_12 = arith.constant dense<0.000000e+00> : vector<2x8xf32>
    %29 = vector.multi_reduction <add>, %28, %cst_12 [2] : vector<2x8x8xf32> to vector<2x8xf32>
    %30 = vector.shape_cast %29 : vector<2x8xf32> to vector<2x8x1xf32>
    %31 = tpu.reciprocal %30 {approx = true} : vector<2x8x1xf32> -> vector<2x8x1xf32>
    %32 = vector.broadcast %31 : vector<2x8x1xf32> to vector<2x8x8xf32>
    %33 = arith.mulf %28, %32 : vector<2x8x8xf32>
    %34 = arith.truncf %33 : vector<2x8x8xf32> to vector<2x8x8xbf16>
    "tpu.trace_start"() <{level = 10 : i32, message = "bls,bsd->bld"}> : () -> ()
    %cst_13 = arith.constant dense<0.000000e+00> : vector<2x8x8xf32>
    %35 = tpu.matmul %34, %22, %cst_13 {dimension_numbers = #tpu.dot_dimension_numbers<[2], [1], [1], [2], [0, 0, 0, 1, 1, 2], [0], [0]>} : vector<2x8x8xbf16>, vector<2x8x8xbf16>, vector<2x8x8xf32> -> vector<2x8x8xf32>
    "tpu.trace_stop"() : () -> ()
    %36 = vector.shape_cast %35 : vector<2x8x8xf32> to vector<16x8xf32>
    %37 = arith.truncf %36 : vector<16x8xf32> to vector<16x8xbf16>
    %c0_14 = arith.constant 0 : index
    %c0_15 = arith.constant 0 : index
    %38 = vector.load %arg5[%c0_14, %c0_15] : memref<32x32xbf16, #tpu.memory_space<vmem>>, vector<8x32xbf16>
    %cst_16 = arith.constant dense<0.000000e+00> : vector<16x32xf32>
    %39 = tpu.matmul %37, %38, %cst_16 {dimension_numbers = #tpu.dot_dimension_numbers<[1], [0], [0], [1], [0, 0, 1, 1], [], []>} : vector<16x8xbf16>, vector<8x32xbf16>, vector<16x32xf32> -> vector<16x32xf32>
    %40 = arith.addf %13, %39 : vector<16x32xf32>
    %41 = vector.extract_strided_slice %10 {offsets = [0, 8], sizes = [16, 8], strides = [1, 1]} : vector<16x32xf32> to vector<16x8xf32>
    %42 = vector.shape_cast %41 : vector<16x8xf32> to vector<2x8x8xf32>
    %43 = arith.truncf %42 : vector<2x8x8xf32> to vector<2x8x8xbf16>
    %44 = vector.extract_strided_slice %11 {offsets = [0, 8], sizes = [16, 8], strides = [1, 1]} : vector<16x32xf32> to vector<16x8xf32>
    %45 = vector.shape_cast %44 : vector<16x8xf32> to vector<2x8x8xf32>
    %46 = arith.truncf %45 : vector<2x8x8xf32> to vector<2x8x8xbf16>
    %47 = vector.extract_strided_slice %12 {offsets = [0, 8], sizes = [16, 8], strides = [1, 1]} : vector<16x32xf32> to vector<16x8xf32>
    %48 = vector.shape_cast %47 : vector<16x8xf32> to vector<2x8x8xf32>
    %49 = arith.truncf %48 : vector<2x8x8xf32> to vector<2x8x8xbf16>
    "tpu.trace_start"() <{level = 10 : i32, message = "bld,bsd->bls"}> : () -> ()
    %cst_17 = arith.constant dense<0.000000e+00> : vector<2x8x8xf32>
    %50 = tpu.matmul %43, %46, %cst_17 {dimension_numbers = #tpu.dot_dimension_numbers<[2], [2], [1], [1], [0, 0, 0, 1, 1, 1], [0], [0]>} : vector<2x8x8xbf16>, vector<2x8x8xbf16>, vector<2x8x8xf32> -> vector<2x8x8xf32>
    "tpu.trace_stop"() : () -> ()
    %cst_18 = arith.constant dense<0xFF800000> : vector<2x8xf32>
    %51 = vector.multi_reduction <maximumf>, %50, %cst_18 [2] : vector<2x8x8xf32> to vector<2x8xf32>
    %52 = vector.shape_cast %51 : vector<2x8xf32> to vector<2x8x1xf32>
    %53 = vector.broadcast %52 : vector<2x8x1xf32> to vector<2x8x8xf32>
    %54 = arith.subf %50, %53 : vector<2x8x8xf32>
    %55 = math.exp %54 : vector<2x8x8xf32>
    %cst_19 = arith.constant dense<0.000000e+00> : vector<2x8xf32>
    %56 = vector.multi_reduction <add>, %55, %cst_19 [2] : vector<2x8x8xf32> to vector<2x8xf32>
    %57 = vector.shape_cast %56 : vector<2x8xf32> to vector<2x8x1xf32>
    %58 = tpu.reciprocal %57 {approx = true} : vector<2x8x1xf32> -> vector<2x8x1xf32>
    %59 = vector.broadcast %58 : vector<2x8x1xf32> to vector<2x8x8xf32>
    %60 = arith.mulf %55, %59 : vector<2x8x8xf32>
    %61 = arith.truncf %60 : vector<2x8x8xf32> to vector<2x8x8xbf16>
    "tpu.trace_start"() <{level = 10 : i32, message = "bls,bsd->bld"}> : () -> ()
    %cst_20 = arith.constant dense<0.000000e+00> : vector<2x8x8xf32>
    %62 = tpu.matmul %61, %49, %cst_20 {dimension_numbers = #tpu.dot_dimension_numbers<[2], [1], [1], [2], [0, 0, 0, 1, 1, 2], [0], [0]>} : vector<2x8x8xbf16>, vector<2x8x8xbf16>, vector<2x8x8xf32> -> vector<2x8x8xf32>
    "tpu.trace_stop"() : () -> ()
    %63 = vector.shape_cast %62 : vector<2x8x8xf32> to vector<16x8xf32>
    %64 = arith.truncf %63 : vector<16x8xf32> to vector<16x8xbf16>
    %c8 = arith.constant 8 : index
    %c0_21 = arith.constant 0 : index
    %65 = vector.load %arg5[%c8, %c0_21] : memref<32x32xbf16, #tpu.memory_space<vmem>>, vector<8x32xbf16>
    %cst_22 = arith.constant dense<0.000000e+00> : vector<16x32xf32>
    %66 = tpu.matmul %64, %65, %cst_22 {dimension_numbers = #tpu.dot_dimension_numbers<[1], [0], [0], [1], [0, 0, 1, 1], [], []>} : vector<16x8xbf16>, vector<8x32xbf16>, vector<16x32xf32> -> vector<16x32xf32>
    %67 = arith.addf %40, %66 : vector<16x32xf32>
    %68 = vector.extract_strided_slice %10 {offsets = [0, 16], sizes = [16, 8], strides = [1, 1]} : vector<16x32xf32> to vector<16x8xf32>
    %69 = vector.shape_cast %68 : vector<16x8xf32> to vector<2x8x8xf32>
    %70 = arith.truncf %69 : vector<2x8x8xf32> to vector<2x8x8xbf16>
    %71 = vector.extract_strided_slice %11 {offsets = [0, 16], sizes = [16, 8], strides = [1, 1]} : vector<16x32xf32> to vector<16x8xf32>
    %72 = vector.shape_cast %71 : vector<16x8xf32> to vector<2x8x8xf32>
    %73 = arith.truncf %72 : vector<2x8x8xf32> to vector<2x8x8xbf16>
    %74 = vector.extract_strided_slice %12 {offsets = [0, 16], sizes = [16, 8], strides = [1, 1]} : vector<16x32xf32> to vector<16x8xf32>
    %75 = vector.shape_cast %74 : vector<16x8xf32> to vector<2x8x8xf32>
    %76 = arith.truncf %75 : vector<2x8x8xf32> to vector<2x8x8xbf16>
    "tpu.trace_start"() <{level = 10 : i32, message = "bld,bsd->bls"}> : () -> ()
    %cst_23 = arith.constant dense<0.000000e+00> : vector<2x8x8xf32>
    %77 = tpu.matmul %70, %73, %cst_23 {dimension_numbers = #tpu.dot_dimension_numbers<[2], [2], [1], [1], [0, 0, 0, 1, 1, 1], [0], [0]>} : vector<2x8x8xbf16>, vector<2x8x8xbf16>, vector<2x8x8xf32> -> vector<2x8x8xf32>
    "tpu.trace_stop"() : () -> ()
    %cst_24 = arith.constant dense<0xFF800000> : vector<2x8xf32>
    %78 = vector.multi_reduction <maximumf>, %77, %cst_24 [2] : vector<2x8x8xf32> to vector<2x8xf32>
    %79 = vector.shape_cast %78 : vector<2x8xf32> to vector<2x8x1xf32>
    %80 = vector.broadcast %79 : vector<2x8x1xf32> to vector<2x8x8xf32>
    %81 = arith.subf %77, %80 : vector<2x8x8xf32>
    %82 = math.exp %81 : vector<2x8x8xf32>
    %cst_25 = arith.constant dense<0.000000e+00> : vector<2x8xf32>
    %83 = vector.multi_reduction <add>, %82, %cst_25 [2] : vector<2x8x8xf32> to vector<2x8xf32>
    %84 = vector.shape_cast %83 : vector<2x8xf32> to vector<2x8x1xf32>
    %85 = tpu.reciprocal %84 {approx = true} : vector<2x8x1xf32> -> vector<2x8x1xf32>
    %86 = vector.broadcast %85 : vector<2x8x1xf32> to vector<2x8x8xf32>
    %87 = arith.mulf %82, %86 : vector<2x8x8xf32>
    %88 = arith.truncf %87 : vector<2x8x8xf32> to vector<2x8x8xbf16>
    "tpu.trace_start"() <{level = 10 : i32, message = "bls,bsd->bld"}> : () -> ()
    %cst_26 = arith.constant dense<0.000000e+00> : vector<2x8x8xf32>
    %89 = tpu.matmul %88, %76, %cst_26 {dimension_numbers = #tpu.dot_dimension_numbers<[2], [1], [1], [2], [0, 0, 0, 1, 1, 2], [0], [0]>} : vector<2x8x8xbf16>, vector<2x8x8xbf16>, vector<2x8x8xf32> -> vector<2x8x8xf32>
    "tpu.trace_stop"() : () -> ()
    %90 = vector.shape_cast %89 : vector<2x8x8xf32> to vector<16x8xf32>
    %91 = arith.truncf %90 : vector<16x8xf32> to vector<16x8xbf16>
    %c16 = arith.constant 16 : index
    %c0_27 = arith.constant 0 : index
    %92 = vector.load %arg5[%c16, %c0_27] : memref<32x32xbf16, #tpu.memory_space<vmem>>, vector<8x32xbf16>
    %cst_28 = arith.constant dense<0.000000e+00> : vector<16x32xf32>
    %93 = tpu.matmul %91, %92, %cst_28 {dimension_numbers = #tpu.dot_dimension_numbers<[1], [0], [0], [1], [0, 0, 1, 1], [], []>} : vector<16x8xbf16>, vector<8x32xbf16>, vector<16x32xf32> -> vector<16x32xf32>
    %94 = arith.addf %67, %93 : vector<16x32xf32>
    %95 = vector.extract_strided_slice %10 {offsets = [0, 24], sizes = [16, 8], strides = [1, 1]} : vector<16x32xf32> to vector<16x8xf32>
    %96 = vector.shape_cast %95 : vector<16x8xf32> to vector<2x8x8xf32>
    %97 = arith.truncf %96 : vector<2x8x8xf32> to vector<2x8x8xbf16>
    %98 = vector.extract_strided_slice %11 {offsets = [0, 24], sizes = [16, 8], strides = [1, 1]} : vector<16x32xf32> to vector<16x8xf32>
    %99 = vector.shape_cast %98 : vector<16x8xf32> to vector<2x8x8xf32>
    %100 = arith.truncf %99 : vector<2x8x8xf32> to vector<2x8x8xbf16>
    %101 = vector.extract_strided_slice %12 {offsets = [0, 24], sizes = [16, 8], strides = [1, 1]} : vector<16x32xf32> to vector<16x8xf32>
    %102 = vector.shape_cast %101 : vector<16x8xf32> to vector<2x8x8xf32>
    %103 = arith.truncf %102 : vector<2x8x8xf32> to vector<2x8x8xbf16>
    "tpu.trace_start"() <{level = 10 : i32, message = "bld,bsd->bls"}> : () -> ()
    %cst_29 = arith.constant dense<0.000000e+00> : vector<2x8x8xf32>
    %104 = tpu.matmul %97, %100, %cst_29 {dimension_numbers = #tpu.dot_dimension_numbers<[2], [2], [1], [1], [0, 0, 0, 1, 1, 1], [0], [0]>} : vector<2x8x8xbf16>, vector<2x8x8xbf16>, vector<2x8x8xf32> -> vector<2x8x8xf32>
    "tpu.trace_stop"() : () -> ()
    %cst_30 = arith.constant dense<0xFF800000> : vector<2x8xf32>
    %105 = vector.multi_reduction <maximumf>, %104, %cst_30 [2] : vector<2x8x8xf32> to vector<2x8xf32>
    %106 = vector.shape_cast %105 : vector<2x8xf32> to vector<2x8x1xf32>
    %107 = vector.broadcast %106 : vector<2x8x1xf32> to vector<2x8x8xf32>
    %108 = arith.subf %104, %107 : vector<2x8x8xf32>
    %109 = math.exp %108 : vector<2x8x8xf32>
    %cst_31 = arith.constant dense<0.000000e+00> : vector<2x8xf32>
    %110 = vector.multi_reduction <add>, %109, %cst_31 [2] : vector<2x8x8xf32> to vector<2x8xf32>
    %111 = vector.shape_cast %110 : vector<2x8xf32> to vector<2x8x1xf32>
    %112 = tpu.reciprocal %111 {approx = true} : vector<2x8x1xf32> -> vector<2x8x1xf32>
    %113 = vector.broadcast %112 : vector<2x8x1xf32> to vector<2x8x8xf32>
    %114 = arith.mulf %109, %113 : vector<2x8x8xf32>
    %115 = arith.truncf %114 : vector<2x8x8xf32> to vector<2x8x8xbf16>
    "tpu.trace_start"() <{level = 10 : i32, message = "bls,bsd->bld"}> : () -> ()
    %cst_32 = arith.constant dense<0.000000e+00> : vector<2x8x8xf32>
    %116 = tpu.matmul %115, %103, %cst_32 {dimension_numbers = #tpu.dot_dimension_numbers<[2], [1], [1], [2], [0, 0, 0, 1, 1, 2], [0], [0]>} : vector<2x8x8xbf16>, vector<2x8x8xbf16>, vector<2x8x8xf32> -> vector<2x8x8xf32>
    "tpu.trace_stop"() : () -> ()
    %117 = vector.shape_cast %116 : vector<2x8x8xf32> to vector<16x8xf32>
    %118 = arith.truncf %117 : vector<16x8xf32> to vector<16x8xbf16>
    %c24 = arith.constant 24 : index
    %c0_33 = arith.constant 0 : index
    %119 = vector.load %arg5[%c24, %c0_33] : memref<32x32xbf16, #tpu.memory_space<vmem>>, vector<8x32xbf16>
    %cst_34 = arith.constant dense<0.000000e+00> : vector<16x32xf32>
    %120 = tpu.matmul %118, %119, %cst_34 {dimension_numbers = #tpu.dot_dimension_numbers<[1], [0], [0], [1], [0, 0, 1, 1], [], []>} : vector<16x8xbf16>, vector<8x32xbf16>, vector<16x32xf32> -> vector<16x32xf32>
    %121 = arith.addf %94, %120 : vector<16x32xf32>
    %122 = vector.shape_cast %33 : vector<2x8x8xf32> to vector<2x1x8x8xf32>
    %123 = vector.shape_cast %60 : vector<2x8x8xf32> to vector<2x1x8x8xf32>
    %124 = vector.shape_cast %87 : vector<2x8x8xf32> to vector<2x1x8x8xf32>
    %125 = vector.shape_cast %114 : vector<2x8x8xf32> to vector<2x1x8x8xf32>
    %126 = tpu.concatenate %122, %123, %124, %125 in 1 : vector<2x1x8x8xf32>, vector<2x1x8x8xf32>, vector<2x1x8x8xf32>, vector<2x1x8x8xf32> -> vector<2x4x8x8xf32>
    %c0_35 = arith.constant 0 : index
    %c0_36 = arith.constant 0 : index
    %c0_37 = arith.constant 0 : index
    %c0_38 = arith.constant 0 : index
    %127 = vector.load %arg24[%c0_35, %c0_36, %c0_37, %c0_38] : memref<2x4x8x8xf32, #tpu.memory_space<vmem>>, vector<2x4x8x8xf32>
    tpu.vector_store %arg24[%c0_35, %c0_36, %c0_37, %c0_38], %126 {strides = array<i32>} : memref<2x4x8x8xf32, #tpu.memory_space<vmem>>, vector<2x4x8x8xf32>,
    %c0_39 = arith.constant 0 : index
    %c0_40 = arith.constant 0 : index
    %128 = vector.load %arg6[%c0_39, %c0_40] : memref<1x32xf32, #tpu.memory_space<vmem>>, vector<1x32xf32>
    %129 = vector.broadcast %128 : vector<1x32xf32> to vector<16x32xf32>
    %130 = arith.addf %121, %129 : vector<16x32xf32>
    %131 = arith.addf %1, %130 : vector<16x32xf32>
    %cst_41 = arith.constant dense<0.000000e+00> : vector<16xf32>
    %132 = vector.multi_reduction <add>, %131, %cst_41 [1] : vector<16x32xf32> to vector<16xf32>
    %133 = vector.shape_cast %132 : vector<16xf32> to vector<16x1xf32>
    %cst_42 = arith.constant 3.200000e+01 : f32
    %134 = vector.broadcast %cst_42 : f32 to vector<16x1xf32>
    %135 = arith.divf %133, %134 : vector<16x1xf32>
    %136 = vector.broadcast %135 : vector<16x1xf32> to vector<16x32xf32>
    %137 = arith.subf %131, %136 : vector<16x32xf32>
    %138 = arith.mulf %137, %137 : vector<16x32xf32>
    %cst_43 = arith.constant dense<0.000000e+00> : vector<16xf32>
    %139 = vector.multi_reduction <add>, %138, %cst_43 [1] : vector<16x32xf32> to vector<16xf32>
    %140 = vector.shape_cast %139 : vector<16xf32> to vector<16x1xf32>
    %cst_44 = arith.constant 3.200000e+01 : f32
    %141 = vector.broadcast %cst_44 : f32 to vector<16x1xf32>
    %142 = arith.divf %140, %141 : vector<16x1xf32>
    %143 = vector.broadcast %135 : vector<16x1xf32> to vector<16x32xf32>
    %144 = arith.subf %131, %143 : vector<16x32xf32>
    %cst_45 = arith.constant 9.99999974E-6 : f32
    %145 = vector.broadcast %cst_45 : f32 to vector<16x1xf32>
    %146 = arith.addf %142, %145 : vector<16x1xf32>
    %147 = math.rsqrt %146 : vector<16x1xf32>
    %148 = vector.broadcast %147 : vector<16x1xf32> to vector<16x32xf32>
    %149 = arith.mulf %144, %148 : vector<16x32xf32>
    %c0_46 = arith.constant 0 : index
    %c0_47 = arith.constant 0 : index
    %150 = vector.load %arg7[%c0_46, %c0_47] : memref<1x32xf32, #tpu.memory_space<vmem>>, vector<1x32xf32>
    %151 = vector.broadcast %150 : vector<1x32xf32> to vector<16x32xf32>
    %152 = arith.mulf %149, %151 : vector<16x32xf32>
    %c0_48 = arith.constant 0 : index
    %c0_49 = arith.constant 0 : index
    %153 = vector.load %arg8[%c0_48, %c0_49] : memref<1x32xf32, #tpu.memory_space<vmem>>, vector<1x32xf32>
    %154 = vector.broadcast %153 : vector<1x32xf32> to vector<16x32xf32>
    %155 = arith.addf %152, %154 : vector<16x32xf32>
    %156 = arith.truncf %155 : vector<16x32xf32> to vector<16x32xbf16>
    %c0_50 = arith.constant 0 : index
    %c0_51 = arith.constant 0 : index
    %157 = vector.load %arg9[%c0_50, %c0_51] : memref<32x32xbf16, #tpu.memory_space<vmem>>, vector<32x32xbf16>
    %cst_52 = arith.constant dense<0.000000e+00> : vector<16x32xf32>
    %158 = tpu.matmul %156, %157, %cst_52 {dimension_numbers = #tpu.dot_dimension_numbers<[1], [0], [0], [1], [0, 0, 1, 1], [], []>} : vector<16x32xbf16>, vector<32x32xbf16>, vector<16x32xf32> -> vector<16x32xf32>
    %c0_53 = arith.constant 0 : index
    %c0_54 = arith.constant 0 : index
    %159 = vector.load %arg10[%c0_53, %c0_54] : memref<1x32xf32, #tpu.memory_space<vmem>>, vector<1x32xf32>
    %160 = vector.broadcast %159 : vector<1x32xf32> to vector<16x32xf32>
    %161 = arith.addf %158, %160 : vector<16x32xf32>
    %162 = arith.truncf %3 : vector<24x32xf32> to vector<24x32xbf16>
    %c0_55 = arith.constant 0 : index
    %c0_56 = arith.constant 0 : index
    %163 = vector.load %arg11[%c0_55, %c0_56] : memref<32x64xbf16, #tpu.memory_space<vmem>>, vector<32x64xbf16>
    %cst_57 = arith.constant dense<0.000000e+00> : vector<24x64xf32>
    %164 = tpu.matmul %162, %163, %cst_57 {dimension_numbers = #tpu.dot_dimension_numbers<[1], [0], [0], [1], [0, 0, 1, 1], [], []>} : vector<24x32xbf16>, vector<32x64xbf16>, vector<24x64xf32> -> vector<24x64xf32>
    %c0_58 = arith.constant 0 : index
    %c0_59 = arith.constant 0 : index
    %165 = vector.load %arg12[%c0_58, %c0_59] : memref<1x64xf32, #tpu.memory_space<vmem>>, vector<1x64xf32>
    %166 = vector.broadcast %165 : vector<1x64xf32> to vector<24x64xf32>
    %167 = arith.addf %164, %166 : vector<24x64xf32>
    %168 = vector.extract_strided_slice %167 {offsets = [0, 0], sizes = [24, 32], strides = [1, 1]} : vector<24x64xf32> to vector<24x32xf32>
    %169 = vector.extract_strided_slice %167 {offsets = [0, 32], sizes = [24, 32], strides = [1, 1]} : vector<24x64xf32> to vector<24x32xf32>
    %cst_60 = arith.constant 0.000000e+00 : f32
    %170 = vector.broadcast %cst_60 : f32 to vector<16x32xf32>
    %171 = vector.extract_strided_slice %161 {offsets = [0, 0], sizes = [16, 8], strides = [1, 1]} : vector<16x32xf32> to vector<16x8xf32>
    %172 = vector.shape_cast %171 : vector<16x8xf32> to vector<2x8x8xf32>
    %173 = arith.truncf %172 : vector<2x8x8xf32> to vector<2x8x8xbf16>
    %174 = vector.extract_strided_slice %168 {offsets = [0, 0], sizes = [24, 8], strides = [1, 1]} : vector<24x32xf32> to vector<24x8xf32>
    %175 = vector.shape_cast %174 : vector<24x8xf32> to vector<2x12x8xf32>
    %176 = arith.truncf %175 : vector<2x12x8xf32> to vector<2x12x8xbf16>
    %177 = vector.extract_strided_slice %169 {offsets = [0, 0], sizes = [24, 8], strides = [1, 1]} : vector<24x32xf32> to vector<24x8xf32>
    %178 = vector.shape_cast %177 : vector<24x8xf32> to vector<2x12x8xf32>
    %179 = arith.truncf %178 : vector<2x12x8xf32> to vector<2x12x8xbf16>
    "tpu.trace_start"() <{level = 10 : i32, message = "bld,bsd->bls"}> : () -> ()
    %cst_61 = arith.constant dense<0.000000e+00> : vector<2x8x12xf32>
    %180 = tpu.matmul %173, %176, %cst_61 {dimension_numbers = #tpu.dot_dimension_numbers<[2], [2], [1], [1], [0, 0, 0, 1, 1, 1], [0], [0]>} : vector<2x8x8xbf16>, vector<2x12x8xbf16>, vector<2x8x12xf32> -> vector<2x8x12xf32>
    "tpu.trace_stop"() : () -> ()
    %cst_62 = arith.constant dense<0xFF800000> : vector<2x8xf32>
    %181 = vector.multi_reduction <maximumf>, %180, %cst_62 [2] : vector<2x8x12xf32> to vector<2x8xf32>
    %182 = vector.shape_cast %181 : vector<2x8xf32> to vector<2x8x1xf32>
    %183 = vector.broadcast %182 : vector<2x8x1xf32> to vector<2x8x12xf32>
    %184 = arith.subf %180, %183 : vector<2x8x12xf32>
    %185 = math.exp %184 : vector<2x8x12xf32>
    %cst_63 = arith.constant dense<0.000000e+00> : vector<2x8xf32>
    %186 = vector.multi_reduction <add>, %185, %cst_63 [2] : vector<2x8x12xf32> to vector<2x8xf32>
    %187 = vector.shape_cast %186 : vector<2x8xf32> to vector<2x8x1xf32>
    %188 = tpu.reciprocal %187 {approx = true} : vector<2x8x1xf32> -> vector<2x8x1xf32>
    %189 = vector.broadcast %188 : vector<2x8x1xf32> to vector<2x8x12xf32>
    %190 = arith.mulf %185, %189 : vector<2x8x12xf32>
    %191 = arith.truncf %190 : vector<2x8x12xf32> to vector<2x8x12xbf16>
    "tpu.trace_start"() <{level = 10 : i32, message = "bls,bsd->bld"}> : () -> ()
    %cst_64 = arith.constant dense<0.000000e+00> : vector<2x8x8xf32>
    %192 = tpu.matmul %191, %179, %cst_64 {dimension_numbers = #tpu.dot_dimension_numbers<[2], [1], [1], [2], [0, 0, 0, 1, 1, 2], [0], [0]>} : vector<2x8x12xbf16>, vector<2x12x8xbf16>, vector<2x8x8xf32> -> vector<2x8x8xf32>
    "tpu.trace_stop"() : () -> ()
    %193 = vector.shape_cast %192 : vector<2x8x8xf32> to vector<16x8xf32>
    %194 = arith.truncf %193 : vector<16x8xf32> to vector<16x8xbf16>
    %c0_65 = arith.constant 0 : index
    %c0_66 = arith.constant 0 : index
    %195 = vector.load %arg13[%c0_65, %c0_66] : memref<32x32xbf16, #tpu.memory_space<vmem>>, vector<8x32xbf16>
    %cst_67 = arith.constant dense<0.000000e+00> : vector<16x32xf32>
    %196 = tpu.matmul %194, %195, %cst_67 {dimension_numbers = #tpu.dot_dimension_numbers<[1], [0], [0], [1], [0, 0, 1, 1], [], []>} : vector<16x8xbf16>, vector<8x32xbf16>, vector<16x32xf32> -> vector<16x32xf32>
    %197 = arith.addf %170, %196 : vector<16x32xf32>
    %198 = vector.extract_strided_slice %161 {offsets = [0, 8], sizes = [16, 8], strides = [1, 1]} : vector<16x32xf32> to vector<16x8xf32>
    %199 = vector.shape_cast %198 : vector<16x8xf32> to vector<2x8x8xf32>
    %200 = arith.truncf %199 : vector<2x8x8xf32> to vector<2x8x8xbf16>
    %201 = vector.extract_strided_slice %168 {offsets = [0, 8], sizes = [24, 8], strides = [1, 1]} : vector<24x32xf32> to vector<24x8xf32>
    %202 = vector.shape_cast %201 : vector<24x8xf32> to vector<2x12x8xf32>
    %203 = arith.truncf %202 : vector<2x12x8xf32> to vector<2x12x8xbf16>
    %204 = vector.extract_strided_slice %169 {offsets = [0, 8], sizes = [24, 8], strides = [1, 1]} : vector<24x32xf32> to vector<24x8xf32>
    %205 = vector.shape_cast %204 : vector<24x8xf32> to vector<2x12x8xf32>
    %206 = arith.truncf %205 : vector<2x12x8xf32> to vector<2x12x8xbf16>
    "tpu.trace_start"() <{level = 10 : i32, message = "bld,bsd->bls"}> : () -> ()
    %cst_68 = arith.constant dense<0.000000e+00> : vector<2x8x12xf32>
    %207 = tpu.matmul %200, %203, %cst_68 {dimension_numbers = #tpu.dot_dimension_numbers<[2], [2], [1], [1], [0, 0, 0, 1, 1, 1], [0], [0]>} : vector<2x8x8xbf16>, vector<2x12x8xbf16>, vector<2x8x12xf32> -> vector<2x8x12xf32>
    "tpu.trace_stop"() : () -> ()
    %cst_69 = arith.constant dense<0xFF800000> : vector<2x8xf32>
    %208 = vector.multi_reduction <maximumf>, %207, %cst_69 [2] : vector<2x8x12xf32> to vector<2x8xf32>
    %209 = vector.shape_cast %208 : vector<2x8xf32> to vector<2x8x1xf32>
    %210 = vector.broadcast %209 : vector<2x8x1xf32> to vector<2x8x12xf32>
    %211 = arith.subf %207, %210 : vector<2x8x12xf32>
    %212 = math.exp %211 : vector<2x8x12xf32>
    %cst_70 = arith.constant dense<0.000000e+00> : vector<2x8xf32>
    %213 = vector.multi_reduction <add>, %212, %cst_70 [2] : vector<2x8x12xf32> to vector<2x8xf32>
    %214 = vector.shape_cast %213 : vector<2x8xf32> to vector<2x8x1xf32>
    %215 = tpu.reciprocal %214 {approx = true} : vector<2x8x1xf32> -> vector<2x8x1xf32>
    %216 = vector.broadcast %215 : vector<2x8x1xf32> to vector<2x8x12xf32>
    %217 = arith.mulf %212, %216 : vector<2x8x12xf32>
    %218 = arith.truncf %217 : vector<2x8x12xf32> to vector<2x8x12xbf16>
    "tpu.trace_start"() <{level = 10 : i32, message = "bls,bsd->bld"}> : () -> ()
    %cst_71 = arith.constant dense<0.000000e+00> : vector<2x8x8xf32>
    %219 = tpu.matmul %218, %206, %cst_71 {dimension_numbers = #tpu.dot_dimension_numbers<[2], [1], [1], [2], [0, 0, 0, 1, 1, 2], [0], [0]>} : vector<2x8x12xbf16>, vector<2x12x8xbf16>, vector<2x8x8xf32> -> vector<2x8x8xf32>
    "tpu.trace_stop"() : () -> ()
    %220 = vector.shape_cast %219 : vector<2x8x8xf32> to vector<16x8xf32>
    %221 = arith.truncf %220 : vector<16x8xf32> to vector<16x8xbf16>
    %c8_72 = arith.constant 8 : index
    %c0_73 = arith.constant 0 : index
    %222 = vector.load %arg13[%c8_72, %c0_73] : memref<32x32xbf16, #tpu.memory_space<vmem>>, vector<8x32xbf16>
    %cst_74 = arith.constant dense<0.000000e+00> : vector<16x32xf32>
    %223 = tpu.matmul %221, %222, %cst_74 {dimension_numbers = #tpu.dot_dimension_numbers<[1], [0], [0], [1], [0, 0, 1, 1], [], []>} : vector<16x8xbf16>, vector<8x32xbf16>, vector<16x32xf32> -> vector<16x32xf32>
    %224 = arith.addf %197, %223 : vector<16x32xf32>
    %225 = vector.extract_strided_slice %161 {offsets = [0, 16], sizes = [16, 8], strides = [1, 1]} : vector<16x32xf32> to vector<16x8xf32>
    %226 = vector.shape_cast %225 : vector<16x8xf32> to vector<2x8x8xf32>
    %227 = arith.truncf %226 : vector<2x8x8xf32> to vector<2x8x8xbf16>
    %228 = vector.extract_strided_slice %168 {offsets = [0, 16], sizes = [24, 8], strides = [1, 1]} : vector<24x32xf32> to vector<24x8xf32>
    %229 = vector.shape_cast %228 : vector<24x8xf32> to vector<2x12x8xf32>
    %230 = arith.truncf %229 : vector<2x12x8xf32> to vector<2x12x8xbf16>
    %231 = vector.extract_strided_slice %169 {offsets = [0, 16], sizes = [24, 8], strides = [1, 1]} : vector<24x32xf32> to vector<24x8xf32>
    %232 = vector.shape_cast %231 : vector<24x8xf32> to vector<2x12x8xf32>
    %233 = arith.truncf %232 : vector<2x12x8xf32> to vector<2x12x8xbf16>
    "tpu.trace_start"() <{level = 10 : i32, message = "bld,bsd->bls"}> : () -> ()
    %cst_75 = arith.constant dense<0.000000e+00> : vector<2x8x12xf32>
    %234 = tpu.matmul %227, %230, %cst_75 {dimension_numbers = #tpu.dot_dimension_numbers<[2], [2], [1], [1], [0, 0, 0, 1, 1, 1], [0], [0]>} : vector<2x8x8xbf16>, vector<2x12x8xbf16>, vector<2x8x12xf32> -> vector<2x8x12xf32>
    "tpu.trace_stop"() : () -> ()
    %cst_76 = arith.constant dense<0xFF800000> : vector<2x8xf32>
    %235 = vector.multi_reduction <maximumf>, %234, %cst_76 [2] : vector<2x8x12xf32> to vector<2x8xf32>
    %236 = vector.shape_cast %235 : vector<2x8xf32> to vector<2x8x1xf32>
    %237 = vector.broadcast %236 : vector<2x8x1xf32> to vector<2x8x12xf32>
    %238 = arith.subf %234, %237 : vector<2x8x12xf32>
    %239 = math.exp %238 : vector<2x8x12xf32>
    %cst_77 = arith.constant dense<0.000000e+00> : vector<2x8xf32>
    %240 = vector.multi_reduction <add>, %239, %cst_77 [2] : vector<2x8x12xf32> to vector<2x8xf32>
    %241 = vector.shape_cast %240 : vector<2x8xf32> to vector<2x8x1xf32>
    %242 = tpu.reciprocal %241 {approx = true} : vector<2x8x1xf32> -> vector<2x8x1xf32>
    %243 = vector.broadcast %242 : vector<2x8x1xf32> to vector<2x8x12xf32>
    %244 = arith.mulf %239, %243 : vector<2x8x12xf32>
    %245 = arith.truncf %244 : vector<2x8x12xf32> to vector<2x8x12xbf16>
    "tpu.trace_start"() <{level = 10 : i32, message = "bls,bsd->bld"}> : () -> ()
    %cst_78 = arith.constant dense<0.000000e+00> : vector<2x8x8xf32>
    %246 = tpu.matmul %245, %233, %cst_78 {dimension_numbers = #tpu.dot_dimension_numbers<[2], [1], [1], [2], [0, 0, 0, 1, 1, 2], [0], [0]>} : vector<2x8x12xbf16>, vector<2x12x8xbf16>, vector<2x8x8xf32> -> vector<2x8x8xf32>
    "tpu.trace_stop"() : () -> ()
    %247 = vector.shape_cast %246 : vector<2x8x8xf32> to vector<16x8xf32>
    %248 = arith.truncf %247 : vector<16x8xf32> to vector<16x8xbf16>
    %c16_79 = arith.constant 16 : index
    %c0_80 = arith.constant 0 : index
    %249 = vector.load %arg13[%c16_79, %c0_80] : memref<32x32xbf16, #tpu.memory_space<vmem>>, vector<8x32xbf16>
    %cst_81 = arith.constant dense<0.000000e+00> : vector<16x32xf32>
    %250 = tpu.matmul %248, %249, %cst_81 {dimension_numbers = #tpu.dot_dimension_numbers<[1], [0], [0], [1], [0, 0, 1, 1], [], []>} : vector<16x8xbf16>, vector<8x32xbf16>, vector<16x32xf32> -> vector<16x32xf32>
    %251 = arith.addf %224, %250 : vector<16x32xf32>
    %252 = vector.extract_strided_slice %161 {offsets = [0, 24], sizes = [16, 8], strides = [1, 1]} : vector<16x32xf32> to vector<16x8xf32>
    %253 = vector.shape_cast %252 : vector<16x8xf32> to vector<2x8x8xf32>
    %254 = arith.truncf %253 : vector<2x8x8xf32> to vector<2x8x8xbf16>
    %255 = vector.extract_strided_slice %168 {offsets = [0, 24], sizes = [24, 8], strides = [1, 1]} : vector<24x32xf32> to vector<24x8xf32>
    %256 = vector.shape_cast %255 : vector<24x8xf32> to vector<2x12x8xf32>
    %257 = arith.truncf %256 : vector<2x12x8xf32> to vector<2x12x8xbf16>
    %258 = vector.extract_strided_slice %169 {offsets = [0, 24], sizes = [24, 8], strides = [1, 1]} : vector<24x32xf32> to vector<24x8xf32>
    %259 = vector.shape_cast %258 : vector<24x8xf32> to vector<2x12x8xf32>
    %260 = arith.truncf %259 : vector<2x12x8xf32> to vector<2x12x8xbf16>
    "tpu.trace_start"() <{level = 10 : i32, message = "bld,bsd->bls"}> : () -> ()
    %cst_82 = arith.constant dense<0.000000e+00> : vector<2x8x12xf32>
    %261 = tpu.matmul %254, %257, %cst_82 {dimension_numbers = #tpu.dot_dimension_numbers<[2], [2], [1], [1], [0, 0, 0, 1, 1, 1], [0], [0]>} : vector<2x8x8xbf16>, vector<2x12x8xbf16>, vector<2x8x12xf32> -> vector<2x8x12xf32>
    "tpu.trace_stop"() : () -> ()
    %cst_83 = arith.constant dense<0xFF800000> : vector<2x8xf32>
    %262 = vector.multi_reduction <maximumf>, %261, %cst_83 [2] : vector<2x8x12xf32> to vector<2x8xf32>
    %263 = vector.shape_cast %262 : vector<2x8xf32> to vector<2x8x1xf32>
    %264 = vector.broadcast %263 : vector<2x8x1xf32> to vector<2x8x12xf32>
    %265 = arith.subf %261, %264 : vector<2x8x12xf32>
    %266 = math.exp %265 : vector<2x8x12xf32>
    %cst_84 = arith.constant dense<0.000000e+00> : vector<2x8xf32>
    %267 = vector.multi_reduction <add>, %266, %cst_84 [2] : vector<2x8x12xf32> to vector<2x8xf32>
    %268 = vector.shape_cast %267 : vector<2x8xf32> to vector<2x8x1xf32>
    %269 = tpu.reciprocal %268 {approx = true} : vector<2x8x1xf32> -> vector<2x8x1xf32>
    %270 = vector.broadcast %269 : vector<2x8x1xf32> to vector<2x8x12xf32>
    %271 = arith.mulf %266, %270 : vector<2x8x12xf32>
    %272 = arith.truncf %271 : vector<2x8x12xf32> to vector<2x8x12xbf16>
    "tpu.trace_start"() <{level = 10 : i32, message = "bls,bsd->bld"}> : () -> ()
    %cst_85 = arith.constant dense<0.000000e+00> : vector<2x8x8xf32>
    %273 = tpu.matmul %272, %260, %cst_85 {dimension_numbers = #tpu.dot_dimension_numbers<[2], [1], [1], [2], [0, 0, 0, 1, 1, 2], [0], [0]>} : vector<2x8x12xbf16>, vector<2x12x8xbf16>, vector<2x8x8xf32> -> vector<2x8x8xf32>
    "tpu.trace_stop"() : () -> ()
    %274 = vector.shape_cast %273 : vector<2x8x8xf32> to vector<16x8xf32>
    %275 = arith.truncf %274 : vector<16x8xf32> to vector<16x8xbf16>
    %c24_86 = arith.constant 24 : index
    %c0_87 = arith.constant 0 : index
    %276 = vector.load %arg13[%c24_86, %c0_87] : memref<32x32xbf16, #tpu.memory_space<vmem>>, vector<8x32xbf16>
    %cst_88 = arith.constant dense<0.000000e+00> : vector<16x32xf32>
    %277 = tpu.matmul %275, %276, %cst_88 {dimension_numbers = #tpu.dot_dimension_numbers<[1], [0], [0], [1], [0, 0, 1, 1], [], []>} : vector<16x8xbf16>, vector<8x32xbf16>, vector<16x32xf32> -> vector<16x32xf32>
    %278 = arith.addf %251, %277 : vector<16x32xf32>
    %279 = vector.shape_cast %190 : vector<2x8x12xf32> to vector<2x1x8x12xf32>
    %280 = vector.shape_cast %217 : vector<2x8x12xf32> to vector<2x1x8x12xf32>
    %281 = vector.shape_cast %244 : vector<2x8x12xf32> to vector<2x1x8x12xf32>
    %282 = vector.shape_cast %271 : vector<2x8x12xf32> to vector<2x1x8x12xf32>
    %283 = tpu.concatenate %279, %280, %281, %282 in 1 : vector<2x1x8x12xf32>, vector<2x1x8x12xf32>, vector<2x1x8x12xf32>, vector<2x1x8x12xf32> -> vector<2x4x8x12xf32>
    %c0_89 = arith.constant 0 : index
    %c0_90 = arith.constant 0 : index
    %c0_91 = arith.constant 0 : index
    %c0_92 = arith.constant 0 : index
    %284 = vector.load %arg25[%c0_89, %c0_90, %c0_91, %c0_92] : memref<2x4x8x12xf32, #tpu.memory_space<vmem>>, vector<2x4x8x12xf32>
    tpu.vector_store %arg25[%c0_89, %c0_90, %c0_91, %c0_92], %283 {strides = array<i32>} : memref<2x4x8x12xf32, #tpu.memory_space<vmem>>, vector<2x4x8x12xf32>,
    %c0_93 = arith.constant 0 : index
    %c0_94 = arith.constant 0 : index
    %285 = vector.load %arg14[%c0_93, %c0_94] : memref<1x32xf32, #tpu.memory_space<vmem>>, vector<1x32xf32>
    %286 = vector.broadcast %285 : vector<1x32xf32> to vector<16x32xf32>
    %287 = arith.addf %278, %286 : vector<16x32xf32>
    %288 = arith.addf %155, %287 : vector<16x32xf32>
    %cst_95 = arith.constant dense<0.000000e+00> : vector<16xf32>
    %289 = vector.multi_reduction <add>, %288, %cst_95 [1] : vector<16x32xf32> to vector<16xf32>
    %290 = vector.shape_cast %289 : vector<16xf32> to vector<16x1xf32>
    %cst_96 = arith.constant 3.200000e+01 : f32
    %291 = vector.broadcast %cst_96 : f32 to vector<16x1xf32>
    %292 = arith.divf %290, %291 : vector<16x1xf32>
    %293 = vector.broadcast %292 : vector<16x1xf32> to vector<16x32xf32>
    %294 = arith.subf %288, %293 : vector<16x32xf32>
    %295 = arith.mulf %294, %294 : vector<16x32xf32>
    %cst_97 = arith.constant dense<0.000000e+00> : vector<16xf32>
    %296 = vector.multi_reduction <add>, %295, %cst_97 [1] : vector<16x32xf32> to vector<16xf32>
    %297 = vector.shape_cast %296 : vector<16xf32> to vector<16x1xf32>
    %cst_98 = arith.constant 3.200000e+01 : f32
    %298 = vector.broadcast %cst_98 : f32 to vector<16x1xf32>
    %299 = arith.divf %297, %298 : vector<16x1xf32>
    %300 = vector.broadcast %292 : vector<16x1xf32> to vector<16x32xf32>
    %301 = arith.subf %288, %300 : vector<16x32xf32>
    %cst_99 = arith.constant 9.99999974E-6 : f32
    %302 = vector.broadcast %cst_99 : f32 to vector<16x1xf32>
    %303 = arith.addf %299, %302 : vector<16x1xf32>
    %304 = math.rsqrt %303 : vector<16x1xf32>
    %305 = vector.broadcast %304 : vector<16x1xf32> to vector<16x32xf32>
    %306 = arith.mulf %301, %305 : vector<16x32xf32>
    %c0_100 = arith.constant 0 : index
    %c0_101 = arith.constant 0 : index
    %307 = vector.load %arg15[%c0_100, %c0_101] : memref<1x32xf32, #tpu.memory_space<vmem>>, vector<1x32xf32>
    %308 = vector.broadcast %307 : vector<1x32xf32> to vector<16x32xf32>
    %309 = arith.mulf %306, %308 : vector<16x32xf32>
    %c0_102 = arith.constant 0 : index
    %c0_103 = arith.constant 0 : index
    %310 = vector.load %arg16[%c0_102, %c0_103] : memref<1x32xf32, #tpu.memory_space<vmem>>, vector<1x32xf32>
    %311 = vector.broadcast %310 : vector<1x32xf32> to vector<16x32xf32>
    %312 = arith.addf %309, %311 : vector<16x32xf32>
    %313 = arith.truncf %312 : vector<16x32xf32> to vector<16x32xbf16>
    %c0_104 = arith.constant 0 : index
    %c0_105 = arith.constant 0 : index
    %314 = vector.load %arg17[%c0_104, %c0_105] : memref<32x64xbf16, #tpu.memory_space<vmem>>, vector<32x64xbf16>
    %cst_106 = arith.constant dense<0.000000e+00> : vector<16x64xf32>
    %315 = tpu.matmul %313, %314, %cst_106 {dimension_numbers = #tpu.dot_dimension_numbers<[1], [0], [0], [1], [0, 0, 1, 1], [], []>} : vector<16x32xbf16>, vector<32x64xbf16>, vector<16x64xf32> -> vector<16x64xf32>
    %c0_107 = arith.constant 0 : index
    %c0_108 = arith.constant 0 : index
    %316 = vector.load %arg18[%c0_107, %c0_108] : memref<1x64xf32, #tpu.memory_space<vmem>>, vector<1x64xf32>
    %317 = vector.broadcast %316 : vector<1x64xf32> to vector<16x64xf32>
    %318 = arith.addf %315, %317 : vector<16x64xf32>
    %cst_109 = arith.constant 0.000000e+00 : f32
    %319 = vector.broadcast %cst_109 : f32 to vector<16x64xf32>
    %320 = arith.maximumf %318, %319 : vector<16x64xf32>
    %321 = arith.truncf %320 : vector<16x64xf32> to vector<16x64xbf16>
    %c0_110 = arith.constant 0 : index
    %c0_111 = arith.constant 0 : index
    %322 = vector.load %arg19[%c0_110, %c0_111] : memref<64x32xbf16, #tpu.memory_space<vmem>>, vector<64x32xbf16>
    %cst_112 = arith.constant dense<0.000000e+00> : vector<16x32xf32>
    %323 = tpu.matmul %321, %322, %cst_112 {dimension_numbers = #tpu.dot_dimension_numbers<[1], [0], [0], [1], [0, 0, 1, 1], [], []>} : vector<16x64xbf16>, vector<64x32xbf16>, vector<16x32xf32> -> vector<16x32xf32>
    %c0_113 = arith.constant 0 : index
    %c0_114 = arith.constant 0 : index
    %324 = vector.load %arg20[%c0_113, %c0_114] : memref<1x32xf32, #tpu.memory_space<vmem>>, vector<1x32xf32>
    %325 = vector.broadcast %324 : vector<1x32xf32> to vector<16x32xf32>
    %326 = arith.addf %323, %325 : vector<16x32xf32>
    %327 = arith.addf %312, %326 : vector<16x32xf32>
    %cst_115 = arith.constant dense<0.000000e+00> : vector<16xf32>
    %328 = vector.multi_reduction <add>, %327, %cst_115 [1] : vector<16x32xf32> to vector<16xf32>
    %329 = vector.shape_cast %328 : vector<16xf32> to vector<16x1xf32>
    %cst_116 = arith.constant 3.200000e+01 : f32
    %330 = vector.broadcast %cst_116 : f32 to vector<16x1xf32>
    %331 = arith.divf %329, %330 : vector<16x1xf32>
    %332 = vector.broadcast %331 : vector<16x1xf32> to vector<16x32xf32>
    %333 = arith.subf %327, %332 : vector<16x32xf32>
    %334 = arith.mulf %333, %333 : vector<16x32xf32>
    %cst_117 = arith.constant dense<0.000000e+00> : vector<16xf32>
    %335 = vector.multi_reduction <add>, %334, %cst_117 [1] : vector<16x32xf32> to vector<16xf32>
    %336 = vector.shape_cast %335 : vector<16xf32> to vector<16x1xf32>
    %cst_118 = arith.constant 3.200000e+01 : f32
    %337 = vector.broadcast %cst_118 : f32 to vector<16x1xf32>
    %338 = arith.divf %336, %337 : vector<16x1xf32>
    %339 = vector.broadcast %331 : vector<16x1xf32> to vector<16x32xf32>
    %340 = arith.subf %327, %339 : vector<16x32xf32>
    %cst_119 = arith.constant 9.99999974E-6 : f32
    %341 = vector.broadcast %cst_119 : f32 to vector<16x1xf32>
    %342 = arith.addf %338, %341 : vector<16x1xf32>
    %343 = math.rsqrt %342 : vector<16x1xf32>
    %344 = vector.broadcast %343 : vector<16x1xf32> to vector<16x32xf32>
    %345 = arith.mulf %340, %344 : vector<16x32xf32>
    %c0_120 = arith.constant 0 : index
    %c0_121 = arith.constant 0 : index
    %346 = vector.load %arg21[%c0_120, %c0_121] : memref<1x32xf32, #tpu.memory_space<vmem>>, vector<1x32xf32>
    %347 = vector.broadcast %346 : vector<1x32xf32> to vector<16x32xf32>
    %348 = arith.mulf %345, %347 : vector<16x32xf32>
    %c0_122 = arith.constant 0 : index
    %c0_123 = arith.constant 0 : index
    %349 = vector.load %arg22[%c0_122, %c0_123] : memref<1x32xf32, #tpu.memory_space<vmem>>, vector<1x32xf32>
    %350 = vector.broadcast %349 : vector<1x32xf32> to vector<16x32xf32>
    %351 = arith.addf %348, %350 : vector<16x32xf32>
    %352 = vector.shape_cast %351 : vector<16x32xf32> to vector<2x8x32xf32>
    %c0_124 = arith.constant 0 : index
    %c0_125 = arith.constant 0 : index
    %c0_126 = arith.constant 0 : index
    %353 = vector.load %arg23[%c0_124, %c0_125, %c0_126] : memref<2x8x32xf32, #tpu.memory_space<vmem>>, vector<2x8x32xf32>
    tpu.vector_store %arg23[%c0_124, %c0_125, %c0_126], %352 {strides = array<i32>} : memref<2x8x32xf32, #tpu.memory_space<vmem>>, vector<2x8x32xf32>,
    return
  }
  func.func @transform_0(%arg0: i32) -> (i32, i32, i32) {
    %c0_i32 = arith.constant 0 : i32
    %c0_i32_0 = arith.constant 0 : i32
    %c0_i32_1 = arith.constant 0 : i32
    return %arg0, %c0_i32, %c0_i32_0 : i32, i32, i32
  }
  func.func @transform_1(%arg0: i32) -> (i32, i32, i32) {
    %c0_i32 = arith.constant 0 : i32
    %c0_i32_0 = arith.constant 0 : i32
    %c0_i32_1 = arith.constant 0 : i32
    return %arg0, %c0_i32, %c0_i32_0 : i32, i32, i32
  }
  func.func @transform_2(%arg0: i32) -> (i32, i32) {
    %c0_i32 = arith.constant 0 : i32
    %c0_i32_0 = arith.constant 0 : i32
    %c0_i32_1 = arith.constant 0 : i32
    return %c0_i32, %c0_i32_0 : i32, i32
  }
  func.func @transform_3(%arg0: i32) -> (i32, i32) {
    %c0_i32 = arith.constant 0 : i32
    %c0_i32_0 = arith.constant 0 : i32
    %c0_i32_1 = arith.constant 0 : i32
    return %c0_i32, %c0_i32_0 : i32, i32
  }
  func.func @transform_4(%arg0: i32) -> (i32, i32) {
    %c0_i32 = arith.constant 0 : i32
    %c0_i32_0 = arith.constant 0 : i32
    %c0_i32_1 = arith.constant 0 : i32
    return %c0_i32, %c0_i32_0 : i32, i32
  }
  func.func @transform_5(%arg0: i32) -> (i32, i32) {
    %c0_i32 = arith.constant 0 : i32
    %c0_i32_0 = arith.constant 0 : i32
    %c0_i32_1 = arith.constant 0 : i32
    return %c0_i32, %c0_i32_0 : i32, i32
  }
  func.func @transform_6(%arg0: i32) -> (i32, i32) {
    %c0_i32 = arith.constant 0 : i32
    %c0_i32_0 = arith.constant 0 : i32
    %c0_i32_1 = arith.constant 0 : i32
    return %c0_i32, %c0_i32_0 : i32, i32
  }
  func.func @transform_7(%arg0: i32) -> (i32, i32) {
    %c0_i32 = arith.constant 0 : i32
    %c0_i32_0 = arith.constant 0 : i32
    %c0_i32_1 = arith.constant 0 : i32
    return %c0_i32, %c0_i32_0 : i32, i32
  }
  func.func @transform_8(%arg0: i32) -> (i32, i32) {
    %c0_i32 = arith.constant 0 : i32
    %c0_i32_0 = arith.constant 0 : i32
    %c0_i32_1 = arith.constant 0 : i32
    return %c0_i32, %c0_i32_0 : i32, i32
  }
  func.func @transform_9(%arg0: i32) -> (i32, i32) {
    %c0_i32 = arith.constant 0 : i32
    %c0_i32_0 = arith.constant 0 : i32
    %c0_i32_1 = arith.constant 0 : i32
    return %c0_i32, %c0_i32_0 : i32, i32
  }
  func.func @transform_10(%arg0: i32) -> (i32, i32) {
    %c0_i32 = arith.constant 0 : i32
    %c0_i32_0 = arith.constant 0 : i32
    %c0_i32_1 = arith.constant 0 : i32
    return %c0_i32, %c0_i32_0 : i32, i32
  }
  func.func @transform_11(%arg0: i32) -> (i32, i32) {
    %c0_i32 = arith.constant 0 : i32
    %c0_i32_0 = arith.constant 0 : i32
    %c0_i32_1 = arith.constant 0 : i32
    return %c0_i32, %c0_i32_0 : i32, i32
  }
  func.func @transform_12(%arg0: i32) -> (i32, i32) {
    %c0_i32 = arith.constant 0 : i32
    %c0_i32_0 = arith.constant 0 : i32
    %c0_i32_1 = arith.constant 0 : i32
    return %c0_i32, %c0_i32_0 : i32, i32
  }
  func.func @transform_13(%arg0: i32) -> (i32, i32) {
    %c0_i32 = arith.constant 0 : i32
    %c0_i32_0 = arith.constant 0 : i32
    %c0_i32_1 = arith.constant 0 : i32
    return %c0_i32, %c0_i32_0 : i32, i32
  }
  func.func @transform_14(%arg0: i32) -> (i32, i32) {
    %c0_i32 = arith.constant 0 : i32
    %c0_i32_0 = arith.constant 0 : i32
    %c0_i32_1 = arith.constant 0 : i32
    return %c0_i32, %c0_i32_0 : i32, i32
  }
  func.func @transform_15(%arg0: i32) -> (i32, i32) {
    %c0_i32 = arith.constant 0 : i32
    %c0_i32_0 = arith.constant 0 : i32
    %c0_i32_1 = arith.constant 0 : i32
    return %c0_i32, %c0_i32_0 : i32, i32
  }
  func.func @transform_16(%arg0: i32) -> (i32, i32) {
    %c0_i32 = arith.constant 0 : i32
    %c0_i32_0 = arith.constant 0 : i32
    %c0_i32_1 = arith.constant 0 : i32
    return %c0_i32, %c0_i32_0 : i32, i32
  }
  func.func @transform_17(%arg0: i32) -> (i32, i32) {
    %c0_i32 = arith.constant 0 : i32
    %c0_i32_0 = arith.constant 0 : i32
    %c0_i32_1 = arith.constant 0 : i32
    return %c0_i32, %c0_i32_0 : i32, i32
  }
  func.func @transform_18(%arg0: i32) -> (i32, i32) {
    %c0_i32 = arith.constant 0 : i32
    %c0_i32_0 = arith.constant 0 : i32
    %c0_i32_1 = arith.constant 0 : i32
    return %c0_i32, %c0_i32_0 : i32, i32
  }
  func.func @transform_19(%arg0: i32) -> (i32, i32) {
    %c0_i32 = arith.constant 0 : i32
    %c0_i32_0 = arith.constant 0 : i32
    %c0_i32_1 = arith.constant 0 : i32
    return %c0_i32, %c0_i32_0 : i32, i32
  }
  func.func @transform_20(%arg0: i32) -> (i32, i32) {
    %c0_i32 = arith.constant 0 : i32
    %c0_i32_0 = arith.constant 0 : i32
    %c0_i32_1 = arith.constant 0 : i32
    return %c0_i32, %c0_i32_0 : i32, i32
  }
  func.func @transform_21(%arg0: i32) -> (i32, i32) {
    %c0_i32 = arith.constant 0 : i32
    %c0_i32_0 = arith.constant 0 : i32
    %c0_i32_1 = arith.constant 0 : i32
    return %c0_i32, %c0_i32_0 : i32, i32
  }
  func.func @transform_22(%arg0: i32) -> (i32, i32, i32) {
    %c0_i32 = arith.constant 0 : i32
    %c0_i32_0 = arith.constant 0 : i32
    %c0_i32_1 = arith.constant 0 : i32
    return %arg0, %c0_i32, %c0_i32_0 : i32, i32, i32
  }
  func.func @transform_23(%arg0: i32) -> (i32, i32, i32, i32) {
    %c0_i32 = arith.constant 0 : i32
    %c0_i32_0 = arith.constant 0 : i32
    %c0_i32_1 = arith.constant 0 : i32
    %c0_i32_2 = arith.constant 0 : i32
    return %arg0, %c0_i32, %c0_i32_0, %c0_i32_1 : i32, i32, i32, i32
  }
  func.func @transform_24(%arg0: i32) -> (i32, i32, i32, i32) {
    %c0_i32 = arith.constant 0 : i32
    %c0_i32_0 = arith.constant 0 : i32
    %c0_i32_1 = arith.constant 0 : i32
    %c0_i32_2 = arith.constant 0 : i32
    return %arg0, %c0_i32, %c0_i32_0, %c0_i32_1 : i32, i32, i32, i32
  }
}

</mosaic_0001>

<llo_original>
// kernel: tpu_custom_call.1
$region0: #{tpu_custom_call.1}
  #allocation0 [shape = 'u32[]', space=smem, size = 0x4, offset = 0x4, fixed_abs, tag = 'smem constant byte address 0x4 - core index']
  #allocation1 [shape = 'u32[144,128]{1,0:T(1,128)}', space=vmem, size = 0x12000, scoped, tag = 'internal scratch']
  %s0 = inlined_call_operand.vmem [shape: f32[2,8,32], index: 0, kind: input, shape index: {}]
  %s1 = inlined_call_operand.vmem [shape: f32[2,12,32], index: 1, kind: input, shape index: {}]
  %s2 = inlined_call_operand.vmem [shape: bf16[32,96], index: 2, kind: input, shape index: {}]
  %s3 = inlined_call_operand.vmem [shape: f32[1,96], index: 3, kind: input, shape index: {}]
  %s4 = inlined_call_operand.vmem [shape: bf16[32,32], index: 4, kind: input, shape index: {}]
  %s5 = inlined_call_operand.vmem [shape: f32[1,32], index: 5, kind: input, shape index: {}]
  %s6 = inlined_call_operand.hbm [shape: f32[1,32], index: 6, kind: input, shape index: {}]
  %s7 = inlined_call_operand.hbm [shape: f32[1,32], index: 7, kind: input, shape index: {}]
  %s8 = inlined_call_operand.vmem [shape: bf16[32,32], index: 8, kind: input, shape index: {}]
  %s9 = inlined_call_operand.vmem [shape: f32[1,32], index: 9, kind: input, shape index: {}]
  %s10 = inlined_call_operand.vmem [shape: bf16[32,64], index: 10, kind: input, shape index: {}]
  %s11 = inlined_call_operand.vmem [shape: f32[1,64], index: 11, kind: input, shape index: {}]
  %s12 = inlined_call_operand.vmem [shape: bf16[32,32], index: 12, kind: input, shape index: {}]
  %s13 = inlined_call_operand.vmem [shape: f32[1,32], index: 13, kind: input, shape index: {}]
  %s14 = inlined_call_operand.vmem [shape: f32[1,32], index: 14, kind: input, shape index: {}]
  %s15 = inlined_call_operand.vmem [shape: f32[1,32], index: 15, kind: input, shape index: {}]
  %s16 = inlined_call_operand.vmem [shape: bf16[32,64], index: 16, kind: input, shape index: {}]
  %s17 = inlined_call_operand.vmem [shape: f32[1,64], index: 17, kind: input, shape index: {}]
  %s18 = inlined_call_operand.vmem [shape: bf16[64,32], index: 18, kind: input, shape index: {}]
  %s19 = inlined_call_operand.vmem [shape: f32[1,32], index: 19, kind: input, shape index: {}]
  %s20 = inlined_call_operand.vmem [shape: f32[1,32], index: 20, kind: input, shape index: {}]
  %s21 = inlined_call_operand.vmem [shape: f32[1,32], index: 21, kind: input, shape index: {}]
  %s22 = inlined_call_operand.hbm [shape: f32[2,8,32], index: 22, kind: output, shape index: {0}]
  %s23 = inlined_call_operand.hbm [shape: f32[2,4,8,8], index: 23, kind: output, shape index: {1}]
  %s24 = inlined_call_operand.hbm [shape: f32[2,4,8,12], index: 24, kind: output, shape index: {2}]
  %25 = xla_tuple %s22, %s23, %s24
  %s26 = sld [smem:[#allocation0]]
  $region122: #{tpu_custom_call.1} parent=0
    _
  %s28 = ssub.s32 1, %s26
  %s29 = scalar_select 0, %s28, %s26
  $region1: #{tpu_custom_call.1} parent=0
    #allocation2 [shape = 'u8[512]{0}', space=vmem, size = 0x400, scoped, tag = 'input window, operand 6, single buffered']
    #allocation3 [shape = 's32[1]{0}', space=sflag, size = 0x4, scoped, tag = 'scoped memory for tpu_custom_call.1']
    #allocation4 [shape = 's32[1]{0}', space=sflag, size = 0x4, scoped, tag = 'scoped memory for tpu_custom_call.1']
    #allocation5 [shape = 'u8[512]{0}', space=vmem, size = 0x400, scoped, tag = 'input window, operand 7, single buffered']
    #allocation6 [shape = 's32[1]{0}', space=sflag, size = 0x4, scoped, tag = 'scoped memory for tpu_custom_call.1']
    #allocation7 [shape = 'u8[8192]{0}', space=vmem, size = 0x2000, scoped, tag = 'output window, operand 0, single buffered']
    #allocation8 [shape = 'u8[32768]{0}', space=vmem, size = 0x8000, scoped, tag = 'output window, operand 1, single buffered']
    #allocation9 [shape = 's32[1]{0}', space=sflag, size = 0x4, scoped, tag = 'scoped memory for tpu_custom_call.1']
    #allocation10 [shape = 'u8[32768]{0}', space=vmem, size = 0x8000, scoped, tag = 'output window, operand 2, single buffered']
    %30 = vsyncpa [#allocation3], 0
    %31 = vsyncpa [#allocation6], 0
    %32 = vsyncpa [#allocation4], 0
    %33 = vsyncpa [#allocation9], 0
    // Predicated region
    $region2: #{tpu_custom_call.1} parent=1 // pred_check
      _
    $region3: #{tpu_custom_call.1} parent=1 // pred_check_branch
      %35 = sbr.rel (0) target = $region5
    $region4: #{tpu_custom_call.1} parent=1 // pred_region
      _
    $region5: #{tpu_custom_call.1} parent=1 // pred_fallthru
      _
    // Predicated region
    $region6: #{tpu_custom_call.1} parent=1 // pred_check
      _
    $region7: #{tpu_custom_call.1} parent=1 // pred_check_branch
      %37 = sbr.rel (0) target = $region9
    $region8: #{tpu_custom_call.1} parent=1 // pred_region
      _
    $region9: #{tpu_custom_call.1} parent=1 // pred_fallthru
      _
    // Predicated region
    $region10: #{tpu_custom_call.1} parent=1 // pred_check
      _
    $region11: #{tpu_custom_call.1} parent=1 // pred_check_branch
      %39 = sbr.rel (0) target = $region13
    $region12: #{tpu_custom_call.1} parent=1 // pred_region
      _
    $region13: #{tpu_custom_call.1} parent=1 // pred_fallthru
      _
    // Predicated region
    $region14: #{tpu_custom_call.1} parent=1 // pred_check
      _
    $region15: #{tpu_custom_call.1} parent=1 // pred_check_branch
      %41 = sbr.rel (0) target = $region17
    $region16: #{tpu_custom_call.1} parent=1 // pred_region
      _
    $region17: #{tpu_custom_call.1} parent=1 // pred_fallthru
      _
    // Predicated region
    $region18: #{tpu_custom_call.1} parent=1 // pred_check
      _
    $region19: #{tpu_custom_call.1} parent=1 // pred_check_branch
      %43 = sbr.rel (0) target = $region21
    $region20: #{tpu_custom_call.1} parent=1 // pred_region
      _
    $region21: #{tpu_custom_call.1} parent=1 // pred_fallthru
      _
    // Predicated region
    $region22: #{tpu_custom_call.1} parent=1 // pred_check
      _
    $region23: #{tpu_custom_call.1} parent=1 // pred_check_branch
      %45 = sbr.rel (0) target = $region25
    $region24: #{tpu_custom_call.1} parent=1 // pred_region
      _
    $region25: #{tpu_custom_call.1} parent=1 // pred_fallthru
      _
    // Predicated region
    $region26: #{tpu_custom_call.1} parent=1 // pred_check
      _
    $region27: #{tpu_custom_call.1} parent=1 // pred_check_branch
      %47 = sbr.rel (0) target = $region29
    $region28: #{tpu_custom_call.1} parent=1 // pred_region
      %s49 = ssub.s32 16, 16
      %50 = vsyncadd [#allocation3], %s49
      %s52 = sshll.u32 [#allocation2], 4
      %s53 = int_to_ptr.vmem [resolvable:$true] %s52
      %55 = dma.hbm_to_vmem [thread:$0]  %s6, 16, %s53, [#allocation3]
    $region29: #{tpu_custom_call.1} parent=1 // pred_fallthru
      _
    // Predicated region
    $region30: #{tpu_custom_call.1} parent=1 // pred_check
      _
    $region31: #{tpu_custom_call.1} parent=1 // pred_check_branch
      %57 = sbr.rel (0) target = $region33
    $region32: #{tpu_custom_call.1} parent=1 // pred_region
      %s59 = ssub.s32 16, 16
      %60 = vsyncadd [#allocation6], %s59
      %s62 = sshll.u32 [#allocation5], 4
      %s63 = int_to_ptr.vmem [resolvable:$true] %s62
      %65 = dma.hbm_to_vmem [thread:$0]  %s7, 16, %s63, [#allocation6]
    $region33: #{tpu_custom_call.1} parent=1 // pred_fallthru
      _
    // Predicated region
    $region34: #{tpu_custom_call.1} parent=1 // pred_check
      _
    $region35: #{tpu_custom_call.1} parent=1 // pred_check_branch
      %67 = sbr.rel (0) target = $region37
    $region36: #{tpu_custom_call.1} parent=1 // pred_region
      _
    $region37: #{tpu_custom_call.1} parent=1 // pred_fallthru
      _
    // Predicated region
    $region38: #{tpu_custom_call.1} parent=1 // pred_check
      _
    $region39: #{tpu_custom_call.1} parent=1 // pred_check_branch
      %69 = sbr.rel (0) target = $region41
    $region40: #{tpu_custom_call.1} parent=1 // pred_region
      _
    $region41: #{tpu_custom_call.1} parent=1 // pred_fallthru
      _
    // Predicated region
    $region42: #{tpu_custom_call.1} parent=1 // pred_check
      _
    $region43: #{tpu_custom_call.1} parent=1 // pred_check_branch
      %71 = sbr.rel (0) target = $region45
    $region44: #{tpu_custom_call.1} parent=1 // pred_region
      _
    $region45: #{tpu_custom_call.1} parent=1 // pred_fallthru
      _
    // Predicated region
    $region46: #{tpu_custom_call.1} parent=1 // pred_check
      _
    $region47: #{tpu_custom_call.1} parent=1 // pred_check_branch
      %73 = sbr.rel (0) target = $region49
    $region48: #{tpu_custom_call.1} parent=1 // pred_region
      _
    $region49: #{tpu_custom_call.1} parent=1 // pred_fallthru
      _
    // Predicated region
    $region50: #{tpu_custom_call.1} parent=1 // pred_check
      _
    $region51: #{tpu_custom_call.1} parent=1 // pred_check_branch
      %75 = sbr.rel (0) target = $region53
    $region52: #{tpu_custom_call.1} parent=1 // pred_region
      _
    $region53: #{tpu_custom_call.1} parent=1 // pred_fallthru
      _
    // Predicated region
    $region54: #{tpu_custom_call.1} parent=1 // pred_check
      _
    $region55: #{tpu_custom_call.1} parent=1 // pred_check_branch
      %77 = sbr.rel (0) target = $region57
    $region56: #{tpu_custom_call.1} parent=1 // pred_region
      _
    $region57: #{tpu_custom_call.1} parent=1 // pred_fallthru
      _
    // Predicated region
    $region58: #{tpu_custom_call.1} parent=1 // pred_check
      _
    $region59: #{tpu_custom_call.1} parent=1 // pred_check_branch
      %79 = sbr.rel (0) target = $region61
    $region60: #{tpu_custom_call.1} parent=1 // pred_region
      _
    $region61: #{tpu_custom_call.1} parent=1 // pred_fallthru
      _
    // Predicated region
    $region62: #{tpu_custom_call.1} parent=1 // pred_check
      _
    $region63: #{tpu_custom_call.1} parent=1 // pred_check_branch
      %81 = sbr.rel (0) target = $region65
    $region64: #{tpu_custom_call.1} parent=1 // pred_region
      _
    $region65: #{tpu_custom_call.1} parent=1 // pred_fallthru
      _
    // Predicated region
    $region66: #{tpu_custom_call.1} parent=1 // pred_check
      _
    $region67: #{tpu_custom_call.1} parent=1 // pred_check_branch
      %83 = sbr.rel (0) target = $region69
    $region68: #{tpu_custom_call.1} parent=1 // pred_region
      _
    $region69: #{tpu_custom_call.1} parent=1 // pred_fallthru
      _
    // Predicated region
    $region70: #{tpu_custom_call.1} parent=1 // pred_check
      _
    $region71: #{tpu_custom_call.1} parent=1 // pred_check_branch
      %85 = sbr.rel (0) target = $region73
    $region72: #{tpu_custom_call.1} parent=1 // pred_region
      _
    $region73: #{tpu_custom_call.1} parent=1 // pred_fallthru
      _
    // Predicated region
    $region74: #{tpu_custom_call.1} parent=1 // pred_check
      _
    $region75: #{tpu_custom_call.1} parent=1 // pred_check_branch
      %87 = sbr.rel (0) target = $region77
    $region76: #{tpu_custom_call.1} parent=1 // pred_region
      _
    $region77: #{tpu_custom_call.1} parent=1 // pred_fallthru
      _
    // Predicated region
    $region78: #{tpu_custom_call.1} parent=1 // pred_check
      _
    $region79: #{tpu_custom_call.1} parent=1 // pred_check_branch
      %89 = sbr.rel (0) target = $region81
    $region80: #{tpu_custom_call.1} parent=1 // pred_region
      _
    $region81: #{tpu_custom_call.1} parent=1 // pred_fallthru
      _
    // Predicated region
    $region82: #{tpu_custom_call.1} parent=1 // pred_check
      _
    $region83: #{tpu_custom_call.1} parent=1 // pred_check_branch
      %91 = sbr.rel (0) target = $region85
    $region84: #{tpu_custom_call.1} parent=1 // pred_region
      _
    $region85: #{tpu_custom_call.1} parent=1 // pred_fallthru
      _
    // Predicated region
    $region86: #{tpu_custom_call.1} parent=1 // pred_check
      _
    $region87: #{tpu_custom_call.1} parent=1 // pred_check_branch
      %93 = sbr.rel (0) target = $region89
    $region88: #{tpu_custom_call.1} parent=1 // pred_region
      _
    $region89: #{tpu_custom_call.1} parent=1 // pred_fallthru
      _
    // Predicated region
    $region90: #{tpu_custom_call.1} parent=1 // pred_check
      _
    $region91: #{tpu_custom_call.1} parent=1 // pred_check_branch
      %95 = sbr.rel (0) target = $region93
    $region92: #{tpu_custom_call.1} parent=1 // pred_region
      %96 = dma.done [#allocation3], 16
    $region93: #{tpu_custom_call.1} parent=1 // pred_fallthru
      _
    // Predicated region
    $region94: #{tpu_custom_call.1} parent=1 // pred_check
      _
    $region95: #{tpu_custom_call.1} parent=1 // pred_check_branch
      %98 = sbr.rel (0) target = $region97
    $region96: #{tpu_custom_call.1} parent=1 // pred_region
      %99 = dma.done [#allocation6], 16
    $region97: #{tpu_custom_call.1} parent=1 // pred_fallthru
      _
    %v101 = vld [vmem:[%s0] sm:$0xff]
    %v102 = vld [vmem:[%s0 + $0x8] sm:$0xff]
    %v103 = vld [vmem:[%s1] sm:$0xff]
    %v104 = vld [vmem:[%s1 + $0x8] sm:$0xf]
    %v105 = vld [vmem:[%s1 + $0x10] sm:$0xff]
    %v106 = vld [vmem:[%s1 + $0x18] sm:$0xf]
    %v111 = vcombine.high %v103, %v103
    %v112 = vcombine.high %v105, %v105
    %v113 = vpack.c.bf16 %v102, %v101
    %v114 = vld [vmem:[%s2] sm:$0xf]
    %v115 = vld [vmem:[%s2 + $0x4] sm:$0xf]
    %v116 = vld [vmem:[%s2 + $0x8] sm:$0xf]
    %v117 = vld [vmem:[%s2 + $0xc] sm:$0xf]
    %v118 = vld [vmem:[%s3] sm:$0x1]
    %v120 = vlaneseq
    %v121 = vshrl.u32 %v120, 7
    %v122 = vsub.s32 0, %v121
    %v123 = vrot.slane %v118, %v122
    %v129 = vunpack.c.l.b16 %v114
    %v130 = vunpack.c.l.b16 %v115
    %v131 = vunpack.c.l.b16 %v116
    %v132 = vunpack.c.l.b16 %v117
    %v133 = vpack.c.b16 %v130, %v129
    %v134 = vpack.c.b16 %v132, %v131
    %vm137 = vcmask 261120
    %v139 = vsel %vm137, %v113, 0
    %141 = vmatprep.subr.bf16.mxu0 0
    %142 = vmatpush1.bf16.msra.mxu0 %v133
    %143 = vmatprep.subr.bf16.mxu0 0
    %144 = vmatpush1.bf16.msra.mxu0 %v134
    %145 = vmatprep.subr.bf16.mxu0 0
    %146 = vmatpush1.bf16.msra.mxu0 0
    %147 = vmatprep.subr.bf16.mxu0 0
    %148 = vmatpush1.bf16.msra.mxu0 0
    %149 = vmatprep.subr.bf16.mxu0 0
    %150 = vmatpush1.bf16.msra.mxu0 0
    %151 = vmatprep.subr.bf16.mxu0 0
    %152 = vmatpush1.bf16.msra.mxu0 0
    %153 = vmatprep.subr.bf16.mxu0 0
    %154 = vmatpush1.bf16.msra.mxu0 0
    %155 = vmatprep.subr.bf16.mxu0 0
    %156 = vmatpush1.bf16.msra.mxu0 0
    %157 = vmatprep.subr.bf16.mxu0 0
    %158 = vmatpush1.bf16.msra.mxu0 0
    %159 = vmatprep.subr.bf16.mxu0 0
    %160 = vmatpush1.bf16.msra.mxu0 0
    %161 = vmatprep.subr.bf16.mxu0 0
    %162 = vmatpush1.bf16.msra.mxu0 0
    %163 = vmatprep.subr.bf16.mxu0 0
    %164 = vmatpush1.bf16.msra.mxu0 0
    %165 = vmatprep.subr.bf16.mxu0 0
    %166 = vmatpush1.bf16.msra.mxu0 0
    %167 = vmatprep.subr.bf16.mxu0 0
    %168 = vmatpush1.bf16.msra.mxu0 0
    %169 = vmatprep.subr.bf16.mxu0 0
    %170 = vmatpush1.bf16.msra.mxu0 0
    %171 = vmatprep.subr.bf16.mxu0 0
    %172 = vmatpush1.bf16.msra.mxu0 0
    %173 = vmatprep.mubr.bf16.mxu0 0
    %174 = vmatmul.mubr.bf16.gmra.mrb[0].mxu0 %v139
    %v175 = vpop.f32.mrb[0].mxu0
    %v176 = vadd.f32 %v123, %v175
    %v177 = vpop.f32.mrb[0].mxu0
    %v178 = vpop.f32.mrb[0].mxu0
    %v179 = vadd.f32 %v123, %v178
    %v180 = vpop.f32.mrb[0].mxu0
    %181 = vdwg.mxu0
    %v182 = vpack.c.bf16 %v176, %v176
    %v183 = vpack.c.bf16 %v179, %v179
    %185 = vrot.lane.b32.xlu0 %v182, 96
    %v186 = vpop.permute.xlu0 %185
    %vm187 = vcmask 64512
    %v189 = vsel %vm187, %v182, 0
    %v192 = vsel %vm187, %v186, 0
    %194 = vmatprep.subr.bf16.mxu0 0
    %195 = vmatpush1.bf16.xpose.msra.mxu0 %v192
    %196 = vmatprep.subr.bf16.mxu0 0
    %197 = vmatpush1.bf16.xpose.msra.mxu0 0
    %198 = vmatprep.subr.bf16.mxu0 0
    %199 = vmatpush1.bf16.xpose.msra.mxu0 0
    %200 = vmatprep.subr.bf16.mxu0 0
    %201 = vmatpush1.bf16.xpose.msra.mxu0 0
    %202 = vmatprep.subr.bf16.mxu0 0
    %203 = vmatpush1.bf16.xpose.msra.mxu0 0
    %204 = vmatprep.subr.bf16.mxu0 0
    %205 = vmatpush1.bf16.xpose.msra.mxu0 0
    %206 = vmatprep.subr.bf16.mxu0 0
    %207 = vmatpush1.bf16.xpose.msra.mxu0 0
    %208 = vmatprep.subr.bf16.mxu0 0
    %209 = vmatpush1.bf16.xpose.msra.mxu0 0
    %210 = vmatprep.subr.bf16.mxu0 0
    %211 = vmatpush1.bf16.xpose.msra.mxu0 0
    %212 = vmatprep.subr.bf16.mxu0 0
    %213 = vmatpush1.bf16.xpose.msra.mxu0 0
    %214 = vmatprep.subr.bf16.mxu0 0
    %215 = vmatpush1.bf16.xpose.msra.mxu0 0
    %216 = vmatprep.subr.bf16.mxu0 0
    %217 = vmatpush1.bf16.xpose.msra.mxu0 0
    %218 = vmatprep.subr.bf16.mxu0 0
    %219 = vmatpush1.bf16.xpose.msra.mxu0 0
    %220 = vmatprep.subr.bf16.mxu0 0
    %221 = vmatpush1.bf16.xpose.msra.mxu0 0
    %222 = vmatprep.subr.bf16.mxu0 0
    %223 = vmatpush1.bf16.xpose.msra.mxu0 0
    %224 = vmatprep.subr.bf16.mxu0 0
    %225 = vmatpush1.bf16.xpose.msra.mxu0 0
    %226 = vmatprep.mubr.bf16.mxu0 0
    %227 = vmatmul.mubr.bf16.gmra.mrb[0].mxu0 %v189
    %v228 = vpop.f32.mrb[0].mxu0
    %v229 = vadd.f32 0.0, %v228
    %v230 = vpop.f32.mrb[0].mxu0
    %v231 = vpop.f32.mrb[0].mxu0
    %v232 = vpop.f32.mrb[0].mxu0
    %233 = vdwg.mxu0
    %235 = vrot.lane.b32.xlu0 %v183, 96
    %v236 = vpop.permute.xlu0 %235
    %v238 = vsel %vm187, %v183, 0
    %v241 = vsel %vm187, %v236, 0
    %243 = vmatprep.subr.bf16.mxu0 0
    %244 = vmatpush1.bf16.xpose.msra.mxu0 %v241
    %245 = vmatprep.subr.bf16.mxu0 0
    %246 = vmatpush1.bf16.xpose.msra.mxu0 0
    %247 = vmatprep.subr.bf16.mxu0 0
    %248 = vmatpush1.bf16.xpose.msra.mxu0 0
    %249 = vmatprep.subr.bf16.mxu0 0
    %250 = vmatpush1.bf16.xpose.msra.mxu0 0
    %251 = vmatprep.subr.bf16.mxu0 0
    %252 = vmatpush1.bf16.xpose.msra.mxu0 0
    %253 = vmatprep.subr.bf16.mxu0 0
    %254 = vmatpush1.bf16.xpose.msra.mxu0 0
    %255 = vmatprep.subr.bf16.mxu0 0
    %256 = vmatpush1.bf16.xpose.msra.mxu0 0
    %257 = vmatprep.subr.bf16.mxu0 0
    %258 = vmatpush1.bf16.xpose.msra.mxu0 0
    %259 = vmatprep.subr.bf16.mxu0 0
    %260 = vmatpush1.bf16.xpose.msra.mxu0 0
    %261 = vmatprep.subr.bf16.mxu0 0
    %262 = vmatpush1.bf16.xpose.msra.mxu0 0
    %263 = vmatprep.subr.bf16.mxu0 0
    %264 = vmatpush1.bf16.xpose.msra.mxu0 0
    %265 = vmatprep.subr.bf16.mxu0 0
    %266 = vmatpush1.bf16.xpose.msra.mxu0 0
    %267 = vmatprep.subr.bf16.mxu0 0
    %268 = vmatpush1.bf16.xpose.msra.mxu0 0
    %269 = vmatprep.subr.bf16.mxu0 0
    %270 = vmatpush1.bf16.xpose.msra.mxu0 0
    %271 = vmatprep.subr.bf16.mxu0 0
    %272 = vmatpush1.bf16.xpose.msra.mxu0 0
    %273 = vmatprep.subr.bf16.mxu0 0
    %274 = vmatpush1.bf16.xpose.msra.mxu0 0
    %275 = vmatprep.mubr.bf16.mxu0 0
    %276 = vmatmul.mubr.bf16.gmra.mrb[0].mxu0 %v238
    %v277 = vpop.f32.mrb[0].mxu0
    %v278 = vadd.f32 0.0, %v277
    %v279 = vpop.f32.mrb[0].mxu0
    %v280 = vpop.f32.mrb[0].mxu0
    %v281 = vpop.f32.mrb[0].mxu0
    %282 = vdwg.mxu0
    %v283 = vsel %vm187, %v229, -inf
    %284 = vmax.xlane.f32.xlu0 %v283
    %v285 = vpop.xlane.xlu0 %284
    %v286 = vsel %vm187, %v278, -inf
    %287 = vmax.xlane.f32.xlu0 %v286
    %v288 = vpop.xlane.xlu0 %287
    %v289 = vsub.f32 %v229, %v285
    %v290 = vsub.f32 %v278, %v288
    %v291 = vmul.f32 %v289, 1.442695
    %v292 = vpow.pop %v291
    %v293 = vmul.f32 %v290, 1.442695
    %v294 = vpow.pop %v293
    %v295 = vsel %vm187, %v292, 0.0
    %296 = vadd.xlane.f32.xlu0 %v295
    %v297 = vpop.xlane.xlu0 %296
    %v298 = vsel %vm187, %v294, 0.0
    %299 = vadd.xlane.f32.xlu0 %v298
    %v300 = vpop.xlane.xlu0 %299
    %v301 = vrcp.pop %v297
    %v302 = vrcp.pop %v300
    %v303 = vmul.f32 %v292, %v301
    %v304 = vmul.f32 %v294, %v302
    %v305 = vpack.c.bf16 %v303, %v303
    %v306 = vpack.c.bf16 %v304, %v304
    %307 = vrot.lane.b32.xlu0 %v182, 64
    %v308 = vpop.permute.xlu0 %307
    %v310 = vsel %vm187, %v305, 0
    %vm312 = vcmask 1043456
    %v314 = vsel %vm312, %v308, 0
    %316 = vmatprep.subr.bf16.mxu0 0
    %317 = vmatpush1.bf16.msra.mxu0 %v314
    %318 = vmatprep.subr.bf16.mxu0 0
    %319 = vmatpush1.bf16.msra.mxu0 0
    %320 = vmatprep.subr.bf16.mxu0 0
    %321 = vmatpush1.bf16.msra.mxu0 0
    %322 = vmatprep.subr.bf16.mxu0 0
    %323 = vmatpush1.bf16.msra.mxu0 0
    %324 = vmatprep.subr.bf16.mxu0 0
    %325 = vmatpush1.bf16.msra.mxu0 0
    %326 = vmatprep.subr.bf16.mxu0 0
    %327 = vmatpush1.bf16.msra.mxu0 0
    %328 = vmatprep.subr.bf16.mxu0 0
    %329 = vmatpush1.bf16.msra.mxu0 0
    %330 = vmatprep.subr.bf16.mxu0 0
    %331 = vmatpush1.bf16.msra.mxu0 0
    %332 = vmatprep.subr.bf16.mxu0 0
    %333 = vmatpush1.bf16.msra.mxu0 0
    %334 = vmatprep.subr.bf16.mxu0 0
    %335 = vmatpush1.bf16.msra.mxu0 0
    %336 = vmatprep.subr.bf16.mxu0 0
    %337 = vmatpush1.bf16.msra.mxu0 0
    %338 = vmatprep.subr.bf16.mxu0 0
    %339 = vmatpush1.bf16.msra.mxu0 0
    %340 = vmatprep.subr.bf16.mxu0 0
    %341 = vmatpush1.bf16.msra.mxu0 0
    %342 = vmatprep.subr.bf16.mxu0 0
    %343 = vmatpush1.bf16.msra.mxu0 0
    %344 = vmatprep.subr.bf16.mxu0 0
    %345 = vmatpush1.bf16.msra.mxu0 0
    %346 = vmatprep.subr.bf16.mxu0 0
    %347 = vmatpush1.bf16.msra.mxu0 0
    %348 = vmatprep.mubr.bf16.mxu0 0
    %349 = vmatmul.mubr.bf16.gmra.mrb[0].mxu0 %v310
    %v350 = vpop.f32.mrb[0].mxu0
    %v351 = vadd.f32 0.0, %v350
    %v352 = vpop.f32.mrb[0].mxu0
    %v353 = vpop.f32.mrb[0].mxu0
    %v354 = vpop.f32.mrb[0].mxu0
    %355 = vdwg.mxu0
    %356 = vrot.lane.b32.xlu0 %v183, 64
    %v357 = vpop.permute.xlu0 %356
    %v359 = vsel %vm187, %v306, 0
    %v362 = vsel %vm312, %v357, 0
    %364 = vmatprep.subr.bf16.mxu0 0
    %365 = vmatpush1.bf16.msra.mxu0 %v362
    %366 = vmatprep.subr.bf16.mxu0 0
    %367 = vmatpush1.bf16.msra.mxu0 0
    %368 = vmatprep.subr.bf16.mxu0 0
    %369 = vmatpush1.bf16.msra.mxu0 0
    %370 = vmatprep.subr.bf16.mxu0 0
    %371 = vmatpush1.bf16.msra.mxu0 0
    %372 = vmatprep.subr.bf16.mxu0 0
    %373 = vmatpush1.bf16.msra.mxu0 0
    %374 = vmatprep.subr.bf16.mxu0 0
    %375 = vmatpush1.bf16.msra.mxu0 0
    %376 = vmatprep.subr.bf16.mxu0 0
    %377 = vmatpush1.bf16.msra.mxu0 0
    %378 = vmatprep.subr.bf16.mxu0 0
    %379 = vmatpush1.bf16.msra.mxu0 0
    %380 = vmatprep.subr.bf16.mxu0 0
    %381 = vmatpush1.bf16.msra.mxu0 0
    %382 = vmatprep.subr.bf16.mxu0 0
    %383 = vmatpush1.bf16.msra.mxu0 0
    %384 = vmatprep.subr.bf16.mxu0 0
    %385 = vmatpush1.bf16.msra.mxu0 0
    %386 = vmatprep.subr.bf16.mxu0 0
    %387 = vmatpush1.bf16.msra.mxu0 0
    %388 = vmatprep.subr.bf16.mxu0 0
    %389 = vmatpush1.bf16.msra.mxu0 0
    %390 = vmatprep.subr.bf16.mxu0 0
    %391 = vmatpush1.bf16.msra.mxu0 0
    %392 = vmatprep.subr.bf16.mxu0 0
    %393 = vmatpush1.bf16.msra.mxu0 0
    %394 = vmatprep.subr.bf16.mxu0 0
    %395 = vmatpush1.bf16.msra.mxu0 0
    %396 = vmatprep.mubr.bf16.mxu0 0
    %397 = vmatmul.mubr.bf16.gmra.mrb[0].mxu0 %v359
    %v398 = vpop.f32.mrb[0].mxu0
    %v399 = vadd.f32 0.0, %v398
    %v400 = vpop.f32.mrb[0].mxu0
    %v401 = vpop.f32.mrb[0].mxu0
    %v402 = vpop.f32.mrb[0].mxu0
    %403 = vdwg.mxu0
    %v404 = vpack.c.bf16 %v399, %v351
    %v405 = vld [vmem:[%s4] sm:$0xf]
    %406 = vrot.lane.b32.xlu0 %v182, 120
    %v407 = vpop.permute.xlu0 %406
    %408 = vrot.lane.b32.xlu0 %v182, 88
    %v409 = vpop.permute.xlu0 %408
    %v411 = vsel %vm187, %v407, 0
    %v414 = vsel %vm187, %v409, 0
    %416 = vmatprep.subr.bf16.mxu0 0
    %417 = vmatpush1.bf16.xpose.msra.mxu0 %v414
    %418 = vmatprep.subr.bf16.mxu0 0
    %419 = vmatpush1.bf16.xpose.msra.mxu0 0
    %420 = vmatprep.subr.bf16.mxu0 0
    %421 = vmatpush1.bf16.xpose.msra.mxu0 0
    %422 = vmatprep.subr.bf16.mxu0 0
    %423 = vmatpush1.bf16.xpose.msra.mxu0 0
    %424 = vmatprep.subr.bf16.mxu0 0
    %425 = vmatpush1.bf16.xpose.msra.mxu0 0
    %426 = vmatprep.subr.bf16.mxu0 0
    %427 = vmatpush1.bf16.xpose.msra.mxu0 0
    %428 = vmatprep.subr.bf16.mxu0 0
    %429 = vmatpush1.bf16.xpose.msra.mxu0 0
    %430 = vmatprep.subr.bf16.mxu0 0
    %431 = vmatpush1.bf16.xpose.msra.mxu0 0
    %432 = vmatprep.subr.bf16.mxu0 0
    %433 = vmatpush1.bf16.xpose.msra.mxu0 0
    %434 = vmatprep.subr.bf16.mxu0 0
    %435 = vmatpush1.bf16.xpose.msra.mxu0 0
    %436 = vmatprep.subr.bf16.mxu0 0
    %437 = vmatpush1.bf16.xpose.msra.mxu0 0
    %438 = vmatprep.subr.bf16.mxu0 0
    %439 = vmatpush1.bf16.xpose.msra.mxu0 0
    %440 = vmatprep.subr.bf16.mxu0 0
    %441 = vmatpush1.bf16.xpose.msra.mxu0 0
    %442 = vmatprep.subr.bf16.mxu0 0
    %443 = vmatpush1.bf16.xpose.msra.mxu0 0
    %444 = vmatprep.subr.bf16.mxu0 0
    %445 = vmatpush1.bf16.xpose.msra.mxu0 0
    %446 = vmatprep.subr.bf16.mxu0 0
    %447 = vmatpush1.bf16.xpose.msra.mxu0 0
    %448 = vmatprep.mubr.bf16.mxu0 0
    %449 = vmatmul.mubr.bf16.gmra.mrb[0].mxu0 %v411
    %v450 = vpop.f32.mrb[0].mxu0
    %v451 = vadd.f32 0.0, %v450
    %v452 = vpop.f32.mrb[0].mxu0
    %v453 = vpop.f32.mrb[0].mxu0
    %v454 = vpop.f32.mrb[0].mxu0
    %455 = vdwg.mxu0
    %456 = vrot.lane.b32.xlu0 %v183, 120
    %v457 = vpop.permute.xlu0 %456
    %458 = vrot.lane.b32.xlu0 %v183, 88
    %v459 = vpop.permute.xlu0 %458
    %v461 = vsel %vm187, %v457, 0
    %v464 = vsel %vm187, %v459, 0
    %466 = vmatprep.subr.bf16.mxu0 0
    %467 = vmatpush1.bf16.xpose.msra.mxu0 %v464
    %468 = vmatprep.subr.bf16.mxu0 0
    %469 = vmatpush1.bf16.xpose.msra.mxu0 0
    %470 = vmatprep.subr.bf16.mxu0 0
    %471 = vmatpush1.bf16.xpose.msra.mxu0 0
    %472 = vmatprep.subr.bf16.mxu0 0
    %473 = vmatpush1.bf16.xpose.msra.mxu0 0
    %474 = vmatprep.subr.bf16.mxu0 0
    %475 = vmatpush1.bf16.xpose.msra.mxu0 0
    %476 = vmatprep.subr.bf16.mxu0 0
    %477 = vmatpush1.bf16.xpose.msra.mxu0 0
    %478 = vmatprep.subr.bf16.mxu0 0
    %479 = vmatpush1.bf16.xpose.msra.mxu0 0
    %480 = vmatprep.subr.bf16.mxu0 0
    %481 = vmatpush1.bf16.xpose.msra.mxu0 0
    %482 = vmatprep.subr.bf16.mxu0 0
    %483 = vmatpush1.bf16.xpose.msra.mxu0 0
    %484 = vmatprep.subr.bf16.mxu0 0
    %485 = vmatpush1.bf16.xpose.msra.mxu0 0
    %486 = vmatprep.subr.bf16.mxu0 0
    %487 = vmatpush1.bf16.xpose.msra.mxu0 0
    %488 = vmatprep.subr.bf16.mxu0 0
    %489 = vmatpush1.bf16.xpose.msra.mxu0 0
    %490 = vmatprep.subr.bf16.mxu0 0
    %491 = vmatpush1.bf16.xpose.msra.mxu0 0
    %492 = vmatprep.subr.bf16.mxu0 0
    %493 = vmatpush1.bf16.xpose.msra.mxu0 0
    %494 = vmatprep.subr.bf16.mxu0 0
    %495 = vmatpush1.bf16.xpose.msra.mxu0 0
    %496 = vmatprep.subr.bf16.mxu0 0
    %497 = vmatpush1.bf16.xpose.msra.mxu0 0
    %498 = vmatprep.mubr.bf16.mxu0 0
    %499 = vmatmul.mubr.bf16.gmra.mrb[0].mxu0 %v461
    %v500 = vpop.f32.mrb[0].mxu0
    %v501 = vadd.f32 0.0, %v500
    %v502 = vpop.f32.mrb[0].mxu0
    %v503 = vpop.f32.mrb[0].mxu0
    %v504 = vpop.f32.mrb[0].mxu0
    %505 = vdwg.mxu0
    %v506 = vsel %vm187, %v451, -inf
    %507 = vmax.xlane.f32.xlu0 %v506
    %v508 = vpop.xlane.xlu0 %507
    %v509 = vsel %vm187, %v501, -inf
    %510 = vmax.xlane.f32.xlu0 %v509
    %v511 = vpop.xlane.xlu0 %510
    %v512 = vsub.f32 %v451, %v508
    %v513 = vsub.f32 %v501, %v511
    %v514 = vmul.f32 %v512, 1.442695
    %v515 = vpow.pop %v514
    %v516 = vmul.f32 %v513, 1.442695
    %v517 = vpow.pop %v516
    %v518 = vsel %vm187, %v515, 0.0
    %519 = vadd.xlane.f32.xlu0 %v518
    %v520 = vpop.xlane.xlu0 %519
    %v521 = vsel %vm187, %v517, 0.0
    %522 = vadd.xlane.f32.xlu0 %v521
    %v523 = vpop.xlane.xlu0 %522
    %v524 = vrcp.pop %v520
    %v525 = vrcp.pop %v523
    %v526 = vmul.f32 %v515, %v524
    %v527 = vmul.f32 %v517, %v525
    %v528 = vpack.c.bf16 %v526, %v526
    %v529 = vpack.c.bf16 %v527, %v527
    %530 = vrot.lane.b32.xlu0 %v182, 56
    %v531 = vpop.permute.xlu0 %530
    %v533 = vsel %vm187, %v528, 0
    %v536 = vsel %vm312, %v531, 0
    %538 = vmatprep.subr.bf16.mxu0 0
    %539 = vmatpush1.bf16.msra.mxu0 %v536
    %540 = vmatprep.subr.bf16.mxu0 0
    %541 = vmatpush1.bf16.msra.mxu0 0
    %542 = vmatprep.subr.bf16.mxu0 0
    %543 = vmatpush1.bf16.msra.mxu0 0
    %544 = vmatprep.subr.bf16.mxu0 0
    %545 = vmatpush1.bf16.msra.mxu0 0
    %546 = vmatprep.subr.bf16.mxu0 0
    %547 = vmatpush1.bf16.msra.mxu0 0
    %548 = vmatprep.subr.bf16.mxu0 0
    %549 = vmatpush1.bf16.msra.mxu0 0
    %550 = vmatprep.subr.bf16.mxu0 0
    %551 = vmatpush1.bf16.msra.mxu0 0
    %552 = vmatprep.subr.bf16.mxu0 0
    %553 = vmatpush1.bf16.msra.mxu0 0
    %554 = vmatprep.subr.bf16.mxu0 0
    %555 = vmatpush1.bf16.msra.mxu0 0
    %556 = vmatprep.subr.bf16.mxu0 0
    %557 = vmatpush1.bf16.msra.mxu0 0
    %558 = vmatprep.subr.bf16.mxu0 0
    %559 = vmatpush1.bf16.msra.mxu0 0
    %560 = vmatprep.subr.bf16.mxu0 0
    %561 = vmatpush1.bf16.msra.mxu0 0
    %562 = vmatprep.subr.bf16.mxu0 0
    %563 = vmatpush1.bf16.msra.mxu0 0
    %564 = vmatprep.subr.bf16.mxu0 0
    %565 = vmatpush1.bf16.msra.mxu0 0
    %566 = vmatprep.subr.bf16.mxu0 0
    %567 = vmatpush1.bf16.msra.mxu0 0
    %568 = vmatprep.subr.bf16.mxu0 0
    %569 = vmatpush1.bf16.msra.mxu0 0
    %570 = vmatprep.mubr.bf16.mxu0 0
    %571 = vmatmul.mubr.bf16.gmra.mrb[0].mxu0 %v533
    %v572 = vpop.f32.mrb[0].mxu0
    %v573 = vadd.f32 0.0, %v572
    %v574 = vpop.f32.mrb[0].mxu0
    %v575 = vpop.f32.mrb[0].mxu0
    %v576 = vpop.f32.mrb[0].mxu0
    %577 = vdwg.mxu0
    %578 = vrot.lane.b32.xlu0 %v183, 56
    %v579 = vpop.permute.xlu0 %578
    %v581 = vsel %vm187, %v529, 0
    %v584 = vsel %vm312, %v579, 0
    %586 = vmatprep.subr.bf16.mxu0 0
    %587 = vmatpush1.bf16.msra.mxu0 %v584
    %588 = vmatprep.subr.bf16.mxu0 0
    %589 = vmatpush1.bf16.msra.mxu0 0
    %590 = vmatprep.subr.bf16.mxu0 0
    %591 = vmatpush1.bf16.msra.mxu0 0
    %592 = vmatprep.subr.bf16.mxu0 0
    %593 = vmatpush1.bf16.msra.mxu0 0
    %594 = vmatprep.subr.bf16.mxu0 0
    %595 = vmatpush1.bf16.msra.mxu0 0
    %596 = vmatprep.subr.bf16.mxu0 0
    %597 = vmatpush1.bf16.msra.mxu0 0
    %598 = vmatprep.subr.bf16.mxu0 0
    %599 = vmatpush1.bf16.msra.mxu0 0
    %600 = vmatprep.subr.bf16.mxu0 0
    %601 = vmatpush1.bf16.msra.mxu0 0
    %602 = vmatprep.subr.bf16.mxu0 0
    %603 = vmatpush1.bf16.msra.mxu0 0
    %604 = vmatprep.subr.bf16.mxu0 0
    %605 = vmatpush1.bf16.msra.mxu0 0
    %606 = vmatprep.subr.bf16.mxu0 0
    %607 = vmatpush1.bf16.msra.mxu0 0
    %608 = vmatprep.subr.bf16.mxu0 0
    %609 = vmatpush1.bf16.msra.mxu0 0
    %610 = vmatprep.subr.bf16.mxu0 0
    %611 = vmatpush1.bf16.msra.mxu0 0
    %612 = vmatprep.subr.bf16.mxu0 0
    %613 = vmatpush1.bf16.msra.mxu0 0
    %614 = vmatprep.subr.bf16.mxu0 0
    %615 = vmatpush1.bf16.msra.mxu0 0
    %616 = vmatprep.subr.bf16.mxu0 0
    %617 = vmatpush1.bf16.msra.mxu0 0
    %618 = vmatprep.mubr.bf16.mxu0 0
    %619 = vmatmul.mubr.bf16.gmra.mrb[0].mxu0 %v581
    %v620 = vpop.f32.mrb[0].mxu0
    %v621 = vadd.f32 0.0, %v620
    %v622 = vpop.f32.mrb[0].mxu0
    %v623 = vpop.f32.mrb[0].mxu0
    %v624 = vpop.f32.mrb[0].mxu0
    %625 = vdwg.mxu0
    %v626 = vpack.c.bf16 %v621, %v573
    %v627 = vld [vmem:[%s4 + $0x4] sm:$0xf]
    %v629 = vsel %vm187, %v626, 0
    %v632 = vsel %vm312, %v627, 0
    %634 = vmatprep.subr.bf16.mxu0 0
    %635 = vmatpush1.bf16.msra.mxu0 %v632
    %636 = vmatprep.subr.bf16.mxu0 0
    %637 = vmatpush1.bf16.msra.mxu0 0
    %638 = vmatprep.subr.bf16.mxu0 0
    %639 = vmatpush1.bf16.msra.mxu0 0
    %640 = vmatprep.subr.bf16.mxu0 0
    %641 = vmatpush1.bf16.msra.mxu0 0
    %642 = vmatprep.subr.bf16.mxu0 0
    %643 = vmatpush1.bf16.msra.mxu0 0
    %644 = vmatprep.subr.bf16.mxu0 0
    %645 = vmatpush1.bf16.msra.mxu0 0
    %646 = vmatprep.subr.bf16.mxu0 0
    %647 = vmatpush1.bf16.msra.mxu0 0
    %648 = vmatprep.subr.bf16.mxu0 0
    %649 = vmatpush1.bf16.msra.mxu0 0
    %650 = vmatprep.subr.bf16.mxu0 0
    %651 = vmatpush1.bf16.msra.mxu0 0
    %652 = vmatprep.subr.bf16.mxu0 0
    %653 = vmatpush1.bf16.msra.mxu0 0
    %654 = vmatprep.subr.bf16.mxu0 0
    %655 = vmatpush1.bf16.msra.mxu0 0
    %656 = vmatprep.subr.bf16.mxu0 0
    %657 = vmatpush1.bf16.msra.mxu0 0
    %658 = vmatprep.subr.bf16.mxu0 0
    %659 = vmatpush1.bf16.msra.mxu0 0
    %660 = vmatprep.subr.bf16.mxu0 0
    %661 = vmatpush1.bf16.msra.mxu0 0
    %662 = vmatprep.subr.bf16.mxu0 0
    %663 = vmatpush1.bf16.msra.mxu0 0
    %664 = vmatprep.subr.bf16.mxu0 0
    %665 = vmatpush1.bf16.msra.mxu0 0
    %666 = vmatprep.mubr.bf16.mxu0 0
    %667 = vmatmul.mubr.bf16.gmra.mrb[0].mxu0 %v629
    %v668 = vpop.f32.mrb[0].mxu0
    %v669 = vadd.f32 0.0, %v668
    %v670 = vpop.f32.mrb[0].mxu0
    %v671 = vpop.f32.mrb[0].mxu0
    %v672 = vadd.f32 0.0, %v671
    %v673 = vpop.f32.mrb[0].mxu0
    %674 = vdwg.mxu0
    %v676 = vsel %vm187, %v404, 0
    %v679 = vsel %vm312, %v405, 0
    %681 = vmatprep.subr.bf16.mxu0 0
    %682 = vmatpush1.bf16.msra.mxu0 %v679
    %683 = vmatprep.subr.bf16.mxu0 0
    %684 = vmatpush1.bf16.msra.mxu0 0
    %685 = vmatprep.subr.bf16.mxu0 0
    %686 = vmatpush1.bf16.msra.mxu0 0
    %687 = vmatprep.subr.bf16.mxu0 0
    %688 = vmatpush1.bf16.msra.mxu0 0
    %689 = vmatprep.subr.bf16.mxu0 0
    %690 = vmatpush1.bf16.msra.mxu0 0
    %691 = vmatprep.subr.bf16.mxu0 0
    %692 = vmatpush1.bf16.msra.mxu0 0
    %693 = vmatprep.subr.bf16.mxu0 0
    %694 = vmatpush1.bf16.msra.mxu0 0
    %695 = vmatprep.subr.bf16.mxu0 0
    %696 = vmatpush1.bf16.msra.mxu0 0
    %697 = vmatprep.subr.bf16.mxu0 0
    %698 = vmatpush1.bf16.msra.mxu0 0
    %699 = vmatprep.subr.bf16.mxu0 0
    %700 = vmatpush1.bf16.msra.mxu0 0
    %701 = vmatprep.subr.bf16.mxu0 0
    %702 = vmatpush1.bf16.msra.mxu0 0
    %703 = vmatprep.subr.bf16.mxu0 0
    %704 = vmatpush1.bf16.msra.mxu0 0
    %705 = vmatprep.subr.bf16.mxu0 0
    %706 = vmatpush1.bf16.msra.mxu0 0
    %707 = vmatprep.subr.bf16.mxu0 0
    %708 = vmatpush1.bf16.msra.mxu0 0
    %709 = vmatprep.subr.bf16.mxu0 0
    %710 = vmatpush1.bf16.msra.mxu0 0
    %711 = vmatprep.subr.bf16.mxu0 0
    %712 = vmatpush1.bf16.msra.mxu0 0
    %713 = vmatprep.mubr.bf16.mxu0 0
    %714 = vmatmul.mubr.bf16.gmra.mrb[0].mxu0 %v676
    %v715 = vpop.f32.mrb[0].mxu0
    %v716 = vadd.f32 %v669, %v715
    %v717 = vpop.f32.mrb[0].mxu0
    %v718 = vpop.f32.mrb[0].mxu0
    %v719 = vadd.f32 %v672, %v718
    %v720 = vpop.f32.mrb[0].mxu0
    %721 = vdwg.mxu0
    %722 = vrot.lane.b32.xlu0 %v182, 112
    %v723 = vpop.permute.xlu0 %722
    %724 = vrot.lane.b32.xlu0 %v182, 80
    %v725 = vpop.permute.xlu0 %724
    %v727 = vsel %vm187, %v723, 0
    %v730 = vsel %vm187, %v725, 0
    %732 = vmatprep.subr.bf16.mxu0 0
    %733 = vmatpush1.bf16.xpose.msra.mxu0 %v730
    %734 = vmatprep.subr.bf16.mxu0 0
    %735 = vmatpush1.bf16.xpose.msra.mxu0 0
    %736 = vmatprep.subr.bf16.mxu0 0
    %737 = vmatpush1.bf16.xpose.msra.mxu0 0
    %738 = vmatprep.subr.bf16.mxu0 0
    %739 = vmatpush1.bf16.xpose.msra.mxu0 0
    %740 = vmatprep.subr.bf16.mxu0 0
    %741 = vmatpush1.bf16.xpose.msra.mxu0 0
    %742 = vmatprep.subr.bf16.mxu0 0
    %743 = vmatpush1.bf16.xpose.msra.mxu0 0
    %744 = vmatprep.subr.bf16.mxu0 0
    %745 = vmatpush1.bf16.xpose.msra.mxu0 0
    %746 = vmatprep.subr.bf16.mxu0 0
    %747 = vmatpush1.bf16.xpose.msra.mxu0 0
    %748 = vmatprep.subr.bf16.mxu0 0
    %749 = vmatpush1.bf16.xpose.msra.mxu0 0
    %750 = vmatprep.subr.bf16.mxu0 0
    %751 = vmatpush1.bf16.xpose.msra.mxu0 0
    %752 = vmatprep.subr.bf16.mxu0 0
    %753 = vmatpush1.bf16.xpose.msra.mxu0 0
    %754 = vmatprep.subr.bf16.mxu0 0
    %755 = vmatpush1.bf16.xpose.msra.mxu0 0
    %756 = vmatprep.subr.bf16.mxu0 0
    %757 = vmatpush1.bf16.xpose.msra.mxu0 0
    %758 = vmatprep.subr.bf16.mxu0 0
    %759 = vmatpush1.bf16.xpose.msra.mxu0 0
    %760 = vmatprep.subr.bf16.mxu0 0
    %761 = vmatpush1.bf16.xpose.msra.mxu0 0
    %762 = vmatprep.subr.bf16.mxu0 0
    %763 = vmatpush1.bf16.xpose.msra.mxu0 0
    %764 = vmatprep.mubr.bf16.mxu0 0
    %765 = vmatmul.mubr.bf16.gmra.mrb[0].mxu0 %v727
    %v766 = vpop.f32.mrb[0].mxu0
    %v767 = vadd.f32 0.0, %v766
    %v768 = vpop.f32.mrb[0].mxu0
    %v769 = vpop.f32.mrb[0].mxu0
    %v770 = vpop.f32.mrb[0].mxu0
    %771 = vdwg.mxu0
    %772 = vrot.lane.b32.xlu0 %v183, 112
    %v773 = vpop.permute.xlu0 %772
    %774 = vrot.lane.b32.xlu0 %v183, 80
    %v775 = vpop.permute.xlu0 %774
    %v777 = vsel %vm187, %v773, 0
    %v780 = vsel %vm187, %v775, 0
    %782 = vmatprep.subr.bf16.mxu0 0
    %783 = vmatpush1.bf16.xpose.msra.mxu0 %v780
    %784 = vmatprep.subr.bf16.mxu0 0
    %785 = vmatpush1.bf16.xpose.msra.mxu0 0
    %786 = vmatprep.subr.bf16.mxu0 0
    %787 = vmatpush1.bf16.xpose.msra.mxu0 0
    %788 = vmatprep.subr.bf16.mxu0 0
    %789 = vmatpush1.bf16.xpose.msra.mxu0 0
    %790 = vmatprep.subr.bf16.mxu0 0
    %791 = vmatpush1.bf16.xpose.msra.mxu0 0
    %792 = vmatprep.subr.bf16.mxu0 0
    %793 = vmatpush1.bf16.xpose.msra.mxu0 0
    %794 = vmatprep.subr.bf16.mxu0 0
    %795 = vmatpush1.bf16.xpose.msra.mxu0 0
    %796 = vmatprep.subr.bf16.mxu0 0
    %797 = vmatpush1.bf16.xpose.msra.mxu0 0
    %798 = vmatprep.subr.bf16.mxu0 0
    %799 = vmatpush1.bf16.xpose.msra.mxu0 0
    %800 = vmatprep.subr.bf16.mxu0 0
    %801 = vmatpush1.bf16.xpose.msra.mxu0 0
    %802 = vmatprep.subr.bf16.mxu0 0
    %803 = vmatpush1.bf16.xpose.msra.mxu0 0
    %804 = vmatprep.subr.bf16.mxu0 0
    %805 = vmatpush1.bf16.xpose.msra.mxu0 0
    %806 = vmatprep.subr.bf16.mxu0 0
    %807 = vmatpush1.bf16.xpose.msra.mxu0 0
    %808 = vmatprep.subr.bf16.mxu0 0
    %809 = vmatpush1.bf16.xpose.msra.mxu0 0
    %810 = vmatprep.subr.bf16.mxu0 0
    %811 = vmatpush1.bf16.xpose.msra.mxu0 0
    %812 = vmatprep.subr.bf16.mxu0 0
    %813 = vmatpush1.bf16.xpose.msra.mxu0 0
    %814 = vmatprep.mubr.bf16.mxu0 0
    %815 = vmatmul.mubr.bf16.gmra.mrb[0].mxu0 %v777
    %v816 = vpop.f32.mrb[0].mxu0
    %v817 = vadd.f32 0.0, %v816
    %v818 = vpop.f32.mrb[0].mxu0
    %v819 = vpop.f32.mrb[0].mxu0
    %v820 = vpop.f32.mrb[0].mxu0
    %821 = vdwg.mxu0
    %v822 = vsel %vm187, %v767, -inf
    %823 = vmax.xlane.f32.xlu0 %v822
    %v824 = vpop.xlane.xlu0 %823
    %v825 = vsel %vm187, %v817, -inf
    %826 = vmax.xlane.f32.xlu0 %v825
    %v827 = vpop.xlane.xlu0 %826
    %v828 = vsub.f32 %v767, %v824
    %v829 = vsub.f32 %v817, %v827
    %v830 = vmul.f32 %v828, 1.442695
    %v831 = vpow.pop %v830
    %v832 = vmul.f32 %v829, 1.442695
    %v833 = vpow.pop %v832
    %v834 = vsel %vm187, %v831, 0.0
    %835 = vadd.xlane.f32.xlu0 %v834
    %v836 = vpop.xlane.xlu0 %835
    %v837 = vsel %vm187, %v833, 0.0
    %838 = vadd.xlane.f32.xlu0 %v837
    %v839 = vpop.xlane.xlu0 %838
    %v840 = vrcp.pop %v836
    %v841 = vrcp.pop %v839
    %v842 = vmul.f32 %v831, %v840
    %v843 = vmul.f32 %v833, %v841
    %v844 = vpack.c.bf16 %v842, %v842
    %v845 = vpack.c.bf16 %v843, %v843
    %846 = vrot.lane.b32.xlu0 %v182, 48
    %v847 = vpop.permute.xlu0 %846
    %v849 = vsel %vm187, %v844, 0
    %v852 = vsel %vm312, %v847, 0
    %854 = vmatprep.subr.bf16.mxu0 0
    %855 = vmatpush1.bf16.msra.mxu0 %v852
    %856 = vmatprep.subr.bf16.mxu0 0
    %857 = vmatpush1.bf16.msra.mxu0 0
    %858 = vmatprep.subr.bf16.mxu0 0
    %859 = vmatpush1.bf16.msra.mxu0 0
    %860 = vmatprep.subr.bf16.mxu0 0
    %861 = vmatpush1.bf16.msra.mxu0 0
    %862 = vmatprep.subr.bf16.mxu0 0
    %863 = vmatpush1.bf16.msra.mxu0 0
    %864 = vmatprep.subr.bf16.mxu0 0
    %865 = vmatpush1.bf16.msra.mxu0 0
    %866 = vmatprep.subr.bf16.mxu0 0
    %867 = vmatpush1.bf16.msra.mxu0 0
    %868 = vmatprep.subr.bf16.mxu0 0
    %869 = vmatpush1.bf16.msra.mxu0 0
    %870 = vmatprep.subr.bf16.mxu0 0
    %871 = vmatpush1.bf16.msra.mxu0 0
    %872 = vmatprep.subr.bf16.mxu0 0
    %873 = vmatpush1.bf16.msra.mxu0 0
    %874 = vmatprep.subr.bf16.mxu0 0
    %875 = vmatpush1.bf16.msra.mxu0 0
    %876 = vmatprep.subr.bf16.mxu0 0
    %877 = vmatpush1.bf16.msra.mxu0 0
    %878 = vmatprep.subr.bf16.mxu0 0
    %879 = vmatpush1.bf16.msra.mxu0 0
    %880 = vmatprep.subr.bf16.mxu0 0
    %881 = vmatpush1.bf16.msra.mxu0 0
    %882 = vmatprep.subr.bf16.mxu0 0
    %883 = vmatpush1.bf16.msra.mxu0 0
    %884 = vmatprep.subr.bf16.mxu0 0
    %885 = vmatpush1.bf16.msra.mxu0 0
    %886 = vmatprep.mubr.bf16.mxu0 0
    %887 = vmatmul.mubr.bf16.gmra.mrb[0].mxu0 %v849
    %v888 = vpop.f32.mrb[0].mxu0
    %v889 = vadd.f32 0.0, %v888
    %v890 = vpop.f32.mrb[0].mxu0
    %v891 = vpop.f32.mrb[0].mxu0
    %v892 = vpop.f32.mrb[0].mxu0
    %893 = vdwg.mxu0
    %894 = vrot.lane.b32.xlu0 %v183, 48
    %v895 = vpop.permute.xlu0 %894
    %v897 = vsel %vm187, %v845, 0
    %v900 = vsel %vm312, %v895, 0
    %902 = vmatprep.subr.bf16.mxu0 0
    %903 = vmatpush1.bf16.msra.mxu0 %v900
    %904 = vmatprep.subr.bf16.mxu0 0
    %905 = vmatpush1.bf16.msra.mxu0 0
    %906 = vmatprep.subr.bf16.mxu0 0
    %907 = vmatpush1.bf16.msra.mxu0 0
    %908 = vmatprep.subr.bf16.mxu0 0
    %909 = vmatpush1.bf16.msra.mxu0 0
    %910 = vmatprep.subr.bf16.mxu0 0
    %911 = vmatpush1.bf16.msra.mxu0 0
    %912 = vmatprep.subr.bf16.mxu0 0
    %913 = vmatpush1.bf16.msra.mxu0 0
    %914 = vmatprep.subr.bf16.mxu0 0
    %915 = vmatpush1.bf16.msra.mxu0 0
    %916 = vmatprep.subr.bf16.mxu0 0
    %917 = vmatpush1.bf16.msra.mxu0 0
    %918 = vmatprep.subr.bf16.mxu0 0
    %919 = vmatpush1.bf16.msra.mxu0 0
    %920 = vmatprep.subr.bf16.mxu0 0
    %921 = vmatpush1.bf16.msra.mxu0 0
    %922 = vmatprep.subr.bf16.mxu0 0
    %923 = vmatpush1.bf16.msra.mxu0 0
    %924 = vmatprep.subr.bf16.mxu0 0
    %925 = vmatpush1.bf16.msra.mxu0 0
    %926 = vmatprep.subr.bf16.mxu0 0
    %927 = vmatpush1.bf16.msra.mxu0 0
    %928 = vmatprep.subr.bf16.mxu0 0
    %929 = vmatpush1.bf16.msra.mxu0 0
    %930 = vmatprep.subr.bf16.mxu0 0
    %931 = vmatpush1.bf16.msra.mxu0 0
    %932 = vmatprep.subr.bf16.mxu0 0
    %933 = vmatpush1.bf16.msra.mxu0 0
    %934 = vmatprep.mubr.bf16.mxu0 0
    %935 = vmatmul.mubr.bf16.gmra.mrb[0].mxu0 %v897
    %v936 = vpop.f32.mrb[0].mxu0
    %v937 = vadd.f32 0.0, %v936
    %v938 = vpop.f32.mrb[0].mxu0
    %v939 = vpop.f32.mrb[0].mxu0
    %v940 = vpop.f32.mrb[0].mxu0
    %941 = vdwg.mxu0
    %v942 = vpack.c.bf16 %v937, %v889
    %v943 = vld [vmem:[%s4 + $0x8] sm:$0xf]
    %v945 = vsel %vm187, %v942, 0
    %v948 = vsel %vm312, %v943, 0
    %950 = vmatprep.subr.bf16.mxu0 0
    %951 = vmatpush1.bf16.msra.mxu0 %v948
    %952 = vmatprep.subr.bf16.mxu0 0
    %953 = vmatpush1.bf16.msra.mxu0 0
    %954 = vmatprep.subr.bf16.mxu0 0
    %955 = vmatpush1.bf16.msra.mxu0 0
    %956 = vmatprep.subr.bf16.mxu0 0
    %957 = vmatpush1.bf16.msra.mxu0 0
    %958 = vmatprep.subr.bf16.mxu0 0
    %959 = vmatpush1.bf16.msra.mxu0 0
    %960 = vmatprep.subr.bf16.mxu0 0
    %961 = vmatpush1.bf16.msra.mxu0 0
    %962 = vmatprep.subr.bf16.mxu0 0
    %963 = vmatpush1.bf16.msra.mxu0 0
    %964 = vmatprep.subr.bf16.mxu0 0
    %965 = vmatpush1.bf16.msra.mxu0 0
    %966 = vmatprep.subr.bf16.mxu0 0
    %967 = vmatpush1.bf16.msra.mxu0 0
    %968 = vmatprep.subr.bf16.mxu0 0
    %969 = vmatpush1.bf16.msra.mxu0 0
    %970 = vmatprep.subr.bf16.mxu0 0
    %971 = vmatpush1.bf16.msra.mxu0 0
    %972 = vmatprep.subr.bf16.mxu0 0
    %973 = vmatpush1.bf16.msra.mxu0 0
    %974 = vmatprep.subr.bf16.mxu0 0
    %975 = vmatpush1.bf16.msra.mxu0 0
    %976 = vmatprep.subr.bf16.mxu0 0
    %977 = vmatpush1.bf16.msra.mxu0 0
    %978 = vmatprep.subr.bf16.mxu0 0
    %979 = vmatpush1.bf16.msra.mxu0 0
    %980 = vmatprep.subr.bf16.mxu0 0
    %981 = vmatpush1.bf16.msra.mxu0 0
    %982 = vmatprep.mubr.bf16.mxu0 0
    %983 = vmatmul.mubr.bf16.gmra.mrb[0].mxu0 %v945
    %v984 = vpop.f32.mrb[0].mxu0
    %v985 = vadd.f32 0.0, %v984
    %v986 = vpop.f32.mrb[0].mxu0
    %v987 = vpop.f32.mrb[0].mxu0
    %v988 = vadd.f32 0.0, %v987
    %v989 = vpop.f32.mrb[0].mxu0
    %990 = vdwg.mxu0
    %v991 = vadd.f32 %v716, %v985
    %v992 = vadd.f32 %v719, %v988
    %993 = vrot.lane.b32.xlu0 %v182, 104
    %v994 = vpop.permute.xlu0 %993
    %995 = vrot.lane.b32.xlu0 %v182, 72
    %v996 = vpop.permute.xlu0 %995
    %v998 = vsel %vm187, %v994, 0
    %v1001 = vsel %vm187, %v996, 0
    %1003 = vmatprep.subr.bf16.mxu0 0
    %1004 = vmatpush1.bf16.xpose.msra.mxu0 %v1001
    %1005 = vmatprep.subr.bf16.mxu0 0
    %1006 = vmatpush1.bf16.xpose.msra.mxu0 0
    %1007 = vmatprep.subr.bf16.mxu0 0
    %1008 = vmatpush1.bf16.xpose.msra.mxu0 0
    %1009 = vmatprep.subr.bf16.mxu0 0
    %1010 = vmatpush1.bf16.xpose.msra.mxu0 0
    %1011 = vmatprep.subr.bf16.mxu0 0
    %1012 = vmatpush1.bf16.xpose.msra.mxu0 0
    %1013 = vmatprep.subr.bf16.mxu0 0
    %1014 = vmatpush1.bf16.xpose.msra.mxu0 0
    %1015 = vmatprep.subr.bf16.mxu0 0
    %1016 = vmatpush1.bf16.xpose.msra.mxu0 0
    %1017 = vmatprep.subr.bf16.mxu0 0
    %1018 = vmatpush1.bf16.xpose.msra.mxu0 0
    %1019 = vmatprep.subr.bf16.mxu0 0
    %1020 = vmatpush1.bf16.xpose.msra.mxu0 0
    %1021 = vmatprep.subr.bf16.mxu0 0
    %1022 = vmatpush1.bf16.xpose.msra.mxu0 0
    %1023 = vmatprep.subr.bf16.mxu0 0
    %1024 = vmatpush1.bf16.xpose.msra.mxu0 0
    %1025 = vmatprep.subr.bf16.mxu0 0
    %1026 = vmatpush1.bf16.xpose.msra.mxu0 0
    %1027 = vmatprep.subr.bf16.mxu0 0
    %1028 = vmatpush1.bf16.xpose.msra.mxu0 0
    %1029 = vmatprep.subr.bf16.mxu0 0
    %1030 = vmatpush1.bf16.xpose.msra.mxu0 0
    %1031 = vmatprep.subr.bf16.mxu0 0
    %1032 = vmatpush1.bf16.xpose.msra.mxu0 0
    %1033 = vmatprep.subr.bf16.mxu0 0
    %1034 = vmatpush1.bf16.xpose.msra.mxu0 0
    %1035 = vmatprep.mubr.bf16.mxu0 0
    %1036 = vmatmul.mubr.bf16.gmra.mrb[0].mxu0 %v998
    %v1037 = vpop.f32.mrb[0].mxu0
    %v1038 = vadd.f32 0.0, %v1037
    %v1039 = vpop.f32.mrb[0].mxu0
    %v1040 = vpop.f32.mrb[0].mxu0
    %v1041 = vpop.f32.mrb[0].mxu0
    %1042 = vdwg.mxu0
    %1043 = vrot.lane.b32.xlu0 %v183, 104
    %v1044 = vpop.permute.xlu0 %1043
    %1045 = vrot.lane.b32.xlu0 %v183, 72
    %v1046 = vpop.permute.xlu0 %1045
    %v1048 = vsel %vm187, %v1044, 0
    %v1051 = vsel %vm187, %v1046, 0
    %1053 = vmatprep.subr.bf16.mxu0 0
    %1054 = vmatpush1.bf16.xpose.msra.mxu0 %v1051
    %1055 = vmatprep.subr.bf16.mxu0 0
    %1056 = vmatpush1.bf16.xpose.msra.mxu0 0
    %1057 = vmatprep.subr.bf16.mxu0 0
    %1058 = vmatpush1.bf16.xpose.msra.mxu0 0
    %1059 = vmatprep.subr.bf16.mxu0 0
    %1060 = vmatpush1.bf16.xpose.msra.mxu0 0
    %1061 = vmatprep.subr.bf16.mxu0 0
    %1062 = vmatpush1.bf16.xpose.msra.mxu0 0
    %1063 = vmatprep.subr.bf16.mxu0 0
    %1064 = vmatpush1.bf16.xpose.msra.mxu0 0
    %1065 = vmatprep.subr.bf16.mxu0 0
    %1066 = vmatpush1.bf16.xpose.msra.mxu0 0
    %1067 = vmatprep.subr.bf16.mxu0 0
    %1068 = vmatpush1.bf16.xpose.msra.mxu0 0
    %1069 = vmatprep.subr.bf16.mxu0 0
    %1070 = vmatpush1.bf16.xpose.msra.mxu0 0
    %1071 = vmatprep.subr.bf16.mxu0 0
    %1072 = vmatpush1.bf16.xpose.msra.mxu0 0
    %1073 = vmatprep.subr.bf16.mxu0 0
    %1074 = vmatpush1.bf16.xpose.msra.mxu0 0
    %1075 = vmatprep.subr.bf16.mxu0 0
    %1076 = vmatpush1.bf16.xpose.msra.mxu0 0
    %1077 = vmatprep.subr.bf16.mxu0 0
    %1078 = vmatpush1.bf16.xpose.msra.mxu0 0
    %1079 = vmatprep.subr.bf16.mxu0 0
    %1080 = vmatpush1.bf16.xpose.msra.mxu0 0
    %1081 = vmatprep.subr.bf16.mxu0 0
    %1082 = vmatpush1.bf16.xpose.msra.mxu0 0
    %1083 = vmatprep.subr.bf16.mxu0 0
    %1084 = vmatpush1.bf16.xpose.msra.mxu0 0
    %1085 = vmatprep.mubr.bf16.mxu0 0
    %1086 = vmatmul.mubr.bf16.gmra.mrb[0].mxu0 %v1048
    %v1087 = vpop.f32.mrb[0].mxu0
    %v1088 = vadd.f32 0.0, %v1087
    %v1089 = vpop.f32.mrb[0].mxu0
    %v1090 = vpop.f32.mrb[0].mxu0
    %v1091 = vpop.f32.mrb[0].mxu0
    %1092 = vdwg.mxu0
    %v1093 = vsel %vm187, %v1038, -inf
    %1094 = vmax.xlane.f32.xlu0 %v1093
    %v1095 = vpop.xlane.xlu0 %1094
    %v1096 = vsel %vm187, %v1088, -inf
    %1097 = vmax.xlane.f32.xlu0 %v1096
    %v1098 = vpop.xlane.xlu0 %1097
    %v1099 = vsub.f32 %v1038, %v1095
    %v1100 = vsub.f32 %v1088, %v1098
    %v1101 = vmul.f32 %v1099, 1.442695
    %v1102 = vpow.pop %v1101
    %v1103 = vmul.f32 %v1100, 1.442695
    %v1104 = vpow.pop %v1103
    %v1105 = vsel %vm187, %v1102, 0.0
    %1106 = vadd.xlane.f32.xlu0 %v1105
    %v1107 = vpop.xlane.xlu0 %1106
    %v1108 = vsel %vm187, %v1104, 0.0
    %1109 = vadd.xlane.f32.xlu0 %v1108
    %v1110 = vpop.xlane.xlu0 %1109
    %v1111 = vrcp.pop %v1107
    %v1112 = vrcp.pop %v1110
    %v1113 = vmul.f32 %v1102, %v1111
    %v1114 = vmul.f32 %v1104, %v1112
    %v1115 = vpack.c.bf16 %v1113, %v1113
    %v1116 = vpack.c.bf16 %v1114, %v1114
    %1117 = vrot.lane.b32.xlu0 %v182, 40
    %v1118 = vpop.permute.xlu0 %1117
    %v1120 = vsel %vm187, %v1115, 0
    %v1123 = vsel %vm312, %v1118, 0
    %1125 = vmatprep.subr.bf16.mxu0 0
    %1126 = vmatpush1.bf16.msra.mxu0 %v1123
    %1127 = vmatprep.subr.bf16.mxu0 0
    %1128 = vmatpush1.bf16.msra.mxu0 0
    %1129 = vmatprep.subr.bf16.mxu0 0
    %1130 = vmatpush1.bf16.msra.mxu0 0
    %1131 = vmatprep.subr.bf16.mxu0 0
    %1132 = vmatpush1.bf16.msra.mxu0 0
    %1133 = vmatprep.subr.bf16.mxu0 0
    %1134 = vmatpush1.bf16.msra.mxu0 0
    %1135 = vmatprep.subr.bf16.mxu0 0
    %1136 = vmatpush1.bf16.msra.mxu0 0
    %1137 = vmatprep.subr.bf16.mxu0 0
    %1138 = vmatpush1.bf16.msra.mxu0 0
    %1139 = vmatprep.subr.bf16.mxu0 0
    %1140 = vmatpush1.bf16.msra.mxu0 0
    %1141 = vmatprep.subr.bf16.mxu0 0
    %1142 = vmatpush1.bf16.msra.mxu0 0
    %1143 = vmatprep.subr.bf16.mxu0 0
    %1144 = vmatpush1.bf16.msra.mxu0 0
    %1145 = vmatprep.subr.bf16.mxu0 0
    %1146 = vmatpush1.bf16.msra.mxu0 0
    %1147 = vmatprep.subr.bf16.mxu0 0
    %1148 = vmatpush1.bf16.msra.mxu0 0
    %1149 = vmatprep.subr.bf16.mxu0 0
    %1150 = vmatpush1.bf16.msra.mxu0 0
    %1151 = vmatprep.subr.bf16.mxu0 0
    %1152 = vmatpush1.bf16.msra.mxu0 0
    %1153 = vmatprep.subr.bf16.mxu0 0
    %1154 = vmatpush1.bf16.msra.mxu0 0
    %1155 = vmatprep.subr.bf16.mxu0 0
    %1156 = vmatpush1.bf16.msra.mxu0 0
    %1157 = vmatprep.mubr.bf16.mxu0 0
    %1158 = vmatmul.mubr.bf16.gmra.mrb[0].mxu0 %v1120
    %v1159 = vpop.f32.mrb[0].mxu0
    %v1160 = vadd.f32 0.0, %v1159
    %v1161 = vpop.f32.mrb[0].mxu0
    %v1162 = vpop.f32.mrb[0].mxu0
    %v1163 = vpop.f32.mrb[0].mxu0
    %1164 = vdwg.mxu0
    %1165 = vrot.lane.b32.xlu0 %v183, 40
    %v1166 = vpop.permute.xlu0 %1165
    %v1168 = vsel %vm187, %v1116, 0
    %v1171 = vsel %vm312, %v1166, 0
    %1173 = vmatprep.subr.bf16.mxu0 0
    %1174 = vmatpush1.bf16.msra.mxu0 %v1171
    %1175 = vmatprep.subr.bf16.mxu0 0
    %1176 = vmatpush1.bf16.msra.mxu0 0
    %1177 = vmatprep.subr.bf16.mxu0 0
    %1178 = vmatpush1.bf16.msra.mxu0 0
    %1179 = vmatprep.subr.bf16.mxu0 0
    %1180 = vmatpush1.bf16.msra.mxu0 0
    %1181 = vmatprep.subr.bf16.mxu0 0
    %1182 = vmatpush1.bf16.msra.mxu0 0
    %1183 = vmatprep.subr.bf16.mxu0 0
    %1184 = vmatpush1.bf16.msra.mxu0 0
    %1185 = vmatprep.subr.bf16.mxu0 0
    %1186 = vmatpush1.bf16.msra.mxu0 0
    %1187 = vmatprep.subr.bf16.mxu0 0
    %1188 = vmatpush1.bf16.msra.mxu0 0
    %1189 = vmatprep.subr.bf16.mxu0 0
    %1190 = vmatpush1.bf16.msra.mxu0 0
    %1191 = vmatprep.subr.bf16.mxu0 0
    %1192 = vmatpush1.bf16.msra.mxu0 0
    %1193 = vmatprep.subr.bf16.mxu0 0
    %1194 = vmatpush1.bf16.msra.mxu0 0
    %1195 = vmatprep.subr.bf16.mxu0 0
    %1196 = vmatpush1.bf16.msra.mxu0 0
    %1197 = vmatprep.subr.bf16.mxu0 0
    %1198 = vmatpush1.bf16.msra.mxu0 0
    %1199 = vmatprep.subr.bf16.mxu0 0
    %1200 = vmatpush1.bf16.msra.mxu0 0
    %1201 = vmatprep.subr.bf16.mxu0 0
    %1202 = vmatpush1.bf16.msra.mxu0 0
    %1203 = vmatprep.subr.bf16.mxu0 0
    %1204 = vmatpush1.bf16.msra.mxu0 0
    %1205 = vmatprep.mubr.bf16.mxu0 0
    %1206 = vmatmul.mubr.bf16.gmra.mrb[0].mxu0 %v1168
    %v1207 = vpop.f32.mrb[0].mxu0
    %v1208 = vadd.f32 0.0, %v1207
    %v1209 = vpop.f32.mrb[0].mxu0
    %v1210 = vpop.f32.mrb[0].mxu0
    %v1211 = vpop.f32.mrb[0].mxu0
    %1212 = vdwg.mxu0
    %v1213 = vpack.c.bf16 %v1208, %v1160
    %v1214 = vld [vmem:[%s4 + $0xc] sm:$0xf]
    %v1216 = vsel %vm187, %v1213, 0
    %v1219 = vsel %vm312, %v1214, 0
    %1221 = vmatprep.subr.bf16.mxu0 0
    %1222 = vmatpush1.bf16.msra.mxu0 %v1219
    %1223 = vmatprep.subr.bf16.mxu0 0
    %1224 = vmatpush1.bf16.msra.mxu0 0
    %1225 = vmatprep.subr.bf16.mxu0 0
    %1226 = vmatpush1.bf16.msra.mxu0 0
    %1227 = vmatprep.subr.bf16.mxu0 0
    %1228 = vmatpush1.bf16.msra.mxu0 0
    %1229 = vmatprep.subr.bf16.mxu0 0
    %1230 = vmatpush1.bf16.msra.mxu0 0
    %1231 = vmatprep.subr.bf16.mxu0 0
    %1232 = vmatpush1.bf16.msra.mxu0 0
    %1233 = vmatprep.subr.bf16.mxu0 0
    %1234 = vmatpush1.bf16.msra.mxu0 0
    %1235 = vmatprep.subr.bf16.mxu0 0
    %1236 = vmatpush1.bf16.msra.mxu0 0
    %1237 = vmatprep.subr.bf16.mxu0 0
    %1238 = vmatpush1.bf16.msra.mxu0 0
    %1239 = vmatprep.subr.bf16.mxu0 0
    %1240 = vmatpush1.bf16.msra.mxu0 0
    %1241 = vmatprep.subr.bf16.mxu0 0
    %1242 = vmatpush1.bf16.msra.mxu0 0
    %1243 = vmatprep.subr.bf16.mxu0 0
    %1244 = vmatpush1.bf16.msra.mxu0 0
    %1245 = vmatprep.subr.bf16.mxu0 0
    %1246 = vmatpush1.bf16.msra.mxu0 0
    %1247 = vmatprep.subr.bf16.mxu0 0
    %1248 = vmatpush1.bf16.msra.mxu0 0
    %1249 = vmatprep.subr.bf16.mxu0 0
    %1250 = vmatpush1.bf16.msra.mxu0 0
    %1251 = vmatprep.subr.bf16.mxu0 0
    %1252 = vmatpush1.bf16.msra.mxu0 0
    %1253 = vmatprep.mubr.bf16.mxu0 0
    %1254 = vmatmul.mubr.bf16.gmra.mrb[0].mxu0 %v1216
    %v1255 = vpop.f32.mrb[0].mxu0
    %v1256 = vadd.f32 0.0, %v1255
    %v1257 = vpop.f32.mrb[0].mxu0
    %v1258 = vpop.f32.mrb[0].mxu0
    %v1259 = vadd.f32 0.0, %v1258
    %v1260 = vpop.f32.mrb[0].mxu0
    %1261 = vdwg.mxu0
    %v1262 = vadd.f32 %v991, %v1256
    %v1263 = vadd.f32 %v992, %v1259
    %1264 = vst.msk [vmem:[#allocation8] sm:$0xff] %vm187, %v303
    %1265 = vst.msk [vmem:[#allocation8 + $0x8] sm:$0xff] %vm187, %v526
    %1266 = vst.msk [vmem:[#allocation8 + $0x10] sm:$0xff] %vm187, %v842
    %1267 = vst.msk [vmem:[#allocation8 + $0x18] sm:$0xff] %vm187, %v1113
    %1268 = vst.msk [vmem:[#allocation8 + $0x20] sm:$0xff] %vm187, %v304
    %1269 = vst.msk [vmem:[#allocation8 + $0x28] sm:$0xff] %vm187, %v527
    %1270 = vst.msk [vmem:[#allocation8 + $0x30] sm:$0xff] %vm187, %v843
    %1271 = vst.msk [vmem:[#allocation8 + $0x38] sm:$0xff] %vm187, %v1114
    %v1272 = vld [vmem:[%s5] sm:$0x1]
    %v1274 = vlaneseq
    %v1275 = vshrl.u32 %v1274, 7
    %v1276 = vsub.s32 0, %v1275
    %v1277 = vrot.slane %v1272, %v1276
    %v1279 = vadd.f32 %v1262, %v1277
    %v1280 = vadd.f32 %v1263, %v1277
    %v1281 = vadd.f32 %v101, %v1279
    %v1282 = vadd.f32 %v102, %v1280
    %v1283 = vsel %vm137, %v1281, 0.0
    %1284 = vadd.xlane.f32.xlu0 %v1283
    %v1285 = vpop.xlane.xlu0 %1284
    %v1286 = vsel %vm137, %v1282, 0.0
    %1287 = vadd.xlane.f32.xlu0 %v1286
    %v1288 = vpop.xlane.xlu0 %1287
    %v1289 = vrcp.pop 32.0
    %v1290 = vmul.f32 %v1285, %v1289
    %v1291 = vmul.f32 %v1288, %v1289
    %v1292 = vsub.f32 %v1281, %v1290
    %v1293 = vsub.f32 %v1282, %v1291
    %v1294 = vmul.f32 %v1292, %v1292
    %v1295 = vmul.f32 %v1293, %v1293
    %v1296 = vsel %vm137, %v1294, 0.0
    %1297 = vadd.xlane.f32.xlu0 %v1296
    %v1298 = vpop.xlane.xlu0 %1297
    %v1299 = vsel %vm137, %v1295, 0.0
    %1300 = vadd.xlane.f32.xlu0 %v1299
    %v1301 = vpop.xlane.xlu0 %1300
    %v1302 = vmul.f32 %v1298, %v1289
    %v1303 = vmul.f32 %v1301, %v1289
    %v1304 = vadd.f32 %v1302, 1e-05
    %v1305 = vadd.f32 %v1303, 1e-05
    %v1306 = vrsqrt.pop %v1304
    %v1307 = vrsqrt.pop %v1305
    %v1308 = vmul.f32 %v1292, %v1306
    %v1309 = vmul.f32 %v1293, %v1307
    %v1310 = vld [vmem:[#allocation2] sm:$0x1]
    %v1312 = vlaneseq
    %v1313 = vshrl.u32 %v1312, 7
    %v1314 = vsub.s32 0, %v1313
    %v1315 = vrot.slane %v1310, %v1314
    %v1317 = vmul.f32 %v1308, %v1315
    %v1318 = vmul.f32 %v1309, %v1315
    %v1319 = vld [vmem:[#allocation5] sm:$0x1]
    %v1321 = vlaneseq
    %v1322 = vshrl.u32 %v1321, 7
    %v1323 = vsub.s32 0, %v1322
    %v1324 = vrot.slane %v1319, %v1323
    %v1326 = vadd.f32 %v1317, %v1324
    %v1327 = vadd.f32 %v1318, %v1324
    %v1328 = vpack.c.bf16 %v1327, %v1326
    %v1329 = vld [vmem:[%s8] sm:$0xf]
    %v1330 = vld [vmem:[%s8 + $0x4] sm:$0xf]
    %v1331 = vld [vmem:[%s8 + $0x8] sm:$0xf]
    %v1332 = vld [vmem:[%s8 + $0xc] sm:$0xf]
    %v1333 = vld [vmem:[%s9] sm:$0x1]
    %v1335 = vlaneseq
    %v1336 = vshrl.u32 %v1335, 7
    %v1337 = vsub.s32 0, %v1336
    %v1338 = vrot.slane %v1333, %v1337
    %v1344 = vunpack.c.l.b16 %v1329
    %v1345 = vunpack.c.l.b16 %v1330
    %v1346 = vunpack.c.l.b16 %v1331
    %v1347 = vunpack.c.l.b16 %v1332
    %v1348 = vpack.c.b16 %v1345, %v1344
    %v1349 = vpack.c.b16 %v1347, %v1346
    %v1353 = vsel %vm137, %v1328, 0
    %1355 = vmatprep.subr.bf16.mxu0 0
    %1356 = vmatpush1.bf16.msra.mxu0 %v1348
    %1357 = vmatprep.subr.bf16.mxu0 0
    %1358 = vmatpush1.bf16.msra.mxu0 %v1349
    %1359 = vmatprep.subr.bf16.mxu0 0
    %1360 = vmatpush1.bf16.msra.mxu0 0
    %1361 = vmatprep.subr.bf16.mxu0 0
    %1362 = vmatpush1.bf16.msra.mxu0 0
    %1363 = vmatprep.subr.bf16.mxu0 0
    %1364 = vmatpush1.bf16.msra.mxu0 0
    %1365 = vmatprep.subr.bf16.mxu0 0
    %1366 = vmatpush1.bf16.msra.mxu0 0
    %1367 = vmatprep.subr.bf16.mxu0 0
    %1368 = vmatpush1.bf16.msra.mxu0 0
    %1369 = vmatprep.subr.bf16.mxu0 0
    %1370 = vmatpush1.bf16.msra.mxu0 0
    %1371 = vmatprep.subr.bf16.mxu0 0
    %1372 = vmatpush1.bf16.msra.mxu0 0
    %1373 = vmatprep.subr.bf16.mxu0 0
    %1374 = vmatpush1.bf16.msra.mxu0 0
    %1375 = vmatprep.subr.bf16.mxu0 0
    %1376 = vmatpush1.bf16.msra.mxu0 0
    %1377 = vmatprep.subr.bf16.mxu0 0
    %1378 = vmatpush1.bf16.msra.mxu0 0
    %1379 = vmatprep.subr.bf16.mxu0 0
    %1380 = vmatpush1.bf16.msra.mxu0 0
    %1381 = vmatprep.subr.bf16.mxu0 0
    %1382 = vmatpush1.bf16.msra.mxu0 0
    %1383 = vmatprep.subr.bf16.mxu0 0
    %1384 = vmatpush1.bf16.msra.mxu0 0
    %1385 = vmatprep.subr.bf16.mxu0 0
    %1386 = vmatpush1.bf16.msra.mxu0 0
    %1387 = vmatprep.mubr.bf16.mxu0 0
    %1388 = vmatmul.mubr.bf16.gmra.mrb[0].mxu0 %v1353
    %v1389 = vpop.f32.mrb[0].mxu0
    %v1390 = vadd.f32 %v1338, %v1389
    %v1391 = vpop.f32.mrb[0].mxu0
    %v1392 = vpop.f32.mrb[0].mxu0
    %v1393 = vadd.f32 %v1338, %v1392
    %v1394 = vpop.f32.mrb[0].mxu0
    %1395 = vdwg.mxu0
    %v1396 = vcombine.low %v103, %v111
    %v1397 = vcombine.low %v104, %v105
    %v1398 = vcombine.low %v112, %v106
    %v1402 = vpack.c.bf16 %v1397, %v1396
    %v1403 = vpack.c.bf16 %v1398, %v1398
    %v1404 = vld [vmem:[%s10] sm:$0xf]
    %v1405 = vld [vmem:[%s10 + $0x4] sm:$0xf]
    %v1406 = vld [vmem:[%s10 + $0x8] sm:$0xf]
    %v1407 = vld [vmem:[%s10 + $0xc] sm:$0xf]
    %v1408 = vld [vmem:[%s11] sm:$0x1]
    %v1410 = vlaneseq
    %v1411 = vshrl.u32 %v1410, 7
    %v1412 = vsub.s32 0, %v1411
    %v1413 = vrot.slane %v1408, %v1412
    %v1419 = vunpack.c.l.b16 %v1404
    %v1420 = vunpack.c.l.b16 %v1405
    %v1421 = vunpack.c.l.b16 %v1406
    %v1422 = vunpack.c.l.b16 %v1407
    %v1423 = vpack.c.b16 %v1420, %v1419
    %v1424 = vpack.c.b16 %v1422, %v1421
    %v1428 = vsel %vm137, %v1402, 0
    %v1431 = vsel %vm137, %v1403, 0
    %1433 = vmatprep.subr.bf16.mxu0 0
    %1434 = vmatpush1.bf16.msra.mxu0 %v1423
    %1435 = vmatprep.subr.bf16.mxu0 0
    %1436 = vmatpush1.bf16.msra.mxu0 %v1424
    %1437 = vmatprep.subr.bf16.mxu0 0
    %1438 = vmatpush1.bf16.msra.mxu0 0
    %1439 = vmatprep.subr.bf16.mxu0 0
    %1440 = vmatpush1.bf16.msra.mxu0 0
    %1441 = vmatprep.subr.bf16.mxu0 0
    %1442 = vmatpush1.bf16.msra.mxu0 0
    %1443 = vmatprep.subr.bf16.mxu0 0
    %1444 = vmatpush1.bf16.msra.mxu0 0
    %1445 = vmatprep.subr.bf16.mxu0 0
    %1446 = vmatpush1.bf16.msra.mxu0 0
    %1447 = vmatprep.subr.bf16.mxu0 0
    %1448 = vmatpush1.bf16.msra.mxu0 0
    %1449 = vmatprep.subr.bf16.mxu0 0
    %1450 = vmatpush1.bf16.msra.mxu0 0
    %1451 = vmatprep.subr.bf16.mxu0 0
    %1452 = vmatpush1.bf16.msra.mxu0 0
    %1453 = vmatprep.subr.bf16.mxu0 0
    %1454 = vmatpush1.bf16.msra.mxu0 0
    %1455 = vmatprep.subr.bf16.mxu0 0
    %1456 = vmatpush1.bf16.msra.mxu0 0
    %1457 = vmatprep.subr.bf16.mxu0 0
    %1458 = vmatpush1.bf16.msra.mxu0 0
    %1459 = vmatprep.subr.bf16.mxu0 0
    %1460 = vmatpush1.bf16.msra.mxu0 0
    %1461 = vmatprep.subr.bf16.mxu0 0
    %1462 = vmatpush1.bf16.msra.mxu0 0
    %1463 = vmatprep.subr.bf16.mxu0 0
    %1464 = vmatpush1.bf16.msra.mxu0 0
    %1465 = vmatprep.mubr.bf16.mxu0 0
    %1466 = vmatmul.mubr.bf16.gmra.mrb[0].mxu0 %v1428
    %v1467 = vpop.f32.mrb[0].mxu0
    %v1468 = vadd.f32 %v1413, %v1467
    %v1469 = vpop.f32.mrb[0].mxu0
    %v1470 = vpop.f32.mrb[0].mxu0
    %v1471 = vadd.f32 %v1413, %v1470
    %v1472 = vpop.f32.mrb[0].mxu0
    %1473 = vmatprep.mubr.bf16.mxu0 0
    %1474 = vmatmul.mubr.bf16.gmra.mrb[0].mxu0 %v1431
    %v1475 = vpop.f32.mrb[0].mxu0
    %v1476 = vadd.f32 %v1413, %v1475
    %v1477 = vpop.f32.mrb[0].mxu0
    %v1478 = vpop.f32.mrb[0].mxu0
    %v1479 = vpop.f32.mrb[0].mxu0
    %1480 = vdwg.mxu0
    %v1481 = vpack.c.bf16 %v1390, %v1390
    %v1482 = vpack.c.bf16 %v1393, %v1393
    %v1486 = vcombine.high %v1468, %v1468
    %v1487 = vcombine.high %v1471, %v1471
    %v1488 = vcombine.high %v1476, %v1476
    %v1490 = vcombine.low %v1468, %v1486
    %v1491 = vcombine.low %v1487, %v1476
    %v1494 = vpack.c.bf16 %v1471, %v1490
    %v1495 = vpack.c.bf16 %v1488, %v1491
    %v1497 = vsel %vm187, %v1481, 0
    %v1500 = vsel %vm187, %v1494, 0
    %1502 = vmatprep.subr.bf16.mxu0 0
    %1503 = vmatpush1.bf16.xpose.msra.mxu0 %v1500
    %1504 = vmatprep.subr.bf16.mxu0 0
    %1505 = vmatpush1.bf16.xpose.msra.mxu0 0
    %1506 = vmatprep.subr.bf16.mxu0 0
    %1507 = vmatpush1.bf16.xpose.msra.mxu0 0
    %1508 = vmatprep.subr.bf16.mxu0 0
    %1509 = vmatpush1.bf16.xpose.msra.mxu0 0
    %1510 = vmatprep.subr.bf16.mxu0 0
    %1511 = vmatpush1.bf16.xpose.msra.mxu0 0
    %1512 = vmatprep.subr.bf16.mxu0 0
    %1513 = vmatpush1.bf16.xpose.msra.mxu0 0
    %1514 = vmatprep.subr.bf16.mxu0 0
    %1515 = vmatpush1.bf16.xpose.msra.mxu0 0
    %1516 = vmatprep.subr.bf16.mxu0 0
    %1517 = vmatpush1.bf16.xpose.msra.mxu0 0
    %1518 = vmatprep.subr.bf16.mxu0 0
    %1519 = vmatpush1.bf16.xpose.msra.mxu0 0
    %1520 = vmatprep.subr.bf16.mxu0 0
    %1521 = vmatpush1.bf16.xpose.msra.mxu0 0
    %1522 = vmatprep.subr.bf16.mxu0 0
    %1523 = vmatpush1.bf16.xpose.msra.mxu0 0
    %1524 = vmatprep.subr.bf16.mxu0 0
    %1525 = vmatpush1.bf16.xpose.msra.mxu0 0
    %1526 = vmatprep.subr.bf16.mxu0 0
    %1527 = vmatpush1.bf16.xpose.msra.mxu0 0
    %1528 = vmatprep.subr.bf16.mxu0 0
    %1529 = vmatpush1.bf16.xpose.msra.mxu0 0
    %1530 = vmatprep.subr.bf16.mxu0 0
    %1531 = vmatpush1.bf16.xpose.msra.mxu0 0
    %1532 = vmatprep.subr.bf16.mxu0 0
    %1533 = vmatpush1.bf16.xpose.msra.mxu0 0
    %1534 = vmatprep.mubr.bf16.mxu0 0
    %1535 = vmatmul.mubr.bf16.gmra.mrb[0].mxu0 %v1497
    %v1536 = vpop.f32.mrb[0].mxu0
    %v1537 = vadd.f32 0.0, %v1536
    %v1538 = vpop.f32.mrb[0].mxu0
    %v1539 = vpop.f32.mrb[0].mxu0
    %v1540 = vpop.f32.mrb[0].mxu0
    %1541 = vdwg.mxu0
    %v1543 = vsel %vm187, %v1482, 0
    %v1546 = vsel %vm187, %v1495, 0
    %1548 = vmatprep.subr.bf16.mxu0 0
    %1549 = vmatpush1.bf16.xpose.msra.mxu0 %v1546
    %1550 = vmatprep.subr.bf16.mxu0 0
    %1551 = vmatpush1.bf16.xpose.msra.mxu0 0
    %1552 = vmatprep.subr.bf16.mxu0 0
    %1553 = vmatpush1.bf16.xpose.msra.mxu0 0
    %1554 = vmatprep.subr.bf16.mxu0 0
    %1555 = vmatpush1.bf16.xpose.msra.mxu0 0
    %1556 = vmatprep.subr.bf16.mxu0 0
    %1557 = vmatpush1.bf16.xpose.msra.mxu0 0
    %1558 = vmatprep.subr.bf16.mxu0 0
    %1559 = vmatpush1.bf16.xpose.msra.mxu0 0
    %1560 = vmatprep.subr.bf16.mxu0 0
    %1561 = vmatpush1.bf16.xpose.msra.mxu0 0
    %1562 = vmatprep.subr.bf16.mxu0 0
    %1563 = vmatpush1.bf16.xpose.msra.mxu0 0
    %1564 = vmatprep.subr.bf16.mxu0 0
    %1565 = vmatpush1.bf16.xpose.msra.mxu0 0
    %1566 = vmatprep.subr.bf16.mxu0 0
    %1567 = vmatpush1.bf16.xpose.msra.mxu0 0
    %1568 = vmatprep.subr.bf16.mxu0 0
    %1569 = vmatpush1.bf16.xpose.msra.mxu0 0
    %1570 = vmatprep.subr.bf16.mxu0 0
    %1571 = vmatpush1.bf16.xpose.msra.mxu0 0
    %1572 = vmatprep.subr.bf16.mxu0 0
    %1573 = vmatpush1.bf16.xpose.msra.mxu0 0
    %1574 = vmatprep.subr.bf16.mxu0 0
    %1575 = vmatpush1.bf16.xpose.msra.mxu0 0
    %1576 = vmatprep.subr.bf16.mxu0 0
    %1577 = vmatpush1.bf16.xpose.msra.mxu0 0
    %1578 = vmatprep.subr.bf16.mxu0 0
    %1579 = vmatpush1.bf16.xpose.msra.mxu0 0
    %1580 = vmatprep.mubr.bf16.mxu0 0
    %1581 = vmatmul.mubr.bf16.gmra.mrb[0].mxu0 %v1543
    %v1582 = vpop.f32.mrb[0].mxu0
    %v1583 = vadd.f32 0.0, %v1582
    %v1584 = vpop.f32.mrb[0].mxu0
    %v1585 = vpop.f32.mrb[0].mxu0
    %v1586 = vpop.f32.mrb[0].mxu0
    %1587 = vdwg.mxu0
    %vm1588 = vcmask 97280
    %v1589 = vsel %vm1588, %v1537, -inf
    %1590 = vmax.xlane.f32.xlu0 %v1589
    %v1591 = vpop.xlane.xlu0 %1590
    %v1592 = vsel %vm1588, %v1583, -inf
    %1593 = vmax.xlane.f32.xlu0 %v1592
    %v1594 = vpop.xlane.xlu0 %1593
    %v1595 = vsub.f32 %v1537, %v1591
    %v1596 = vsub.f32 %v1583, %v1594
    %v1597 = vmul.f32 %v1595, 1.442695
    %v1598 = vpow.pop %v1597
    %v1599 = vmul.f32 %v1596, 1.442695
    %v1600 = vpow.pop %v1599
    %v1601 = vsel %vm1588, %v1598, 0.0
    %1602 = vadd.xlane.f32.xlu0 %v1601
    %v1603 = vpop.xlane.xlu0 %1602
    %v1604 = vsel %vm1588, %v1600, 0.0
    %1605 = vadd.xlane.f32.xlu0 %v1604
    %v1606 = vpop.xlane.xlu0 %1605
    %v1607 = vrcp.pop %v1603
    %v1608 = vrcp.pop %v1606
    %v1609 = vmul.f32 %v1598, %v1607
    %v1610 = vmul.f32 %v1600, %v1608
    %v1611 = vpack.c.bf16 %v1609, %v1609
    %v1612 = vpack.c.bf16 %v1610, %v1610
    %1614 = vrot.lane.b32.xlu0 %v1494, 96
    %v1615 = vpop.permute.xlu0 %1614
    %v1617 = vsel %vm1588, %v1611, 0
    %vm1619 = vcmask 1045504
    %v1621 = vsel %vm1619, %v1615, 0
    %1623 = vmatprep.subr.bf16.mxu0 0
    %1624 = vmatpush1.bf16.msra.mxu0 %v1621
    %1625 = vmatprep.subr.bf16.mxu0 0
    %1626 = vmatpush1.bf16.msra.mxu0 0
    %1627 = vmatprep.subr.bf16.mxu0 0
    %1628 = vmatpush1.bf16.msra.mxu0 0
    %1629 = vmatprep.subr.bf16.mxu0 0
    %1630 = vmatpush1.bf16.msra.mxu0 0
    %1631 = vmatprep.subr.bf16.mxu0 0
    %1632 = vmatpush1.bf16.msra.mxu0 0
    %1633 = vmatprep.subr.bf16.mxu0 0
    %1634 = vmatpush1.bf16.msra.mxu0 0
    %1635 = vmatprep.subr.bf16.mxu0 0
    %1636 = vmatpush1.bf16.msra.mxu0 0
    %1637 = vmatprep.subr.bf16.mxu0 0
    %1638 = vmatpush1.bf16.msra.mxu0 0
    %1639 = vmatprep.subr.bf16.mxu0 0
    %1640 = vmatpush1.bf16.msra.mxu0 0
    %1641 = vmatprep.subr.bf16.mxu0 0
    %1642 = vmatpush1.bf16.msra.mxu0 0
    %1643 = vmatprep.subr.bf16.mxu0 0
    %1644 = vmatpush1.bf16.msra.mxu0 0
    %1645 = vmatprep.subr.bf16.mxu0 0
    %1646 = vmatpush1.bf16.msra.mxu0 0
    %1647 = vmatprep.subr.bf16.mxu0 0
    %1648 = vmatpush1.bf16.msra.mxu0 0
    %1649 = vmatprep.subr.bf16.mxu0 0
    %1650 = vmatpush1.bf16.msra.mxu0 0
    %1651 = vmatprep.subr.bf16.mxu0 0
    %1652 = vmatpush1.bf16.msra.mxu0 0
    %1653 = vmatprep.subr.bf16.mxu0 0
    %1654 = vmatpush1.bf16.msra.mxu0 0
    %1655 = vmatprep.mubr.bf16.mxu0 0
    %1656 = vmatmul.mubr.bf16.gmra.mrb[0].mxu0 %v1617
    %v1657 = vpop.f32.mrb[0].mxu0
    %v1658 = vadd.f32 0.0, %v1657
    %v1659 = vpop.f32.mrb[0].mxu0
    %v1660 = vpop.f32.mrb[0].mxu0
    %v1661 = vpop.f32.mrb[0].mxu0
    %1662 = vdwg.mxu0
    %1664 = vrot.lane.b32.xlu0 %v1495, 96
    %v1665 = vpop.permute.xlu0 %1664
    %v1667 = vsel %vm1588, %v1612, 0
    %v1670 = vsel %vm1619, %v1665, 0
    %1672 = vmatprep.subr.bf16.mxu0 0
    %1673 = vmatpush1.bf16.msra.mxu0 %v1670
    %1674 = vmatprep.subr.bf16.mxu0 0
    %1675 = vmatpush1.bf16.msra.mxu0 0
    %1676 = vmatprep.subr.bf16.mxu0 0
    %1677 = vmatpush1.bf16.msra.mxu0 0
    %1678 = vmatprep.subr.bf16.mxu0 0
    %1679 = vmatpush1.bf16.msra.mxu0 0
    %1680 = vmatprep.subr.bf16.mxu0 0
    %1681 = vmatpush1.bf16.msra.mxu0 0
    %1682 = vmatprep.subr.bf16.mxu0 0
    %1683 = vmatpush1.bf16.msra.mxu0 0
    %1684 = vmatprep.subr.bf16.mxu0 0
    %1685 = vmatpush1.bf16.msra.mxu0 0
    %1686 = vmatprep.subr.bf16.mxu0 0
    %1687 = vmatpush1.bf16.msra.mxu0 0
    %1688 = vmatprep.subr.bf16.mxu0 0
    %1689 = vmatpush1.bf16.msra.mxu0 0
    %1690 = vmatprep.subr.bf16.mxu0 0
    %1691 = vmatpush1.bf16.msra.mxu0 0
    %1692 = vmatprep.subr.bf16.mxu0 0
    %1693 = vmatpush1.bf16.msra.mxu0 0
    %1694 = vmatprep.subr.bf16.mxu0 0
    %1695 = vmatpush1.bf16.msra.mxu0 0
    %1696 = vmatprep.subr.bf16.mxu0 0
    %1697 = vmatpush1.bf16.msra.mxu0 0
    %1698 = vmatprep.subr.bf16.mxu0 0
    %1699 = vmatpush1.bf16.msra.mxu0 0
    %1700 = vmatprep.subr.bf16.mxu0 0
    %1701 = vmatpush1.bf16.msra.mxu0 0
    %1702 = vmatprep.subr.bf16.mxu0 0
    %1703 = vmatpush1.bf16.msra.mxu0 0
    %1704 = vmatprep.mubr.bf16.mxu0 0
    %1705 = vmatmul.mubr.bf16.gmra.mrb[0].mxu0 %v1667
    %v1706 = vpop.f32.mrb[0].mxu0
    %v1707 = vadd.f32 0.0, %v1706
    %v1708 = vpop.f32.mrb[0].mxu0
    %v1709 = vpop.f32.mrb[0].mxu0
    %v1710 = vpop.f32.mrb[0].mxu0
    %1711 = vdwg.mxu0
    %v1712 = vpack.c.bf16 %v1707, %v1658
    %v1713 = vld [vmem:[%s12] sm:$0xf]
    %1715 = vrot.lane.b32.xlu0 %v1481, 120
    %v1716 = vpop.permute.xlu0 %1715
    %1717 = vrot.lane.b32.xlu0 %v1494, 120
    %v1718 = vpop.permute.xlu0 %1717
    %v1720 = vsel %vm187, %v1716, 0
    %v1723 = vsel %vm187, %v1718, 0
    %1725 = vmatprep.subr.bf16.mxu0 0
    %1726 = vmatpush1.bf16.xpose.msra.mxu0 %v1723
    %1727 = vmatprep.subr.bf16.mxu0 0
    %1728 = vmatpush1.bf16.xpose.msra.mxu0 0
    %1729 = vmatprep.subr.bf16.mxu0 0
    %1730 = vmatpush1.bf16.xpose.msra.mxu0 0
    %1731 = vmatprep.subr.bf16.mxu0 0
    %1732 = vmatpush1.bf16.xpose.msra.mxu0 0
    %1733 = vmatprep.subr.bf16.mxu0 0
    %1734 = vmatpush1.bf16.xpose.msra.mxu0 0
    %1735 = vmatprep.subr.bf16.mxu0 0
    %1736 = vmatpush1.bf16.xpose.msra.mxu0 0
    %1737 = vmatprep.subr.bf16.mxu0 0
    %1738 = vmatpush1.bf16.xpose.msra.mxu0 0
    %1739 = vmatprep.subr.bf16.mxu0 0
    %1740 = vmatpush1.bf16.xpose.msra.mxu0 0
    %1741 = vmatprep.subr.bf16.mxu0 0
    %1742 = vmatpush1.bf16.xpose.msra.mxu0 0
    %1743 = vmatprep.subr.bf16.mxu0 0
    %1744 = vmatpush1.bf16.xpose.msra.mxu0 0
    %1745 = vmatprep.subr.bf16.mxu0 0
    %1746 = vmatpush1.bf16.xpose.msra.mxu0 0
    %1747 = vmatprep.subr.bf16.mxu0 0
    %1748 = vmatpush1.bf16.xpose.msra.mxu0 0
    %1749 = vmatprep.subr.bf16.mxu0 0
    %1750 = vmatpush1.bf16.xpose.msra.mxu0 0
    %1751 = vmatprep.subr.bf16.mxu0 0
    %1752 = vmatpush1.bf16.xpose.msra.mxu0 0
    %1753 = vmatprep.subr.bf16.mxu0 0
    %1754 = vmatpush1.bf16.xpose.msra.mxu0 0
    %1755 = vmatprep.subr.bf16.mxu0 0
    %1756 = vmatpush1.bf16.xpose.msra.mxu0 0
    %1757 = vmatprep.mubr.bf16.mxu0 0
    %1758 = vmatmul.mubr.bf16.gmra.mrb[0].mxu0 %v1720
    %v1759 = vpop.f32.mrb[0].mxu0
    %v1760 = vadd.f32 0.0, %v1759
    %v1761 = vpop.f32.mrb[0].mxu0
    %v1762 = vpop.f32.mrb[0].mxu0
    %v1763 = vpop.f32.mrb[0].mxu0
    %1764 = vdwg.mxu0
    %1766 = vrot.lane.b32.xlu0 %v1482, 120
    %v1767 = vpop.permute.xlu0 %1766
    %1768 = vrot.lane.b32.xlu0 %v1495, 120
    %v1769 = vpop.permute.xlu0 %1768
    %v1771 = vsel %vm187, %v1767, 0
    %v1774 = vsel %vm187, %v1769, 0
    %1776 = vmatprep.subr.bf16.mxu0 0
    %1777 = vmatpush1.bf16.xpose.msra.mxu0 %v1774
    %1778 = vmatprep.subr.bf16.mxu0 0
    %1779 = vmatpush1.bf16.xpose.msra.mxu0 0
    %1780 = vmatprep.subr.bf16.mxu0 0
    %1781 = vmatpush1.bf16.xpose.msra.mxu0 0
    %1782 = vmatprep.subr.bf16.mxu0 0
    %1783 = vmatpush1.bf16.xpose.msra.mxu0 0
    %1784 = vmatprep.subr.bf16.mxu0 0
    %1785 = vmatpush1.bf16.xpose.msra.mxu0 0
    %1786 = vmatprep.subr.bf16.mxu0 0
    %1787 = vmatpush1.bf16.xpose.msra.mxu0 0
    %1788 = vmatprep.subr.bf16.mxu0 0
    %1789 = vmatpush1.bf16.xpose.msra.mxu0 0
    %1790 = vmatprep.subr.bf16.mxu0 0
    %1791 = vmatpush1.bf16.xpose.msra.mxu0 0
    %1792 = vmatprep.subr.bf16.mxu0 0
    %1793 = vmatpush1.bf16.xpose.msra.mxu0 0
    %1794 = vmatprep.subr.bf16.mxu0 0
    %1795 = vmatpush1.bf16.xpose.msra.mxu0 0
    %1796 = vmatprep.subr.bf16.mxu0 0
    %1797 = vmatpush1.bf16.xpose.msra.mxu0 0
    %1798 = vmatprep.subr.bf16.mxu0 0
    %1799 = vmatpush1.bf16.xpose.msra.mxu0 0
    %1800 = vmatprep.subr.bf16.mxu0 0
    %1801 = vmatpush1.bf16.xpose.msra.mxu0 0
    %1802 = vmatprep.subr.bf16.mxu0 0
    %1803 = vmatpush1.bf16.xpose.msra.mxu0 0
    %1804 = vmatprep.subr.bf16.mxu0 0
    %1805 = vmatpush1.bf16.xpose.msra.mxu0 0
    %1806 = vmatprep.subr.bf16.mxu0 0
    %1807 = vmatpush1.bf16.xpose.msra.mxu0 0
    %1808 = vmatprep.mubr.bf16.mxu0 0
    %1809 = vmatmul.mubr.bf16.gmra.mrb[0].mxu0 %v1771
    %v1810 = vpop.f32.mrb[0].mxu0
    %v1811 = vadd.f32 0.0, %v1810
    %v1812 = vpop.f32.mrb[0].mxu0
    %v1813 = vpop.f32.mrb[0].mxu0
    %v1814 = vpop.f32.mrb[0].mxu0
    %1815 = vdwg.mxu0
    %v1816 = vsel %vm1588, %v1760, -inf
    %1817 = vmax.xlane.f32.xlu0 %v1816
    %v1818 = vpop.xlane.xlu0 %1817
    %v1819 = vsel %vm1588, %v1811, -inf
    %1820 = vmax.xlane.f32.xlu0 %v1819
    %v1821 = vpop.xlane.xlu0 %1820
    %v1822 = vsub.f32 %v1760, %v1818
    %v1823 = vsub.f32 %v1811, %v1821
    %v1824 = vmul.f32 %v1822, 1.442695
    %v1825 = vpow.pop %v1824
    %v1826 = vmul.f32 %v1823, 1.442695
    %v1827 = vpow.pop %v1826
    %v1828 = vsel %vm1588, %v1825, 0.0
    %1829 = vadd.xlane.f32.xlu0 %v1828
    %v1830 = vpop.xlane.xlu0 %1829
    %v1831 = vsel %vm1588, %v1827, 0.0
    %1832 = vadd.xlane.f32.xlu0 %v1831
    %v1833 = vpop.xlane.xlu0 %1832
    %v1834 = vrcp.pop %v1830
    %v1835 = vrcp.pop %v1833
    %v1836 = vmul.f32 %v1825, %v1834
    %v1837 = vmul.f32 %v1827, %v1835
    %v1838 = vpack.c.bf16 %v1836, %v1836
    %v1839 = vpack.c.bf16 %v1837, %v1837
    %1840 = vrot.lane.b32.xlu0 %v1494, 88
    %v1841 = vpop.permute.xlu0 %1840
    %v1843 = vsel %vm1588, %v1838, 0
    %v1846 = vsel %vm1619, %v1841, 0
    %1848 = vmatprep.subr.bf16.mxu0 0
    %1849 = vmatpush1.bf16.msra.mxu0 %v1846
    %1850 = vmatprep.subr.bf16.mxu0 0
    %1851 = vmatpush1.bf16.msra.mxu0 0
    %1852 = vmatprep.subr.bf16.mxu0 0
    %1853 = vmatpush1.bf16.msra.mxu0 0
    %1854 = vmatprep.subr.bf16.mxu0 0
    %1855 = vmatpush1.bf16.msra.mxu0 0
    %1856 = vmatprep.subr.bf16.mxu0 0
    %1857 = vmatpush1.bf16.msra.mxu0 0
    %1858 = vmatprep.subr.bf16.mxu0 0
    %1859 = vmatpush1.bf16.msra.mxu0 0
    %1860 = vmatprep.subr.bf16.mxu0 0
    %1861 = vmatpush1.bf16.msra.mxu0 0
    %1862 = vmatprep.subr.bf16.mxu0 0
    %1863 = vmatpush1.bf16.msra.mxu0 0
    %1864 = vmatprep.subr.bf16.mxu0 0
    %1865 = vmatpush1.bf16.msra.mxu0 0
    %1866 = vmatprep.subr.bf16.mxu0 0
    %1867 = vmatpush1.bf16.msra.mxu0 0
    %1868 = vmatprep.subr.bf16.mxu0 0
    %1869 = vmatpush1.bf16.msra.mxu0 0
    %1870 = vmatprep.subr.bf16.mxu0 0
    %1871 = vmatpush1.bf16.msra.mxu0 0
    %1872 = vmatprep.subr.bf16.mxu0 0
    %1873 = vmatpush1.bf16.msra.mxu0 0
    %1874 = vmatprep.subr.bf16.mxu0 0
    %1875 = vmatpush1.bf16.msra.mxu0 0
    %1876 = vmatprep.subr.bf16.mxu0 0
    %1877 = vmatpush1.bf16.msra.mxu0 0
    %1878 = vmatprep.subr.bf16.mxu0 0
    %1879 = vmatpush1.bf16.msra.mxu0 0
    %1880 = vmatprep.mubr.bf16.mxu0 0
    %1881 = vmatmul.mubr.bf16.gmra.mrb[0].mxu0 %v1843
    %v1882 = vpop.f32.mrb[0].mxu0
    %v1883 = vadd.f32 0.0, %v1882
    %v1884 = vpop.f32.mrb[0].mxu0
    %v1885 = vpop.f32.mrb[0].mxu0
    %v1886 = vpop.f32.mrb[0].mxu0
    %1887 = vdwg.mxu0
    %1888 = vrot.lane.b32.xlu0 %v1495, 88
    %v1889 = vpop.permute.xlu0 %1888
    %v1891 = vsel %vm1588, %v1839, 0
    %v1894 = vsel %vm1619, %v1889, 0
    %1896 = vmatprep.subr.bf16.mxu0 0
    %1897 = vmatpush1.bf16.msra.mxu0 %v1894
    %1898 = vmatprep.subr.bf16.mxu0 0
    %1899 = vmatpush1.bf16.msra.mxu0 0
    %1900 = vmatprep.subr.bf16.mxu0 0
    %1901 = vmatpush1.bf16.msra.mxu0 0
    %1902 = vmatprep.subr.bf16.mxu0 0
    %1903 = vmatpush1.bf16.msra.mxu0 0
    %1904 = vmatprep.subr.bf16.mxu0 0
    %1905 = vmatpush1.bf16.msra.mxu0 0
    %1906 = vmatprep.subr.bf16.mxu0 0
    %1907 = vmatpush1.bf16.msra.mxu0 0
    %1908 = vmatprep.subr.bf16.mxu0 0
    %1909 = vmatpush1.bf16.msra.mxu0 0
    %1910 = vmatprep.subr.bf16.mxu0 0
    %1911 = vmatpush1.bf16.msra.mxu0 0
    %1912 = vmatprep.subr.bf16.mxu0 0
    %1913 = vmatpush1.bf16.msra.mxu0 0
    %1914 = vmatprep.subr.bf16.mxu0 0
    %1915 = vmatpush1.bf16.msra.mxu0 0
    %1916 = vmatprep.subr.bf16.mxu0 0
    %1917 = vmatpush1.bf16.msra.mxu0 0
    %1918 = vmatprep.subr.bf16.mxu0 0
    %1919 = vmatpush1.bf16.msra.mxu0 0
    %1920 = vmatprep.subr.bf16.mxu0 0
    %1921 = vmatpush1.bf16.msra.mxu0 0
    %1922 = vmatprep.subr.bf16.mxu0 0
    %1923 = vmatpush1.bf16.msra.mxu0 0
    %1924 = vmatprep.subr.bf16.mxu0 0
    %1925 = vmatpush1.bf16.msra.mxu0 0
    %1926 = vmatprep.subr.bf16.mxu0 0
    %1927 = vmatpush1.bf16.msra.mxu0 0
    %1928 = vmatprep.mubr.bf16.mxu0 0
    %1929 = vmatmul.mubr.bf16.gmra.mrb[0].mxu0 %v1891
    %v1930 = vpop.f32.mrb[0].mxu0
    %v1931 = vadd.f32 0.0, %v1930
    %v1932 = vpop.f32.mrb[0].mxu0
    %v1933 = vpop.f32.mrb[0].mxu0
    %v1934 = vpop.f32.mrb[0].mxu0
    %1935 = vdwg.mxu0
    %v1936 = vpack.c.bf16 %v1931, %v1883
    %v1937 = vld [vmem:[%s12 + $0x4] sm:$0xf]
    %v1939 = vsel %vm187, %v1936, 0
    %v1942 = vsel %vm312, %v1937, 0
    %1944 = vmatprep.subr.bf16.mxu0 0
    %1945 = vmatpush1.bf16.msra.mxu0 %v1942
    %1946 = vmatprep.subr.bf16.mxu0 0
    %1947 = vmatpush1.bf16.msra.mxu0 0
    %1948 = vmatprep.subr.bf16.mxu0 0
    %1949 = vmatpush1.bf16.msra.mxu0 0
    %1950 = vmatprep.subr.bf16.mxu0 0
    %1951 = vmatpush1.bf16.msra.mxu0 0
    %1952 = vmatprep.subr.bf16.mxu0 0
    %1953 = vmatpush1.bf16.msra.mxu0 0
    %1954 = vmatprep.subr.bf16.mxu0 0
    %1955 = vmatpush1.bf16.msra.mxu0 0
    %1956 = vmatprep.subr.bf16.mxu0 0
    %1957 = vmatpush1.bf16.msra.mxu0 0
    %1958 = vmatprep.subr.bf16.mxu0 0
    %1959 = vmatpush1.bf16.msra.mxu0 0
    %1960 = vmatprep.subr.bf16.mxu0 0
    %1961 = vmatpush1.bf16.msra.mxu0 0
    %1962 = vmatprep.subr.bf16.mxu0 0
    %1963 = vmatpush1.bf16.msra.mxu0 0
    %1964 = vmatprep.subr.bf16.mxu0 0
    %1965 = vmatpush1.bf16.msra.mxu0 0
    %1966 = vmatprep.subr.bf16.mxu0 0
    %1967 = vmatpush1.bf16.msra.mxu0 0
    %1968 = vmatprep.subr.bf16.mxu0 0
    %1969 = vmatpush1.bf16.msra.mxu0 0
    %1970 = vmatprep.subr.bf16.mxu0 0
    %1971 = vmatpush1.bf16.msra.mxu0 0
    %1972 = vmatprep.subr.bf16.mxu0 0
    %1973 = vmatpush1.bf16.msra.mxu0 0
    %1974 = vmatprep.subr.bf16.mxu0 0
    %1975 = vmatpush1.bf16.msra.mxu0 0
    %1976 = vmatprep.mubr.bf16.mxu0 0
    %1977 = vmatmul.mubr.bf16.gmra.mrb[0].mxu0 %v1939
    %v1978 = vpop.f32.mrb[0].mxu0
    %v1979 = vadd.f32 0.0, %v1978
    %v1980 = vpop.f32.mrb[0].mxu0
    %v1981 = vpop.f32.mrb[0].mxu0
    %v1982 = vadd.f32 0.0, %v1981
    %v1983 = vpop.f32.mrb[0].mxu0
    %1984 = vdwg.mxu0
    %v1986 = vsel %vm187, %v1712, 0
    %v1989 = vsel %vm312, %v1713, 0
    %1991 = vmatprep.subr.bf16.mxu0 0
    %1992 = vmatpush1.bf16.msra.mxu0 %v1989
    %1993 = vmatprep.subr.bf16.mxu0 0
    %1994 = vmatpush1.bf16.msra.mxu0 0
    %1995 = vmatprep.subr.bf16.mxu0 0
    %1996 = vmatpush1.bf16.msra.mxu0 0
    %1997 = vmatprep.subr.bf16.mxu0 0
    %1998 = vmatpush1.bf16.msra.mxu0 0
    %1999 = vmatprep.subr.bf16.mxu0 0
    %2000 = vmatpush1.bf16.msra.mxu0 0
    %2001 = vmatprep.subr.bf16.mxu0 0
    %2002 = vmatpush1.bf16.msra.mxu0 0
    %2003 = vmatprep.subr.bf16.mxu0 0
    %2004 = vmatpush1.bf16.msra.mxu0 0
    %2005 = vmatprep.subr.bf16.mxu0 0
    %2006 = vmatpush1.bf16.msra.mxu0 0
    %2007 = vmatprep.subr.bf16.mxu0 0
    %2008 = vmatpush1.bf16.msra.mxu0 0
    %2009 = vmatprep.subr.bf16.mxu0 0
    %2010 = vmatpush1.bf16.msra.mxu0 0
    %2011 = vmatprep.subr.bf16.mxu0 0
    %2012 = vmatpush1.bf16.msra.mxu0 0
    %2013 = vmatprep.subr.bf16.mxu0 0
    %2014 = vmatpush1.bf16.msra.mxu0 0
    %2015 = vmatprep.subr.bf16.mxu0 0
    %2016 = vmatpush1.bf16.msra.mxu0 0
    %2017 = vmatprep.subr.bf16.mxu0 0
    %2018 = vmatpush1.bf16.msra.mxu0 0
    %2019 = vmatprep.subr.bf16.mxu0 0
    %2020 = vmatpush1.bf16.msra.mxu0 0
    %2021 = vmatprep.subr.bf16.mxu0 0
    %2022 = vmatpush1.bf16.msra.mxu0 0
    %2023 = vmatprep.mubr.bf16.mxu0 0
    %2024 = vmatmul.mubr.bf16.gmra.mrb[0].mxu0 %v1986
    %v2025 = vpop.f32.mrb[0].mxu0
    %v2026 = vadd.f32 %v1979, %v2025
    %v2027 = vpop.f32.mrb[0].mxu0
    %v2028 = vpop.f32.mrb[0].mxu0
    %v2029 = vadd.f32 %v1982, %v2028
    %v2030 = vpop.f32.mrb[0].mxu0
    %2031 = vdwg.mxu0
    %2032 = vrot.lane.b32.xlu0 %v1481, 112
    %v2033 = vpop.permute.xlu0 %2032
    %2034 = vrot.lane.b32.xlu0 %v1494, 112
    %v2035 = vpop.permute.xlu0 %2034
    %v2037 = vsel %vm187, %v2033, 0
    %v2040 = vsel %vm187, %v2035, 0
    %2042 = vmatprep.subr.bf16.mxu0 0
    %2043 = vmatpush1.bf16.xpose.msra.mxu0 %v2040
    %2044 = vmatprep.subr.bf16.mxu0 0
    %2045 = vmatpush1.bf16.xpose.msra.mxu0 0
    %2046 = vmatprep.subr.bf16.mxu0 0
    %2047 = vmatpush1.bf16.xpose.msra.mxu0 0
    %2048 = vmatprep.subr.bf16.mxu0 0
    %2049 = vmatpush1.bf16.xpose.msra.mxu0 0
    %2050 = vmatprep.subr.bf16.mxu0 0
    %2051 = vmatpush1.bf16.xpose.msra.mxu0 0
    %2052 = vmatprep.subr.bf16.mxu0 0
    %2053 = vmatpush1.bf16.xpose.msra.mxu0 0
    %2054 = vmatprep.subr.bf16.mxu0 0
    %2055 = vmatpush1.bf16.xpose.msra.mxu0 0
    %2056 = vmatprep.subr.bf16.mxu0 0
    %2057 = vmatpush1.bf16.xpose.msra.mxu0 0
    %2058 = vmatprep.subr.bf16.mxu0 0
    %2059 = vmatpush1.bf16.xpose.msra.mxu0 0
    %2060 = vmatprep.subr.bf16.mxu0 0
    %2061 = vmatpush1.bf16.xpose.msra.mxu0 0
    %2062 = vmatprep.subr.bf16.mxu0 0
    %2063 = vmatpush1.bf16.xpose.msra.mxu0 0
    %2064 = vmatprep.subr.bf16.mxu0 0
    %2065 = vmatpush1.bf16.xpose.msra.mxu0 0
    %2066 = vmatprep.subr.bf16.mxu0 0
    %2067 = vmatpush1.bf16.xpose.msra.mxu0 0
    %2068 = vmatprep.subr.bf16.mxu0 0
    %2069 = vmatpush1.bf16.xpose.msra.mxu0 0
    %2070 = vmatprep.subr.bf16.mxu0 0
    %2071 = vmatpush1.bf16.xpose.msra.mxu0 0
    %2072 = vmatprep.subr.bf16.mxu0 0
    %2073 = vmatpush1.bf16.xpose.msra.mxu0 0
    %2074 = vmatprep.mubr.bf16.mxu0 0
    %2075 = vmatmul.mubr.bf16.gmra.mrb[0].mxu0 %v2037
    %v2076 = vpop.f32.mrb[0].mxu0
    %v2077 = vadd.f32 0.0, %v2076
    %v2078 = vpop.f32.mrb[0].mxu0
    %v2079 = vpop.f32.mrb[0].mxu0
    %v2080 = vpop.f32.mrb[0].mxu0
    %2081 = vdwg.mxu0
    %2082 = vrot.lane.b32.xlu0 %v1482, 112
    %v2083 = vpop.permute.xlu0 %2082
    %2084 = vrot.lane.b32.xlu0 %v1495, 112
    %v2085 = vpop.permute.xlu0 %2084
    %v2087 = vsel %vm187, %v2083, 0
    %v2090 = vsel %vm187, %v2085, 0
    %2092 = vmatprep.subr.bf16.mxu0 0
    %2093 = vmatpush1.bf16.xpose.msra.mxu0 %v2090
    %2094 = vmatprep.subr.bf16.mxu0 0
    %2095 = vmatpush1.bf16.xpose.msra.mxu0 0
    %2096 = vmatprep.subr.bf16.mxu0 0
    %2097 = vmatpush1.bf16.xpose.msra.mxu0 0
    %2098 = vmatprep.subr.bf16.mxu0 0
    %2099 = vmatpush1.bf16.xpose.msra.mxu0 0
    %2100 = vmatprep.subr.bf16.mxu0 0
    %2101 = vmatpush1.bf16.xpose.msra.mxu0 0
    %2102 = vmatprep.subr.bf16.mxu0 0
    %2103 = vmatpush1.bf16.xpose.msra.mxu0 0
    %2104 = vmatprep.subr.bf16.mxu0 0
    %2105 = vmatpush1.bf16.xpose.msra.mxu0 0
    %2106 = vmatprep.subr.bf16.mxu0 0
    %2107 = vmatpush1.bf16.xpose.msra.mxu0 0
    %2108 = vmatprep.subr.bf16.mxu0 0
    %2109 = vmatpush1.bf16.xpose.msra.mxu0 0
    %2110 = vmatprep.subr.bf16.mxu0 0
    %2111 = vmatpush1.bf16.xpose.msra.mxu0 0
    %2112 = vmatprep.subr.bf16.mxu0 0
    %2113 = vmatpush1.bf16.xpose.msra.mxu0 0
    %2114 = vmatprep.subr.bf16.mxu0 0
    %2115 = vmatpush1.bf16.xpose.msra.mxu0 0
    %2116 = vmatprep.subr.bf16.mxu0 0
    %2117 = vmatpush1.bf16.xpose.msra.mxu0 0
    %2118 = vmatprep.subr.bf16.mxu0 0
    %2119 = vmatpush1.bf16.xpose.msra.mxu0 0
    %2120 = vmatprep.subr.bf16.mxu0 0
    %2121 = vmatpush1.bf16.xpose.msra.mxu0 0
    %2122 = vmatprep.subr.bf16.mxu0 0
    %2123 = vmatpush1.bf16.xpose.msra.mxu0 0
    %2124 = vmatprep.mubr.bf16.mxu0 0
    %2125 = vmatmul.mubr.bf16.gmra.mrb[0].mxu0 %v2087
    %v2126 = vpop.f32.mrb[0].mxu0
    %v2127 = vadd.f32 0.0, %v2126
    %v2128 = vpop.f32.mrb[0].mxu0
    %v2129 = vpop.f32.mrb[0].mxu0
    %v2130 = vpop.f32.mrb[0].mxu0
    %2131 = vdwg.mxu0
    %v2132 = vsel %vm1588, %v2077, -inf
    %2133 = vmax.xlane.f32.xlu0 %v2132
    %v2134 = vpop.xlane.xlu0 %2133
    %v2135 = vsel %vm1588, %v2127, -inf
    %2136 = vmax.xlane.f32.xlu0 %v2135
    %v2137 = vpop.xlane.xlu0 %2136
    %v2138 = vsub.f32 %v2077, %v2134
    %v2139 = vsub.f32 %v2127, %v2137
    %v2140 = vmul.f32 %v2138, 1.442695
    %v2141 = vpow.pop %v2140
    %v2142 = vmul.f32 %v2139, 1.442695
    %v2143 = vpow.pop %v2142
    %v2144 = vsel %vm1588, %v2141, 0.0
    %2145 = vadd.xlane.f32.xlu0 %v2144
    %v2146 = vpop.xlane.xlu0 %2145
    %v2147 = vsel %vm1588, %v2143, 0.0
    %2148 = vadd.xlane.f32.xlu0 %v2147
    %v2149 = vpop.xlane.xlu0 %2148
    %v2150 = vrcp.pop %v2146
    %v2151 = vrcp.pop %v2149
    %v2152 = vmul.f32 %v2141, %v2150
    %v2153 = vmul.f32 %v2143, %v2151
    %v2154 = vpack.c.bf16 %v2152, %v2152
    %v2155 = vpack.c.bf16 %v2153, %v2153
    %2156 = vrot.lane.b32.xlu0 %v1494, 80
    %v2157 = vpop.permute.xlu0 %2156
    %v2159 = vsel %vm1588, %v2154, 0
    %v2162 = vsel %vm1619, %v2157, 0
    %2164 = vmatprep.subr.bf16.mxu0 0
    %2165 = vmatpush1.bf16.msra.mxu0 %v2162
    %2166 = vmatprep.subr.bf16.mxu0 0
    %2167 = vmatpush1.bf16.msra.mxu0 0
    %2168 = vmatprep.subr.bf16.mxu0 0
    %2169 = vmatpush1.bf16.msra.mxu0 0
    %2170 = vmatprep.subr.bf16.mxu0 0
    %2171 = vmatpush1.bf16.msra.mxu0 0
    %2172 = vmatprep.subr.bf16.mxu0 0
    %2173 = vmatpush1.bf16.msra.mxu0 0
    %2174 = vmatprep.subr.bf16.mxu0 0
    %2175 = vmatpush1.bf16.msra.mxu0 0
    %2176 = vmatprep.subr.bf16.mxu0 0
    %2177 = vmatpush1.bf16.msra.mxu0 0
    %2178 = vmatprep.subr.bf16.mxu0 0
    %2179 = vmatpush1.bf16.msra.mxu0 0
    %2180 = vmatprep.subr.bf16.mxu0 0
    %2181 = vmatpush1.bf16.msra.mxu0 0
    %2182 = vmatprep.subr.bf16.mxu0 0
    %2183 = vmatpush1.bf16.msra.mxu0 0
    %2184 = vmatprep.subr.bf16.mxu0 0
    %2185 = vmatpush1.bf16.msra.mxu0 0
    %2186 = vmatprep.subr.bf16.mxu0 0
    %2187 = vmatpush1.bf16.msra.mxu0 0
    %2188 = vmatprep.subr.bf16.mxu0 0
    %2189 = vmatpush1.bf16.msra.mxu0 0
    %2190 = vmatprep.subr.bf16.mxu0 0
    %2191 = vmatpush1.bf16.msra.mxu0 0
    %2192 = vmatprep.subr.bf16.mxu0 0
    %2193 = vmatpush1.bf16.msra.mxu0 0
    %2194 = vmatprep.subr.bf16.mxu0 0
    %2195 = vmatpush1.bf16.msra.mxu0 0
    %2196 = vmatprep.mubr.bf16.mxu0 0
    %2197 = vmatmul.mubr.bf16.gmra.mrb[0].mxu0 %v2159
    %v2198 = vpop.f32.mrb[0].mxu0
    %v2199 = vadd.f32 0.0, %v2198
    %v2200 = vpop.f32.mrb[0].mxu0
    %v2201 = vpop.f32.mrb[0].mxu0
    %v2202 = vpop.f32.mrb[0].mxu0
    %2203 = vdwg.mxu0
    %2204 = vrot.lane.b32.xlu0 %v1495, 80
    %v2205 = vpop.permute.xlu0 %2204
    %v2207 = vsel %vm1588, %v2155, 0
    %v2210 = vsel %vm1619, %v2205, 0
    %2212 = vmatprep.subr.bf16.mxu0 0
    %2213 = vmatpush1.bf16.msra.mxu0 %v2210
    %2214 = vmatprep.subr.bf16.mxu0 0
    %2215 = vmatpush1.bf16.msra.mxu0 0
    %2216 = vmatprep.subr.bf16.mxu0 0
    %2217 = vmatpush1.bf16.msra.mxu0 0
    %2218 = vmatprep.subr.bf16.mxu0 0
    %2219 = vmatpush1.bf16.msra.mxu0 0
    %2220 = vmatprep.subr.bf16.mxu0 0
    %2221 = vmatpush1.bf16.msra.mxu0 0
    %2222 = vmatprep.subr.bf16.mxu0 0
    %2223 = vmatpush1.bf16.msra.mxu0 0
    %2224 = vmatprep.subr.bf16.mxu0 0
    %2225 = vmatpush1.bf16.msra.mxu0 0
    %2226 = vmatprep.subr.bf16.mxu0 0
    %2227 = vmatpush1.bf16.msra.mxu0 0
    %2228 = vmatprep.subr.bf16.mxu0 0
    %2229 = vmatpush1.bf16.msra.mxu0 0
    %2230 = vmatprep.subr.bf16.mxu0 0
    %2231 = vmatpush1.bf16.msra.mxu0 0
    %2232 = vmatprep.subr.bf16.mxu0 0
    %2233 = vmatpush1.bf16.msra.mxu0 0
    %2234 = vmatprep.subr.bf16.mxu0 0
    %2235 = vmatpush1.bf16.msra.mxu0 0
    %2236 = vmatprep.subr.bf16.mxu0 0
    %2237 = vmatpush1.bf16.msra.mxu0 0
    %2238 = vmatprep.subr.bf16.mxu0 0
    %2239 = vmatpush1.bf16.msra.mxu0 0
    %2240 = vmatprep.subr.bf16.mxu0 0
    %2241 = vmatpush1.bf16.msra.mxu0 0
    %2242 = vmatprep.subr.bf16.mxu0 0
    %2243 = vmatpush1.bf16.msra.mxu0 0
    %2244 = vmatprep.mubr.bf16.mxu0 0
    %2245 = vmatmul.mubr.bf16.gmra.mrb[0].mxu0 %v2207
    %v2246 = vpop.f32.mrb[0].mxu0
    %v2247 = vadd.f32 0.0, %v2246
    %v2248 = vpop.f32.mrb[0].mxu0
    %v2249 = vpop.f32.mrb[0].mxu0
    %v2250 = vpop.f32.mrb[0].mxu0
    %2251 = vdwg.mxu0
    %v2252 = vpack.c.bf16 %v2247, %v2199
    %v2253 = vld [vmem:[%s12 + $0x8] sm:$0xf]
    %v2255 = vsel %vm187, %v2252, 0
    %v2258 = vsel %vm312, %v2253, 0
    %2260 = vmatprep.subr.bf16.mxu0 0
    %2261 = vmatpush1.bf16.msra.mxu0 %v2258
    %2262 = vmatprep.subr.bf16.mxu0 0
    %2263 = vmatpush1.bf16.msra.mxu0 0
    %2264 = vmatprep.subr.bf16.mxu0 0
    %2265 = vmatpush1.bf16.msra.mxu0 0
    %2266 = vmatprep.subr.bf16.mxu0 0
    %2267 = vmatpush1.bf16.msra.mxu0 0
    %2268 = vmatprep.subr.bf16.mxu0 0
    %2269 = vmatpush1.bf16.msra.mxu0 0
    %2270 = vmatprep.subr.bf16.mxu0 0
    %2271 = vmatpush1.bf16.msra.mxu0 0
    %2272 = vmatprep.subr.bf16.mxu0 0
    %2273 = vmatpush1.bf16.msra.mxu0 0
    %2274 = vmatprep.subr.bf16.mxu0 0
    %2275 = vmatpush1.bf16.msra.mxu0 0
    %2276 = vmatprep.subr.bf16.mxu0 0
    %2277 = vmatpush1.bf16.msra.mxu0 0
    %2278 = vmatprep.subr.bf16.mxu0 0
    %2279 = vmatpush1.bf16.msra.mxu0 0
    %2280 = vmatprep.subr.bf16.mxu0 0
    %2281 = vmatpush1.bf16.msra.mxu0 0
    %2282 = vmatprep.subr.bf16.mxu0 0
    %2283 = vmatpush1.bf16.msra.mxu0 0
    %2284 = vmatprep.subr.bf16.mxu0 0
    %2285 = vmatpush1.bf16.msra.mxu0 0
    %2286 = vmatprep.subr.bf16.mxu0 0
    %2287 = vmatpush1.bf16.msra.mxu0 0
    %2288 = vmatprep.subr.bf16.mxu0 0
    %2289 = vmatpush1.bf16.msra.mxu0 0
    %2290 = vmatprep.subr.bf16.mxu0 0
    %2291 = vmatpush1.bf16.msra.mxu0 0
    %2292 = vmatprep.mubr.bf16.mxu0 0
    %2293 = vmatmul.mubr.bf16.gmra.mrb[0].mxu0 %v2255
    %v2294 = vpop.f32.mrb[0].mxu0
    %v2295 = vadd.f32 0.0, %v2294
    %v2296 = vpop.f32.mrb[0].mxu0
    %v2297 = vpop.f32.mrb[0].mxu0
    %v2298 = vadd.f32 0.0, %v2297
    %v2299 = vpop.f32.mrb[0].mxu0
    %2300 = vdwg.mxu0
    %v2301 = vadd.f32 %v2026, %v2295
    %v2302 = vadd.f32 %v2029, %v2298
    %2303 = vrot.lane.b32.xlu0 %v1481, 104
    %v2304 = vpop.permute.xlu0 %2303
    %2305 = vrot.lane.b32.xlu0 %v1494, 104
    %v2306 = vpop.permute.xlu0 %2305
    %v2308 = vsel %vm187, %v2304, 0
    %v2311 = vsel %vm187, %v2306, 0
    %2313 = vmatprep.subr.bf16.mxu0 0
    %2314 = vmatpush1.bf16.xpose.msra.mxu0 %v2311
    %2315 = vmatprep.subr.bf16.mxu0 0
    %2316 = vmatpush1.bf16.xpose.msra.mxu0 0
    %2317 = vmatprep.subr.bf16.mxu0 0
    %2318 = vmatpush1.bf16.xpose.msra.mxu0 0
    %2319 = vmatprep.subr.bf16.mxu0 0
    %2320 = vmatpush1.bf16.xpose.msra.mxu0 0
    %2321 = vmatprep.subr.bf16.mxu0 0
    %2322 = vmatpush1.bf16.xpose.msra.mxu0 0
    %2323 = vmatprep.subr.bf16.mxu0 0
    %2324 = vmatpush1.bf16.xpose.msra.mxu0 0
    %2325 = vmatprep.subr.bf16.mxu0 0
    %2326 = vmatpush1.bf16.xpose.msra.mxu0 0
    %2327 = vmatprep.subr.bf16.mxu0 0
    %2328 = vmatpush1.bf16.xpose.msra.mxu0 0
    %2329 = vmatprep.subr.bf16.mxu0 0
    %2330 = vmatpush1.bf16.xpose.msra.mxu0 0
    %2331 = vmatprep.subr.bf16.mxu0 0
    %2332 = vmatpush1.bf16.xpose.msra.mxu0 0
    %2333 = vmatprep.subr.bf16.mxu0 0
    %2334 = vmatpush1.bf16.xpose.msra.mxu0 0
    %2335 = vmatprep.subr.bf16.mxu0 0
    %2336 = vmatpush1.bf16.xpose.msra.mxu0 0
    %2337 = vmatprep.subr.bf16.mxu0 0
    %2338 = vmatpush1.bf16.xpose.msra.mxu0 0
    %2339 = vmatprep.subr.bf16.mxu0 0
    %2340 = vmatpush1.bf16.xpose.msra.mxu0 0
    %2341 = vmatprep.subr.bf16.mxu0 0
    %2342 = vmatpush1.bf16.xpose.msra.mxu0 0
    %2343 = vmatprep.subr.bf16.mxu0 0
    %2344 = vmatpush1.bf16.xpose.msra.mxu0 0
    %2345 = vmatprep.mubr.bf16.mxu0 0
    %2346 = vmatmul.mubr.bf16.gmra.mrb[0].mxu0 %v2308
    %v2347 = vpop.f32.mrb[0].mxu0
    %v2348 = vadd.f32 0.0, %v2347
    %v2349 = vpop.f32.mrb[0].mxu0
    %v2350 = vpop.f32.mrb[0].mxu0
    %v2351 = vpop.f32.mrb[0].mxu0
    %2352 = vdwg.mxu0
    %2353 = vrot.lane.b32.xlu0 %v1482, 104
    %v2354 = vpop.permute.xlu0 %2353
    %2355 = vrot.lane.b32.xlu0 %v1495, 104
    %v2356 = vpop.permute.xlu0 %2355
    %v2358 = vsel %vm187, %v2354, 0
    %v2361 = vsel %vm187, %v2356, 0
    %2363 = vmatprep.subr.bf16.mxu0 0
    %2364 = vmatpush1.bf16.xpose.msra.mxu0 %v2361
    %2365 = vmatprep.subr.bf16.mxu0 0
    %2366 = vmatpush1.bf16.xpose.msra.mxu0 0
    %2367 = vmatprep.subr.bf16.mxu0 0
    %2368 = vmatpush1.bf16.xpose.msra.mxu0 0
    %2369 = vmatprep.subr.bf16.mxu0 0
    %2370 = vmatpush1.bf16.xpose.msra.mxu0 0
    %2371 = vmatprep.subr.bf16.mxu0 0
    %2372 = vmatpush1.bf16.xpose.msra.mxu0 0
    %2373 = vmatprep.subr.bf16.mxu0 0
    %2374 = vmatpush1.bf16.xpose.msra.mxu0 0
    %2375 = vmatprep.subr.bf16.mxu0 0
    %2376 = vmatpush1.bf16.xpose.msra.mxu0 0
    %2377 = vmatprep.subr.bf16.mxu0 0
    %2378 = vmatpush1.bf16.xpose.msra.mxu0 0
    %2379 = vmatprep.subr.bf16.mxu0 0
    %2380 = vmatpush1.bf16.xpose.msra.mxu0 0
    %2381 = vmatprep.subr.bf16.mxu0 0
    %2382 = vmatpush1.bf16.xpose.msra.mxu0 0
    %2383 = vmatprep.subr.bf16.mxu0 0
    %2384 = vmatpush1.bf16.xpose.msra.mxu0 0
    %2385 = vmatprep.subr.bf16.mxu0 0
    %2386 = vmatpush1.bf16.xpose.msra.mxu0 0
    %2387 = vmatprep.subr.bf16.mxu0 0
    %2388 = vmatpush1.bf16.xpose.msra.mxu0 0
    %2389 = vmatprep.subr.bf16.mxu0 0
    %2390 = vmatpush1.bf16.xpose.msra.mxu0 0
    %2391 = vmatprep.subr.bf16.mxu0 0
    %2392 = vmatpush1.bf16.xpose.msra.mxu0 0
    %2393 = vmatprep.subr.bf16.mxu0 0
    %2394 = vmatpush1.bf16.xpose.msra.mxu0 0
    %2395 = vmatprep.mubr.bf16.mxu0 0
    %2396 = vmatmul.mubr.bf16.gmra.mrb[0].mxu0 %v2358
    %v2397 = vpop.f32.mrb[0].mxu0
    %v2398 = vadd.f32 0.0, %v2397
    %v2399 = vpop.f32.mrb[0].mxu0
    %v2400 = vpop.f32.mrb[0].mxu0
    %v2401 = vpop.f32.mrb[0].mxu0
    %2402 = vdwg.mxu0
    %v2403 = vsel %vm1588, %v2348, -inf
    %2404 = vmax.xlane.f32.xlu0 %v2403
    %v2405 = vpop.xlane.xlu0 %2404
    %v2406 = vsel %vm1588, %v2398, -inf
    %2407 = vmax.xlane.f32.xlu0 %v2406
    %v2408 = vpop.xlane.xlu0 %2407
    %v2409 = vsub.f32 %v2348, %v2405
    %v2410 = vsub.f32 %v2398, %v2408
    %v2411 = vmul.f32 %v2409, 1.442695
    %v2412 = vpow.pop %v2411
    %v2413 = vmul.f32 %v2410, 1.442695
    %v2414 = vpow.pop %v2413
    %v2415 = vsel %vm1588, %v2412, 0.0
    %2416 = vadd.xlane.f32.xlu0 %v2415
    %v2417 = vpop.xlane.xlu0 %2416
    %v2418 = vsel %vm1588, %v2414, 0.0
    %2419 = vadd.xlane.f32.xlu0 %v2418
    %v2420 = vpop.xlane.xlu0 %2419
    %v2421 = vrcp.pop %v2417
    %v2422 = vrcp.pop %v2420
    %v2423 = vmul.f32 %v2412, %v2421
    %v2424 = vmul.f32 %v2414, %v2422
    %v2425 = vpack.c.bf16 %v2423, %v2423
    %v2426 = vpack.c.bf16 %v2424, %v2424
    %2427 = vrot.lane.b32.xlu0 %v1494, 72
    %v2428 = vpop.permute.xlu0 %2427
    %v2430 = vsel %vm1588, %v2425, 0
    %v2433 = vsel %vm1619, %v2428, 0
    %2435 = vmatprep.subr.bf16.mxu0 0
    %2436 = vmatpush1.bf16.msra.mxu0 %v2433
    %2437 = vmatprep.subr.bf16.mxu0 0
    %2438 = vmatpush1.bf16.msra.mxu0 0
    %2439 = vmatprep.subr.bf16.mxu0 0
    %2440 = vmatpush1.bf16.msra.mxu0 0
    %2441 = vmatprep.subr.bf16.mxu0 0
    %2442 = vmatpush1.bf16.msra.mxu0 0
    %2443 = vmatprep.subr.bf16.mxu0 0
    %2444 = vmatpush1.bf16.msra.mxu0 0
    %2445 = vmatprep.subr.bf16.mxu0 0
    %2446 = vmatpush1.bf16.msra.mxu0 0
    %2447 = vmatprep.subr.bf16.mxu0 0
    %2448 = vmatpush1.bf16.msra.mxu0 0
    %2449 = vmatprep.subr.bf16.mxu0 0
    %2450 = vmatpush1.bf16.msra.mxu0 0
    %2451 = vmatprep.subr.bf16.mxu0 0
    %2452 = vmatpush1.bf16.msra.mxu0 0
    %2453 = vmatprep.subr.bf16.mxu0 0
    %2454 = vmatpush1.bf16.msra.mxu0 0
    %2455 = vmatprep.subr.bf16.mxu0 0
    %2456 = vmatpush1.bf16.msra.mxu0 0
    %2457 = vmatprep.subr.bf16.mxu0 0
    %2458 = vmatpush1.bf16.msra.mxu0 0
    %2459 = vmatprep.subr.bf16.mxu0 0
    %2460 = vmatpush1.bf16.msra.mxu0 0
    %2461 = vmatprep.subr.bf16.mxu0 0
    %2462 = vmatpush1.bf16.msra.mxu0 0
    %2463 = vmatprep.subr.bf16.mxu0 0
    %2464 = vmatpush1.bf16.msra.mxu0 0
    %2465 = vmatprep.subr.bf16.mxu0 0
    %2466 = vmatpush1.bf16.msra.mxu0 0
    %2467 = vmatprep.mubr.bf16.mxu0 0
    %2468 = vmatmul.mubr.bf16.gmra.mrb[0].mxu0 %v2430
    %v2469 = vpop.f32.mrb[0].mxu0
    %v2470 = vadd.f32 0.0, %v2469
    %v2471 = vpop.f32.mrb[0].mxu0
    %v2472 = vpop.f32.mrb[0].mxu0
    %v2473 = vpop.f32.mrb[0].mxu0
    %2474 = vdwg.mxu0
    %2475 = vrot.lane.b32.xlu0 %v1495, 72
    %v2476 = vpop.permute.xlu0 %2475
    %v2478 = vsel %vm1588, %v2426, 0
    %v2481 = vsel %vm1619, %v2476, 0
    %2483 = vmatprep.subr.bf16.mxu0 0
    %2484 = vmatpush1.bf16.msra.mxu0 %v2481
    %2485 = vmatprep.subr.bf16.mxu0 0
    %2486 = vmatpush1.bf16.msra.mxu0 0
    %2487 = vmatprep.subr.bf16.mxu0 0
    %2488 = vmatpush1.bf16.msra.mxu0 0
    %2489 = vmatprep.subr.bf16.mxu0 0
    %2490 = vmatpush1.bf16.msra.mxu0 0
    %2491 = vmatprep.subr.bf16.mxu0 0
    %2492 = vmatpush1.bf16.msra.mxu0 0
    %2493 = vmatprep.subr.bf16.mxu0 0
    %2494 = vmatpush1.bf16.msra.mxu0 0
    %2495 = vmatprep.subr.bf16.mxu0 0
    %2496 = vmatpush1.bf16.msra.mxu0 0
    %2497 = vmatprep.subr.bf16.mxu0 0
    %2498 = vmatpush1.bf16.msra.mxu0 0
    %2499 = vmatprep.subr.bf16.mxu0 0
    %2500 = vmatpush1.bf16.msra.mxu0 0
    %2501 = vmatprep.subr.bf16.mxu0 0
    %2502 = vmatpush1.bf16.msra.mxu0 0
    %2503 = vmatprep.subr.bf16.mxu0 0
    %2504 = vmatpush1.bf16.msra.mxu0 0
    %2505 = vmatprep.subr.bf16.mxu0 0
    %2506 = vmatpush1.bf16.msra.mxu0 0
    %2507 = vmatprep.subr.bf16.mxu0 0
    %2508 = vmatpush1.bf16.msra.mxu0 0
    %2509 = vmatprep.subr.bf16.mxu0 0
    %2510 = vmatpush1.bf16.msra.mxu0 0
    %2511 = vmatprep.subr.bf16.mxu0 0
    %2512 = vmatpush1.bf16.msra.mxu0 0
    %2513 = vmatprep.subr.bf16.mxu0 0
    %2514 = vmatpush1.bf16.msra.mxu0 0
    %2515 = vmatprep.mubr.bf16.mxu0 0
    %2516 = vmatmul.mubr.bf16.gmra.mrb[0].mxu0 %v2478
    %v2517 = vpop.f32.mrb[0].mxu0
    %v2518 = vadd.f32 0.0, %v2517
    %v2519 = vpop.f32.mrb[0].mxu0
    %v2520 = vpop.f32.mrb[0].mxu0
    %v2521 = vpop.f32.mrb[0].mxu0
    %2522 = vdwg.mxu0
    %v2523 = vpack.c.bf16 %v2518, %v2470
    %v2524 = vld [vmem:[%s12 + $0xc] sm:$0xf]
    %v2526 = vsel %vm187, %v2523, 0
    %v2529 = vsel %vm312, %v2524, 0
    %2531 = vmatprep.subr.bf16.mxu0 0
    %2532 = vmatpush1.bf16.msra.mxu0 %v2529
    %2533 = vmatprep.subr.bf16.mxu0 0
    %2534 = vmatpush1.bf16.msra.mxu0 0
    %2535 = vmatprep.subr.bf16.mxu0 0
    %2536 = vmatpush1.bf16.msra.mxu0 0
    %2537 = vmatprep.subr.bf16.mxu0 0
    %2538 = vmatpush1.bf16.msra.mxu0 0
    %2539 = vmatprep.subr.bf16.mxu0 0
    %2540 = vmatpush1.bf16.msra.mxu0 0
    %2541 = vmatprep.subr.bf16.mxu0 0
    %2542 = vmatpush1.bf16.msra.mxu0 0
    %2543 = vmatprep.subr.bf16.mxu0 0
    %2544 = vmatpush1.bf16.msra.mxu0 0
    %2545 = vmatprep.subr.bf16.mxu0 0
    %2546 = vmatpush1.bf16.msra.mxu0 0
    %2547 = vmatprep.subr.bf16.mxu0 0
    %2548 = vmatpush1.bf16.msra.mxu0 0
    %2549 = vmatprep.subr.bf16.mxu0 0
    %2550 = vmatpush1.bf16.msra.mxu0 0
    %2551 = vmatprep.subr.bf16.mxu0 0
    %2552 = vmatpush1.bf16.msra.mxu0 0
    %2553 = vmatprep.subr.bf16.mxu0 0
    %2554 = vmatpush1.bf16.msra.mxu0 0
    %2555 = vmatprep.subr.bf16.mxu0 0
    %2556 = vmatpush1.bf16.msra.mxu0 0
    %2557 = vmatprep.subr.bf16.mxu0 0
    %2558 = vmatpush1.bf16.msra.mxu0 0
    %2559 = vmatprep.subr.bf16.mxu0 0
    %2560 = vmatpush1.bf16.msra.mxu0 0
    %2561 = vmatprep.subr.bf16.mxu0 0
    %2562 = vmatpush1.bf16.msra.mxu0 0
    %2563 = vmatprep.mubr.bf16.mxu0 0
    %2564 = vmatmul.mubr.bf16.gmra.mrb[0].mxu0 %v2526
    %v2565 = vpop.f32.mrb[0].mxu0
    %v2566 = vadd.f32 0.0, %v2565
    %v2567 = vpop.f32.mrb[0].mxu0
    %v2568 = vpop.f32.mrb[0].mxu0
    %v2569 = vadd.f32 0.0, %v2568
    %v2570 = vpop.f32.mrb[0].mxu0
    %2571 = vdwg.mxu0
    %v2572 = vadd.f32 %v2301, %v2566
    %v2573 = vadd.f32 %v2302, %v2569
    %2574 = vst.msk [vmem:[#allocation10] sm:$0xff] %vm1588, %v1609
    %2575 = vst.msk [vmem:[#allocation10 + $0x8] sm:$0xff] %vm1588, %v1836
    %2576 = vst.msk [vmem:[#allocation10 + $0x10] sm:$0xff] %vm1588, %v2152
    %2577 = vst.msk [vmem:[#allocation10 + $0x18] sm:$0xff] %vm1588, %v2423
    %2578 = vst.msk [vmem:[#allocation10 + $0x20] sm:$0xff] %vm1588, %v1610
    %2579 = vst.msk [vmem:[#allocation10 + $0x28] sm:$0xff] %vm1588, %v1837
    %2580 = vst.msk [vmem:[#allocation10 + $0x30] sm:$0xff] %vm1588, %v2153
    %2581 = vst.msk [vmem:[#allocation10 + $0x38] sm:$0xff] %vm1588, %v2424
    %v2582 = vld [vmem:[%s13] sm:$0x1]
    %v2584 = vlaneseq
    %v2585 = vshrl.u32 %v2584, 7
    %v2586 = vsub.s32 0, %v2585
    %v2587 = vrot.slane %v2582, %v2586
    %v2589 = vadd.f32 %v2572, %v2587
    %v2590 = vadd.f32 %v2573, %v2587
    %v2591 = vadd.f32 %v1326, %v2589
    %v2592 = vadd.f32 %v1327, %v2590
    %v2593 = vsel %vm137, %v2591, 0.0
    %2594 = vadd.xlane.f32.xlu0 %v2593
    %v2595 = vpop.xlane.xlu0 %2594
    %v2596 = vsel %vm137, %v2592, 0.0
    %2597 = vadd.xlane.f32.xlu0 %v2596
    %v2598 = vpop.xlane.xlu0 %2597
    %v2599 = vmul.f32 %v2595, %v1289
    %v2600 = vmul.f32 %v2598, %v1289
    %v2601 = vsub.f32 %v2591, %v2599
    %v2602 = vsub.f32 %v2592, %v2600
    %v2603 = vmul.f32 %v2601, %v2601
    %v2604 = vmul.f32 %v2602, %v2602
    %v2605 = vsel %vm137, %v2603, 0.0
    %2606 = vadd.xlane.f32.xlu0 %v2605
    %v2607 = vpop.xlane.xlu0 %2606
    %v2608 = vsel %vm137, %v2604, 0.0
    %2609 = vadd.xlane.f32.xlu0 %v2608
    %v2610 = vpop.xlane.xlu0 %2609
    %v2611 = vmul.f32 %v2607, %v1289
    %v2612 = vmul.f32 %v2610, %v1289
    %v2613 = vadd.f32 %v2611, 1e-05
    %v2614 = vadd.f32 %v2612, 1e-05
    %v2615 = vrsqrt.pop %v2613
    %v2616 = vrsqrt.pop %v2614
    %v2617 = vmul.f32 %v2601, %v2615
    %v2618 = vmul.f32 %v2602, %v2616
    %v2619 = vld [vmem:[%s14] sm:$0x1]
    %v2621 = vlaneseq
    %v2622 = vshrl.u32 %v2621, 7
    %v2623 = vsub.s32 0, %v2622
    %v2624 = vrot.slane %v2619, %v2623
    %v2626 = vmul.f32 %v2617, %v2624
    %v2627 = vmul.f32 %v2618, %v2624
    %v2628 = vld [vmem:[%s15] sm:$0x1]
    %v2630 = vlaneseq
    %v2631 = vshrl.u32 %v2630, 7
    %v2632 = vsub.s32 0, %v2631
    %v2633 = vrot.slane %v2628, %v2632
    %v2635 = vadd.f32 %v2626, %v2633
    %v2636 = vadd.f32 %v2627, %v2633
    %v2637 = vpack.c.bf16 %v2636, %v2635
    %v2638 = vld [vmem:[%s16] sm:$0xf]
    %v2639 = vld [vmem:[%s16 + $0x4] sm:$0xf]
    %v2640 = vld [vmem:[%s16 + $0x8] sm:$0xf]
    %v2641 = vld [vmem:[%s16 + $0xc] sm:$0xf]
    %v2642 = vld [vmem:[%s17] sm:$0x1]
    %v2644 = vlaneseq
    %v2645 = vshrl.u32 %v2644, 7
    %v2646 = vsub.s32 0, %v2645
    %v2647 = vrot.slane %v2642, %v2646
    %v2653 = vunpack.c.l.b16 %v2638
    %v2654 = vunpack.c.l.b16 %v2639
    %v2655 = vunpack.c.l.b16 %v2640
    %v2656 = vunpack.c.l.b16 %v2641
    %v2657 = vpack.c.b16 %v2654, %v2653
    %v2658 = vpack.c.b16 %v2656, %v2655
    %v2662 = vsel %vm137, %v2637, 0
    %2664 = vmatprep.subr.bf16.mxu0 0
    %2665 = vmatpush1.bf16.msra.mxu0 %v2657
    %2666 = vmatprep.subr.bf16.mxu0 0
    %2667 = vmatpush1.bf16.msra.mxu0 %v2658
    %2668 = vmatprep.subr.bf16.mxu0 0
    %2669 = vmatpush1.bf16.msra.mxu0 0
    %2670 = vmatprep.subr.bf16.mxu0 0
    %2671 = vmatpush1.bf16.msra.mxu0 0
    %2672 = vmatprep.subr.bf16.mxu0 0
    %2673 = vmatpush1.bf16.msra.mxu0 0
    %2674 = vmatprep.subr.bf16.mxu0 0
    %2675 = vmatpush1.bf16.msra.mxu0 0
    %2676 = vmatprep.subr.bf16.mxu0 0
    %2677 = vmatpush1.bf16.msra.mxu0 0
    %2678 = vmatprep.subr.bf16.mxu0 0
    %2679 = vmatpush1.bf16.msra.mxu0 0
    %2680 = vmatprep.subr.bf16.mxu0 0
    %2681 = vmatpush1.bf16.msra.mxu0 0
    %2682 = vmatprep.subr.bf16.mxu0 0
    %2683 = vmatpush1.bf16.msra.mxu0 0
    %2684 = vmatprep.subr.bf16.mxu0 0
    %2685 = vmatpush1.bf16.msra.mxu0 0
    %2686 = vmatprep.subr.bf16.mxu0 0
    %2687 = vmatpush1.bf16.msra.mxu0 0
    %2688 = vmatprep.subr.bf16.mxu0 0
    %2689 = vmatpush1.bf16.msra.mxu0 0
    %2690 = vmatprep.subr.bf16.mxu0 0
    %2691 = vmatpush1.bf16.msra.mxu0 0
    %2692 = vmatprep.subr.bf16.mxu0 0
    %2693 = vmatpush1.bf16.msra.mxu0 0
    %2694 = vmatprep.subr.bf16.mxu0 0
    %2695 = vmatpush1.bf16.msra.mxu0 0
    %2696 = vmatprep.mubr.bf16.mxu0 0
    %2697 = vmatmul.mubr.bf16.gmra.mrb[0].mxu0 %v2662
    %v2698 = vpop.f32.mrb[0].mxu0
    %v2699 = vadd.f32 %v2647, %v2698
    %v2700 = vpop.f32.mrb[0].mxu0
    %v2701 = vpop.f32.mrb[0].mxu0
    %v2702 = vadd.f32 %v2647, %v2701
    %v2703 = vpop.f32.mrb[0].mxu0
    %2704 = vdwg.mxu0
    %v2705 = vmax.f32 %v2699, 0.0
    %v2706 = vmax.f32 %v2702, 0.0
    %v2707 = vpack.c.bf16 %v2706, %v2705
    %v2708 = vld [vmem:[%s18] sm:$0xf]
    %v2709 = vld [vmem:[%s18 + $0x4] sm:$0xf]
    %v2710 = vld [vmem:[%s18 + $0x8] sm:$0xf]
    %v2711 = vld [vmem:[%s18 + $0xc] sm:$0xf]
    %v2712 = vld [vmem:[%s18 + $0x10] sm:$0xf]
    %v2713 = vld [vmem:[%s18 + $0x14] sm:$0xf]
    %v2714 = vld [vmem:[%s18 + $0x18] sm:$0xf]
    %v2715 = vld [vmem:[%s18 + $0x1c] sm:$0xf]
    %v2716 = vld [vmem:[%s19] sm:$0x1]
    %v2718 = vlaneseq
    %v2719 = vshrl.u32 %v2718, 7
    %v2720 = vsub.s32 0, %v2719
    %v2721 = vrot.slane %v2716, %v2720
    %v2731 = vunpack.c.l.b16 %v2708
    %v2732 = vunpack.c.l.b16 %v2709
    %v2733 = vunpack.c.l.b16 %v2710
    %v2734 = vunpack.c.l.b16 %v2711
    %v2735 = vunpack.c.l.b16 %v2712
    %v2736 = vunpack.c.l.b16 %v2713
    %v2737 = vunpack.c.l.b16 %v2714
    %v2738 = vunpack.c.l.b16 %v2715
    %v2739 = vpack.c.b16 %v2732, %v2731
    %v2740 = vpack.c.b16 %v2734, %v2733
    %v2741 = vpack.c.b16 %v2736, %v2735
    %v2742 = vpack.c.b16 %v2738, %v2737
    %vm2747 = vcmask 523264
    %v2749 = vsel %vm2747, %v2707, 0
    %2751 = vmatprep.subr.bf16.mxu0 0
    %2752 = vmatpush1.bf16.msra.mxu0 %v2739
    %2753 = vmatprep.subr.bf16.mxu0 0
    %2754 = vmatpush1.bf16.msra.mxu0 %v2740
    %2755 = vmatprep.subr.bf16.mxu0 0
    %2756 = vmatpush1.bf16.msra.mxu0 %v2741
    %2757 = vmatprep.subr.bf16.mxu0 0
    %2758 = vmatpush1.bf16.msra.mxu0 %v2742
    %2759 = vmatprep.subr.bf16.mxu0 0
    %2760 = vmatpush1.bf16.msra.mxu0 0
    %2761 = vmatprep.subr.bf16.mxu0 0
    %2762 = vmatpush1.bf16.msra.mxu0 0
    %2763 = vmatprep.subr.bf16.mxu0 0
    %2764 = vmatpush1.bf16.msra.mxu0 0
    %2765 = vmatprep.subr.bf16.mxu0 0
    %2766 = vmatpush1.bf16.msra.mxu0 0
    %2767 = vmatprep.subr.bf16.mxu0 0
    %2768 = vmatpush1.bf16.msra.mxu0 0
    %2769 = vmatprep.subr.bf16.mxu0 0
    %2770 = vmatpush1.bf16.msra.mxu0 0
    %2771 = vmatprep.subr.bf16.mxu0 0
    %2772 = vmatpush1.bf16.msra.mxu0 0
    %2773 = vmatprep.subr.bf16.mxu0 0
    %2774 = vmatpush1.bf16.msra.mxu0 0
    %2775 = vmatprep.subr.bf16.mxu0 0
    %2776 = vmatpush1.bf16.msra.mxu0 0
    %2777 = vmatprep.subr.bf16.mxu0 0
    %2778 = vmatpush1.bf16.msra.mxu0 0
    %2779 = vmatprep.subr.bf16.mxu0 0
    %2780 = vmatpush1.bf16.msra.mxu0 0
    %2781 = vmatprep.subr.bf16.mxu0 0
    %2782 = vmatpush1.bf16.msra.mxu0 0
    %2783 = vmatprep.mubr.bf16.mxu0 0
    %2784 = vmatmul.mubr.bf16.gmra.mrb[0].mxu0 %v2749
    %v2785 = vpop.f32.mrb[0].mxu0
    %v2786 = vadd.f32 %v2721, %v2785
    %v2787 = vpop.f32.mrb[0].mxu0
    %v2788 = vpop.f32.mrb[0].mxu0
    %v2789 = vadd.f32 %v2721, %v2788
    %v2790 = vpop.f32.mrb[0].mxu0
    %2791 = vdwg.mxu0
    %v2792 = vadd.f32 %v2635, %v2786
    %v2793 = vadd.f32 %v2636, %v2789
    %v2794 = vsel %vm137, %v2792, 0.0
    %2795 = vadd.xlane.f32.xlu0 %v2794
    %v2796 = vpop.xlane.xlu0 %2795
    %v2797 = vsel %vm137, %v2793, 0.0
    %2798 = vadd.xlane.f32.xlu0 %v2797
    %v2799 = vpop.xlane.xlu0 %2798
    %v2800 = vmul.f32 %v2796, %v1289
    %v2801 = vmul.f32 %v2799, %v1289
    %v2802 = vsub.f32 %v2792, %v2800
    %v2803 = vsub.f32 %v2793, %v2801
    %v2804 = vmul.f32 %v2802, %v2802
    %v2805 = vmul.f32 %v2803, %v2803
    %v2806 = vsel %vm137, %v2804, 0.0
    %2807 = vadd.xlane.f32.xlu0 %v2806
    %v2808 = vpop.xlane.xlu0 %2807
    %v2809 = vsel %vm137, %v2805, 0.0
    %2810 = vadd.xlane.f32.xlu0 %v2809
    %v2811 = vpop.xlane.xlu0 %2810
    %v2812 = vmul.f32 %v2808, %v1289
    %v2813 = vmul.f32 %v2811, %v1289
    %v2814 = vadd.f32 %v2812, 1e-05
    %v2815 = vadd.f32 %v2813, 1e-05
    %v2816 = vrsqrt.pop %v2814
    %v2817 = vrsqrt.pop %v2815
    %v2818 = vmul.f32 %v2802, %v2816
    %v2819 = vmul.f32 %v2803, %v2817
    %v2820 = vld [vmem:[%s20] sm:$0x1]
    %v2822 = vlaneseq
    %v2823 = vshrl.u32 %v2822, 7
    %v2824 = vsub.s32 0, %v2823
    %v2825 = vrot.slane %v2820, %v2824
    %v2827 = vmul.f32 %v2818, %v2825
    %v2828 = vmul.f32 %v2819, %v2825
    %v2829 = vld [vmem:[%s21] sm:$0x1]
    %v2831 = vlaneseq
    %v2832 = vshrl.u32 %v2831, 7
    %v2833 = vsub.s32 0, %v2832
    %v2834 = vrot.slane %v2829, %v2833
    %v2836 = vadd.f32 %v2827, %v2834
    %v2837 = vadd.f32 %v2828, %v2834
    %2838 = vst.msk [vmem:[#allocation7] sm:$0xff] %vm137, %v2836
    %2839 = vst.msk [vmem:[#allocation7 + $0x8] sm:$0xff] %vm137, %v2837
    // Predicated region
    $region98: #{tpu_custom_call.1} parent=1 // pred_check
      _
    $region99: #{tpu_custom_call.1} parent=1 // pred_check_branch
      %2841 = sbr.rel (0) target = $region101
    $region100: #{tpu_custom_call.1} parent=1 // pred_region
      %s2843 = ssub.s32 256, 256
      %2844 = vsyncadd [#allocation4], %s2843
      %s2845 = sshll.u32 [#allocation7], 4
      %s2846 = int_to_ptr.vmem [resolvable:$true] %s2845
      %2851 = dma.vmem_to_hbm [thread:$0]  %s2846, 256, %s22, [#allocation4], 128, 128, 8
    $region101: #{tpu_custom_call.1} parent=1 // pred_fallthru
      _
    // Predicated region
    $region102: #{tpu_custom_call.1} parent=1 // pred_check
      _
    $region103: #{tpu_custom_call.1} parent=1 // pred_check_branch
      %2853 = sbr.rel (0) target = $region105
    $region104: #{tpu_custom_call.1} parent=1 // pred_region
      %s2855 = ssub.s32 1024, 1024
      %2856 = vsyncadd [#allocation9], %s2855
      %s2857 = sshll.u32 [#allocation8], 4
      %s2858 = int_to_ptr.vmem [resolvable:$true] %s2857
      %2863 = dma.vmem_to_hbm [thread:$0]  %s2858, 1024, %s23, [#allocation9], 128, 128, 8
    $region105: #{tpu_custom_call.1} parent=1 // pred_fallthru
      _
    // Predicated region
    $region106: #{tpu_custom_call.1} parent=1 // pred_check
      _
    $region107: #{tpu_custom_call.1} parent=1 // pred_check_branch
      %2865 = sbr.rel (0) target = $region109
    $region108: #{tpu_custom_call.1} parent=1 // pred_region
      %s2867 = ssub.s32 1024, 1024
      %2868 = vsyncadd [#allocation9], %s2867
      %s2869 = sshll.u32 [#allocation10], 4
      %s2870 = int_to_ptr.vmem [resolvable:$true] %s2869
      %2875 = dma.vmem_to_hbm [thread:$0]  %s2870, 1024, %s24, [#allocation9], 128, 128, 8
    $region109: #{tpu_custom_call.1} parent=1 // pred_fallthru
      _
    // Predicated region
    $region110: #{tpu_custom_call.1} parent=1 // pred_check
      _
    $region111: #{tpu_custom_call.1} parent=1 // pred_check_branch
      %2877 = sbr.rel (0) target = $region113
    $region112: #{tpu_custom_call.1} parent=1 // pred_region
      %2878 = dma.done [#allocation4], 256
    $region113: #{tpu_custom_call.1} parent=1 // pred_fallthru
      _
    // Predicated region
    $region114: #{tpu_custom_call.1} parent=1 // pred_check
      _
    $region115: #{tpu_custom_call.1} parent=1 // pred_check_branch
      %2880 = sbr.rel (0) target = $region117
    $region116: #{tpu_custom_call.1} parent=1 // pred_region
      %2881 = dma.done [#allocation9], 1024
    $region117: #{tpu_custom_call.1} parent=1 // pred_fallthru
      _
    // Predicated region
    $region118: #{tpu_custom_call.1} parent=1 // pred_check
      _
    $region119: #{tpu_custom_call.1} parent=1 // pred_check_branch
      %2883 = sbr.rel (0) target = $region121
    $region120: #{tpu_custom_call.1} parent=1 // pred_region
      %2884 = dma.done [#allocation9], 1024
    $region121: #{tpu_custom_call.1} parent=1 // pred_fallthru
      _
    %2885 = vsyncpa [#allocation3], 1
    %2886 = vsyncpa [#allocation6], 1
    %2887 = vsyncpa [#allocation4], 1
    %2888 = vsyncpa [#allocation9], 1

</llo_original>
